<compile_context>
chip_gen: v7x
topology: tpu7x:2x2x1
jax: 0.10.0
libtpu: 0.0.40
codegen_flags: <defaults>
</compile_context>

<pallas_src>
import math

import jax
import jax.numpy as jnp
from jax.experimental import pallas as pl
from jax.experimental.pallas import tpu as pltpu

# ---- model hyper-parameters (small, consistent with the module's forward) ----
LAYERS = 2            # num transformer encoder layers
D = 32                # d_model (embedding dim = D - 1, expression feature = +1)
HEADS = 4             # nhead
DH = D // HEADS       # per-head dim
FF = 64               # dim_feedforward
B = 2                 # batch
L = 8                 # sequence length
N = B * L             # total token rows processed in one kernel invocation
TOKENS = 16657        # GeneUtils.tokens = 1 + 16656
EPS = 1e-5            # torch LayerNorm default eps
INITIAL_TF_WEIGHT = 2.0
NEG_MASK = -1e30      # finite stand-in for -inf inside the kernel (exp underflows to 0)


def _layer_norm_t(xt, w, b):
    """LayerNorm over the feature axis of a feature-major [D, N] activation."""
    mu = jnp.mean(xt, axis=0, keepdims=True)
    var = jnp.mean((xt - mu) ** 2, axis=0, keepdims=True)
    return (xt - mu) * jax.lax.rsqrt(var + EPS) * w + b


def model_kernel(xT_ref, mask_ref,
                 wq_ref, wk_ref, wv_ref, bq_ref, bk_ref, bv_ref,
                 wo_ref, bo_ref, ln1w_ref, ln1b_ref,
                 w1_ref, b1_ref, w2_ref, b2_ref, ln2w_ref, ln2b_ref,
                 wc_ref, bc_ref, o_ref):
    """Whole-batch transformer encoder + classifier in one invocation.

    xT_ref   : [D, N]     feature-major activations (N = B*L token rows)
    mask_ref : [N, N]     block-diagonal additive attention mask (query x key), finite
    weights  : per-layer stacked, torch [out, in] layout; Wq/bq pre-scaled by 1/sqrt(DH)
    o_ref    : [1, N]     predicted expression (lane-dense row)
    """
    xT = xT_ref[...]                                                    # [D, N]
    # Hoisted mask broadcast (JAX does not CSE broadcast_in_dim across the layer loop).
    mask3 = jnp.broadcast_to(mask_ref[...][None, :, :], (HEADS, N, N))  # [H, N, N]

    for li in range(LAYERS):
        # ---- multi-head self-attention (heads batched, no per-head loop) ----
        qT = jnp.dot(wq_ref[li], xT, preferred_element_type=jnp.float32) + bq_ref[li]  # [D, N]
        kT = jnp.dot(wk_ref[li], xT, preferred_element_type=jnp.float32) + bk_ref[li]  # [D, N]
        vT = jnp.dot(wv_ref[li], xT, preferred_element_type=jnp.float32) + bv_ref[li]  # [D, N]

        kT3 = kT.reshape(HEADS, DH, N)                       # head-major split: free reshape
        vT3 = vT.reshape(HEADS, DH, N)
        q3 = jnp.swapaxes(qT.reshape(HEADS, DH, N), 1, 2)    # [H, N, DH] (minor-dim transpose)

        # scores: one batched dot_general over heads; Q already carries 1/sqrt(DH)
        s = jnp.einsum('hqe,hek->hqk', q3, kT3,
                       preferred_element_type=jnp.float32) + mask3      # [H, N, N]
        s = s - jnp.max(s, axis=-1, keepdims=True)
        p = jnp.exp(s)
        p = p * pl.reciprocal(jnp.sum(p, axis=-1, keepdims=True))       # exact 1/l, bcast-mul

        # P @ V, one batched dot_general; result lands directly in feature-major layout
        oT = jnp.einsum('hek,hqk->heq', vT3, p,
                        preferred_element_type=jnp.float32).reshape(D, N)  # [D, N]
        attnT = jnp.dot(wo_ref[li], oT, preferred_element_type=jnp.float32) + bo_ref[li]

        # post-norm residual (torch default norm_first=False)
        xT = _layer_norm_t(xT + attnT, ln1w_ref[li], ln1b_ref[li])

        # ---- feed-forward (relu) ----
        h1 = jnp.dot(w1_ref[li], xT, preferred_element_type=jnp.float32) + b1_ref[li]   # [FF, N]
        h1 = jnp.maximum(h1, 0.0)
        h2 = jnp.dot(w2_ref[li], h1, preferred_element_type=jnp.float32) + b2_ref[li]   # [D, N]
        xT = _layer_norm_t(xT + h2, ln2w_ref[li], ln2b_ref[li])

    # ---- classifier: Linear(D, 1), written as one lane-dense [1, N] row ----
    o_ref[...] = jnp.dot(wc_ref[...], xT, preferred_element_type=jnp.float32) + bc_ref[...]


def model_transformer_pallas(gi, ge, am, params):
    """Forward pass matching ModelTransformer.forward (eval mode). Returns [B, L]."""
    # ---- host/XLA-side glue: embedding gather, feature concat, weight layout ----
    # TODO(synk): the 16657-row embedding gather stays outside the kernel (jnp.take);
    # negligible at B*L=16, could be fused via scalar-prefetch row gather for large batches.
    x1 = jnp.take(params["emb"], gi, axis=0)                # [B, L, D-1]
    x = jnp.concatenate([x1, ge[..., None]], axis=-1)       # [B, L, D]
    xT = x.reshape(N, D).T                                  # [D, N] feature-major

    # Block-diagonal additive attention mask [N, N]:
    #   same sequence  -> exp(tf_weight) * am[b, key]   (same for all heads / queries)
    #   cross sequence -> masked out                     (folds batch into one attention)
    # Clamped to a finite large-negative so the kernel never sees -inf.
    key_vals = (jnp.exp(params["tf_weight"]) * am).reshape(N)
    seq_id = jnp.repeat(jnp.arange(B), L)
    same = seq_id[:, None] == seq_id[None, :]
    mask2d = jnp.where(same, key_vals[None, :], NEG_MASK)
    mask2d = jnp.maximum(mask2d, NEG_MASK).astype(jnp.float32)

    # Split fused QKV host-side (zero-cost layout) and fold 1/sqrt(DH) into the Q proj.
    scale = 1.0 / math.sqrt(DH)
    wqkv, bqkv = params["w_qkv"], params["b_qkv"]
    wq = wqkv[:, 0:D, :] * scale
    wk = wqkv[:, D:2 * D, :]
    wv = wqkv[:, 2 * D:3 * D, :]
    bq = bqkv[:, 0:D, None] * scale
    bk = bqkv[:, D:2 * D, None]
    bv = bqkv[:, 2 * D:3 * D, None]

    args = (
        xT, mask2d,
        wq, wk, wv, bq, bk, bv,
        params["wo"], params["bo"][:, :, None],
        params["ln1_w"][:, :, None], params["ln1_b"][:, :, None],
        params["w1"], params["b1"][:, :, None],
        params["w2"], params["b2"][:, :, None],
        params["ln2_w"][:, :, None], params["ln2_b"][:, :, None],
        params["wc"], params["bc"].reshape(1, 1),
    )
    vmem = pl.BlockSpec(memory_space=pltpu.MemorySpace.VMEM)
    out = pl.pallas_call(
        model_kernel,
        out_shape=jax.ShapeDtypeStruct((1, N), jnp.float32),
        in_specs=[vmem] * len(args),
        out_specs=vmem,
    )(*args)
    return out.reshape(B, L)


# ---- pure-JAX reference (same math, no Pallas) for a correctness check ----
def _ln_ref(x, w, b):
    mu = jnp.mean(x, axis=-1, keepdims=True)
    var = jnp.mean((x - mu) ** 2, axis=-1, keepdims=True)
    return (x - mu) * jax.lax.rsqrt(var + EPS) * w + b


def model_transformer_ref(gi, ge, am, params):
    x1 = jnp.take(params["emb"], gi, axis=0)
    x = jnp.concatenate([x1, ge[..., None]], axis=-1)        # [B, L, D]
    amv = jnp.exp(params["tf_weight"]) * am                  # [B, L]
    scale = 1.0 / math.sqrt(DH)

    def one_seq(xb, mb):                                     # xb: [L, D], mb: [L]
        h = xb
        for li in range(LAYERS):
            qkv = h @ params["w_qkv"][li].T + params["b_qkv"][li]       # [L, 3D]
            q, k, v = qkv[:, :D], qkv[:, D:2 * D], qkv[:, 2 * D:]
            q = q.reshape(L, HEADS, DH).transpose(1, 0, 2) * scale      # [H, L, DH]
            k = k.reshape(L, HEADS, DH).transpose(1, 0, 2)
            v = v.reshape(L, HEADS, DH).transpose(1, 0, 2)
            s = jnp.einsum('hqd,hkd->hqk', q, k) + mb[None, None, :]
            p = jax.nn.softmax(s, axis=-1)
            o = jnp.einsum('hqk,hkd->hqd', p, v)                        # [H, L, DH]
            o = o.transpose(1, 0, 2).reshape(L, D)
            attn = o @ params["wo"][li].T + params["bo"][li]
            h = _ln_ref(h + attn, params["ln1_w"][li], params["ln1_b"][li])
            f = jnp.maximum(h @ params["w1"][li].T + params["b1"][li], 0.0)
            f = f @ params["w2"][li].T + params["b2"][li]
            h = _ln_ref(h + f, params["ln2_w"][li], params["ln2_b"][li])
        return (h @ params["wc"].T + params["bc"])[:, 0]
    return jax.vmap(one_seq)(x, amv)


def init_params(key):
    ks = jax.random.split(key, 12)

    def nrm(k, shape, s=0.05):
        return jax.random.normal(k, shape, dtype=jnp.float32) * s

    emb = nrm(ks[0], (TOKENS, D - 1), 0.1)
    emb = emb.at[0].set(0.0)                                  # padding_idx = 0
    return {
        "emb": emb,
        "tf_weight": jnp.log(jnp.float32(INITIAL_TF_WEIGHT)),
        # attention projections, torch layouts: in_proj [3D, D], out_proj [D, D]
        "w_qkv": nrm(ks[1], (LAYERS, 3 * D, D)),
        "b_qkv": nrm(ks[2], (LAYERS, 3 * D), 0.02),
        "wo": nrm(ks[3], (LAYERS, D, D)),
        "bo": nrm(ks[4], (LAYERS, D), 0.02),
        # layer norms
        "ln1_w": jnp.ones((LAYERS, D), jnp.float32),
        "ln1_b": jnp.zeros((LAYERS, D), jnp.float32),
        "ln2_w": jnp.ones((LAYERS, D), jnp.float32),
        "ln2_b": jnp.zeros((LAYERS, D), jnp.float32),
        # feed-forward, torch layouts: linear1 [FF, D], linear2 [D, FF]
        "w1": nrm(ks[5], (LAYERS, FF, D)),
        "b1": nrm(ks[6], (LAYERS, FF), 0.02),
        "w2": nrm(ks[7], (LAYERS, D, FF)),
        "b2": nrm(ks[8], (LAYERS, D), 0.02),
        # classifier Linear(D, 1)
        "wc": nrm(ks[9], (1, D)),
        "bc": nrm(ks[10], (1,), 0.02),
    }


if __name__ == "__main__":
    key = jax.random.PRNGKey(0)
    kp, kg, ke = jax.random.split(key, 3)
    params = init_params(kp)

    # gi: gene indices (0 = pad id), ge: expressions, am: 0 / 1(tf) / -inf(pad)
    gi = jax.random.randint(kg, (B, L), 1, TOKENS, dtype=jnp.int32)
    gi = gi.at[:, -1].set(0)                                  # pad last position
    ge = jax.random.normal(ke, (B, L), dtype=jnp.float32)
    ge = ge.at[:, -1].set(-10.0)                              # exp_mask_value at pad
    am = jnp.zeros((B, L), jnp.float32)
    am = am.at[:, 0].set(1.0)                                 # mark first token as tf
    am = am.at[:, -1].set(-jnp.inf)                           # pad key masked out

    fwd = jax.jit(model_transformer_pallas)
    out = jax.block_until_ready(fwd(gi, ge, am, params))

    ref = model_transformer_ref(gi, ge, am, params)
    assert out.shape == (B, L)
    assert jnp.allclose(out, ref, rtol=2e-4, atol=2e-4), (out, ref)

    print("KERNEL_OK")
</pallas_src>

<mosaic_0001>
module attributes {stable_mosaic.version = 11 : i64} {
  func.func @model_kernel(%arg0: memref<32x16xf32, #tpu.memory_space<vmem>>, %arg1: memref<16x16xf32, #tpu.memory_space<vmem>>, %arg2: memref<2x32x32xf32, #tpu.memory_space<vmem>>, %arg3: memref<2x32x32xf32, #tpu.memory_space<vmem>>, %arg4: memref<2x32x32xf32, #tpu.memory_space<vmem>>, %arg5: memref<2x32x1xf32, #tpu.memory_space<vmem>>, %arg6: memref<2x32x1xf32, #tpu.memory_space<vmem>>, %arg7: memref<2x32x1xf32, #tpu.memory_space<vmem>>, %arg8: memref<2x32x32xf32, #tpu.memory_space<vmem>>, %arg9: memref<2x32x1xf32, #tpu.memory_space<vmem>>, %arg10: memref<2x32x1xf32, #tpu.memory_space<vmem>>, %arg11: memref<2x32x1xf32, #tpu.memory_space<vmem>>, %arg12: memref<2x64x32xf32, #tpu.memory_space<vmem>>, %arg13: memref<2x64x1xf32, #tpu.memory_space<vmem>>, %arg14: memref<2x32x64xf32, #tpu.memory_space<vmem>>, %arg15: memref<2x32x1xf32, #tpu.memory_space<vmem>>, %arg16: memref<2x32x1xf32, #tpu.memory_space<vmem>>, %arg17: memref<2x32x1xf32, #tpu.memory_space<vmem>>, %arg18: memref<1x32xf32, #tpu.memory_space<vmem>>, %arg19: memref<1x1xf32, #tpu.memory_space<vmem>>, %arg20: memref<1x16xf32, #tpu.memory_space<vmem>>) attributes {dimension_semantics = [], scalar_prefetch = 0 : i64, scratch_operands = 0 : i64, tpu.core_type = #tpu.core_type<tc>} {
    %c0 = arith.constant 0 : index
    %c0_0 = arith.constant 0 : index
    %0 = vector.load %arg0[%c0, %c0_0] : memref<32x16xf32, #tpu.memory_space<vmem>>, vector<32x16xf32>
    %c0_1 = arith.constant 0 : index
    %c0_2 = arith.constant 0 : index
    %1 = vector.load %arg1[%c0_1, %c0_2] : memref<16x16xf32, #tpu.memory_space<vmem>>, vector<16x16xf32>
    %2 = vector.shape_cast %1 : vector<16x16xf32> to vector<1x16x16xf32>
    %3 = vector.shape_cast %2 : vector<1x16x16xf32> to vector<1x16x16xf32>
    %4 = vector.broadcast %3 : vector<1x16x16xf32> to vector<4x16x16xf32>
    %c0_3 = arith.constant 0 : index
    %c0_4 = arith.constant 0 : index
    %c0_5 = arith.constant 0 : index
    %5 = vector.load %arg2[%c0_3, %c0_4, %c0_5] : memref<2x32x32xf32, #tpu.memory_space<vmem>>, vector<1x32x32xf32>
    %6 = vector.shape_cast %5 : vector<1x32x32xf32> to vector<32x32xf32>
    %cst = arith.constant dense<0.000000e+00> : vector<32x16xf32>
    %7 = tpu.matmul %6, %0, %cst {dimension_numbers = #tpu.dot_dimension_numbers<[1], [0], [0], [1], [0, 0, 1, 1], [], []>} : vector<32x32xf32>, vector<32x16xf32>, vector<32x16xf32> -> vector<32x16xf32>
    %c0_6 = arith.constant 0 : index
    %c0_7 = arith.constant 0 : index
    %c0_8 = arith.constant 0 : index
    %8 = vector.load %arg5[%c0_6, %c0_7, %c0_8] : memref<2x32x1xf32, #tpu.memory_space<vmem>>, vector<1x32x1xf32>
    %9 = vector.shape_cast %8 : vector<1x32x1xf32> to vector<32x1xf32>
    %10 = vector.broadcast %9 : vector<32x1xf32> to vector<32x16xf32>
    %11 = arith.addf %7, %10 : vector<32x16xf32>
    %c0_9 = arith.constant 0 : index
    %c0_10 = arith.constant 0 : index
    %c0_11 = arith.constant 0 : index
    %12 = vector.load %arg3[%c0_9, %c0_10, %c0_11] : memref<2x32x32xf32, #tpu.memory_space<vmem>>, vector<1x32x32xf32>
    %13 = vector.shape_cast %12 : vector<1x32x32xf32> to vector<32x32xf32>
    %cst_12 = arith.constant dense<0.000000e+00> : vector<32x16xf32>
    %14 = tpu.matmul %13, %0, %cst_12 {dimension_numbers = #tpu.dot_dimension_numbers<[1], [0], [0], [1], [0, 0, 1, 1], [], []>} : vector<32x32xf32>, vector<32x16xf32>, vector<32x16xf32> -> vector<32x16xf32>
    %c0_13 = arith.constant 0 : index
    %c0_14 = arith.constant 0 : index
    %c0_15 = arith.constant 0 : index
    %15 = vector.load %arg6[%c0_13, %c0_14, %c0_15] : memref<2x32x1xf32, #tpu.memory_space<vmem>>, vector<1x32x1xf32>
    %16 = vector.shape_cast %15 : vector<1x32x1xf32> to vector<32x1xf32>
    %17 = vector.broadcast %16 : vector<32x1xf32> to vector<32x16xf32>
    %18 = arith.addf %14, %17 : vector<32x16xf32>
    %c0_16 = arith.constant 0 : index
    %c0_17 = arith.constant 0 : index
    %c0_18 = arith.constant 0 : index
    %19 = vector.load %arg4[%c0_16, %c0_17, %c0_18] : memref<2x32x32xf32, #tpu.memory_space<vmem>>, vector<1x32x32xf32>
    %20 = vector.shape_cast %19 : vector<1x32x32xf32> to vector<32x32xf32>
    %cst_19 = arith.constant dense<0.000000e+00> : vector<32x16xf32>
    %21 = tpu.matmul %20, %0, %cst_19 {dimension_numbers = #tpu.dot_dimension_numbers<[1], [0], [0], [1], [0, 0, 1, 1], [], []>} : vector<32x32xf32>, vector<32x16xf32>, vector<32x16xf32> -> vector<32x16xf32>
    %c0_20 = arith.constant 0 : index
    %c0_21 = arith.constant 0 : index
    %c0_22 = arith.constant 0 : index
    %22 = vector.load %arg7[%c0_20, %c0_21, %c0_22] : memref<2x32x1xf32, #tpu.memory_space<vmem>>, vector<1x32x1xf32>
    %23 = vector.shape_cast %22 : vector<1x32x1xf32> to vector<32x1xf32>
    %24 = vector.broadcast %23 : vector<32x1xf32> to vector<32x16xf32>
    %25 = arith.addf %21, %24 : vector<32x16xf32>
    %26 = vector.shape_cast %18 : vector<32x16xf32> to vector<4x8x16xf32>
    %27 = vector.shape_cast %25 : vector<32x16xf32> to vector<4x8x16xf32>
    %28 = vector.shape_cast %11 : vector<32x16xf32> to vector<4x8x16xf32>
    %29 = tpu.transpose %28, [0, 2, 1] : vector<4x8x16xf32> -> vector<4x16x8xf32>
    "tpu.trace_start"() <{level = 10 : i32, message = "hqe,hek->hqk"}> : () -> ()
    %cst_23 = arith.constant dense<0.000000e+00> : vector<4x16x16xf32>
    %30 = tpu.matmul %29, %26, %cst_23 {dimension_numbers = #tpu.dot_dimension_numbers<[2], [1], [1], [2], [0, 0, 0, 1, 1, 2], [0], [0]>} : vector<4x16x8xf32>, vector<4x8x16xf32>, vector<4x16x16xf32> -> vector<4x16x16xf32>
    "tpu.trace_stop"() : () -> ()
    %31 = arith.addf %30, %4 : vector<4x16x16xf32>
    %cst_24 = arith.constant dense<0xFF800000> : vector<4x16xf32>
    %32 = vector.multi_reduction <maximumf>, %31, %cst_24 [2] : vector<4x16x16xf32> to vector<4x16xf32>
    %33 = vector.shape_cast %32 : vector<4x16xf32> to vector<4x16x1xf32>
    %34 = vector.broadcast %33 : vector<4x16x1xf32> to vector<4x16x16xf32>
    %35 = arith.subf %31, %34 : vector<4x16x16xf32>
    %36 = math.exp %35 : vector<4x16x16xf32>
    %cst_25 = arith.constant dense<0.000000e+00> : vector<4x16xf32>
    %37 = vector.multi_reduction <add>, %36, %cst_25 [2] : vector<4x16x16xf32> to vector<4x16xf32>
    %38 = vector.shape_cast %37 : vector<4x16xf32> to vector<4x16x1xf32>
    %39 = tpu.reciprocal %38 : vector<4x16x1xf32> -> vector<4x16x1xf32>
    %40 = vector.broadcast %39 : vector<4x16x1xf32> to vector<4x16x16xf32>
    %41 = arith.mulf %36, %40 : vector<4x16x16xf32>
    "tpu.trace_start"() <{level = 10 : i32, message = "hek,hqk->heq"}> : () -> ()
    %cst_26 = arith.constant dense<0.000000e+00> : vector<4x8x16xf32>
    %42 = tpu.matmul %27, %41, %cst_26 {dimension_numbers = #tpu.dot_dimension_numbers<[2], [2], [1], [1], [0, 0, 0, 1, 1, 1], [0], [0]>} : vector<4x8x16xf32>, vector<4x16x16xf32>, vector<4x8x16xf32> -> vector<4x8x16xf32>
    "tpu.trace_stop"() : () -> ()
    %43 = vector.shape_cast %42 : vector<4x8x16xf32> to vector<32x16xf32>
    %c0_27 = arith.constant 0 : index
    %c0_28 = arith.constant 0 : index
    %c0_29 = arith.constant 0 : index
    %44 = vector.load %arg8[%c0_27, %c0_28, %c0_29] : memref<2x32x32xf32, #tpu.memory_space<vmem>>, vector<1x32x32xf32>
    %45 = vector.shape_cast %44 : vector<1x32x32xf32> to vector<32x32xf32>
    %cst_30 = arith.constant dense<0.000000e+00> : vector<32x16xf32>
    %46 = tpu.matmul %45, %43, %cst_30 {dimension_numbers = #tpu.dot_dimension_numbers<[1], [0], [0], [1], [0, 0, 1, 1], [], []>} : vector<32x32xf32>, vector<32x16xf32>, vector<32x16xf32> -> vector<32x16xf32>
    %c0_31 = arith.constant 0 : index
    %c0_32 = arith.constant 0 : index
    %c0_33 = arith.constant 0 : index
    %47 = vector.load %arg9[%c0_31, %c0_32, %c0_33] : memref<2x32x1xf32, #tpu.memory_space<vmem>>, vector<1x32x1xf32>
    %48 = vector.shape_cast %47 : vector<1x32x1xf32> to vector<32x1xf32>
    %49 = vector.broadcast %48 : vector<32x1xf32> to vector<32x16xf32>
    %50 = arith.addf %46, %49 : vector<32x16xf32>
    %51 = arith.addf %0, %50 : vector<32x16xf32>
    %c0_34 = arith.constant 0 : index
    %c0_35 = arith.constant 0 : index
    %c0_36 = arith.constant 0 : index
    %52 = vector.load %arg10[%c0_34, %c0_35, %c0_36] : memref<2x32x1xf32, #tpu.memory_space<vmem>>, vector<1x32x1xf32>
    %53 = vector.shape_cast %52 : vector<1x32x1xf32> to vector<32x1xf32>
    %c0_37 = arith.constant 0 : index
    %c0_38 = arith.constant 0 : index
    %c0_39 = arith.constant 0 : index
    %54 = vector.load %arg11[%c0_37, %c0_38, %c0_39] : memref<2x32x1xf32, #tpu.memory_space<vmem>>, vector<1x32x1xf32>
    %55 = vector.shape_cast %54 : vector<1x32x1xf32> to vector<32x1xf32>
    %cst_40 = arith.constant dense<0.000000e+00> : vector<16xf32>
    %56 = vector.multi_reduction <add>, %51, %cst_40 [0] : vector<32x16xf32> to vector<16xf32>
    %57 = vector.shape_cast %56 : vector<16xf32> to vector<1x16xf32>
    %cst_41 = arith.constant 3.200000e+01 : f32
    %58 = vector.broadcast %cst_41 : f32 to vector<1x16xf32>
    %59 = arith.divf %57, %58 : vector<1x16xf32>
    %60 = vector.broadcast %59 : vector<1x16xf32> to vector<32x16xf32>
    %61 = arith.subf %51, %60 : vector<32x16xf32>
    %62 = arith.mulf %61, %61 : vector<32x16xf32>
    %cst_42 = arith.constant dense<0.000000e+00> : vector<16xf32>
    %63 = vector.multi_reduction <add>, %62, %cst_42 [0] : vector<32x16xf32> to vector<16xf32>
    %64 = vector.shape_cast %63 : vector<16xf32> to vector<1x16xf32>
    %cst_43 = arith.constant 3.200000e+01 : f32
    %65 = vector.broadcast %cst_43 : f32 to vector<1x16xf32>
    %66 = arith.divf %64, %65 : vector<1x16xf32>
    %67 = vector.broadcast %59 : vector<1x16xf32> to vector<32x16xf32>
    %68 = arith.subf %51, %67 : vector<32x16xf32>
    %cst_44 = arith.constant 9.99999974E-6 : f32
    %69 = vector.broadcast %cst_44 : f32 to vector<1x16xf32>
    %70 = arith.addf %66, %69 : vector<1x16xf32>
    %71 = math.rsqrt %70 : vector<1x16xf32>
    %72 = vector.broadcast %71 : vector<1x16xf32> to vector<32x16xf32>
    %73 = arith.mulf %68, %72 : vector<32x16xf32>
    %74 = vector.broadcast %53 : vector<32x1xf32> to vector<32x16xf32>
    %75 = arith.mulf %73, %74 : vector<32x16xf32>
    %76 = vector.broadcast %55 : vector<32x1xf32> to vector<32x16xf32>
    %77 = arith.addf %75, %76 : vector<32x16xf32>
    %c0_45 = arith.constant 0 : index
    %c0_46 = arith.constant 0 : index
    %c0_47 = arith.constant 0 : index
    %78 = vector.load %arg12[%c0_45, %c0_46, %c0_47] : memref<2x64x32xf32, #tpu.memory_space<vmem>>, vector<1x64x32xf32>
    %79 = vector.shape_cast %78 : vector<1x64x32xf32> to vector<64x32xf32>
    %cst_48 = arith.constant dense<0.000000e+00> : vector<64x16xf32>
    %80 = tpu.matmul %79, %77, %cst_48 {dimension_numbers = #tpu.dot_dimension_numbers<[1], [0], [0], [1], [0, 0, 1, 1], [], []>} : vector<64x32xf32>, vector<32x16xf32>, vector<64x16xf32> -> vector<64x16xf32>
    %c0_49 = arith.constant 0 : index
    %c0_50 = arith.constant 0 : index
    %c0_51 = arith.constant 0 : index
    %81 = vector.load %arg13[%c0_49, %c0_50, %c0_51] : memref<2x64x1xf32, #tpu.memory_space<vmem>>, vector<1x64x1xf32>
    %82 = vector.shape_cast %81 : vector<1x64x1xf32> to vector<64x1xf32>
    %83 = vector.broadcast %82 : vector<64x1xf32> to vector<64x16xf32>
    %84 = arith.addf %80, %83 : vector<64x16xf32>
    %cst_52 = arith.constant 0.000000e+00 : f32
    %85 = vector.broadcast %cst_52 : f32 to vector<64x16xf32>
    %86 = arith.maximumf %84, %85 : vector<64x16xf32>
    %c0_53 = arith.constant 0 : index
    %c0_54 = arith.constant 0 : index
    %c0_55 = arith.constant 0 : index
    %87 = vector.load %arg14[%c0_53, %c0_54, %c0_55] : memref<2x32x64xf32, #tpu.memory_space<vmem>>, vector<1x32x64xf32>
    %88 = vector.shape_cast %87 : vector<1x32x64xf32> to vector<32x64xf32>
    %cst_56 = arith.constant dense<0.000000e+00> : vector<32x16xf32>
    %89 = tpu.matmul %88, %86, %cst_56 {dimension_numbers = #tpu.dot_dimension_numbers<[1], [0], [0], [1], [0, 0, 1, 1], [], []>} : vector<32x64xf32>, vector<64x16xf32>, vector<32x16xf32> -> vector<32x16xf32>
    %c0_57 = arith.constant 0 : index
    %c0_58 = arith.constant 0 : index
    %c0_59 = arith.constant 0 : index
    %90 = vector.load %arg15[%c0_57, %c0_58, %c0_59] : memref<2x32x1xf32, #tpu.memory_space<vmem>>, vector<1x32x1xf32>
    %91 = vector.shape_cast %90 : vector<1x32x1xf32> to vector<32x1xf32>
    %92 = vector.broadcast %91 : vector<32x1xf32> to vector<32x16xf32>
    %93 = arith.addf %89, %92 : vector<32x16xf32>
    %94 = arith.addf %77, %93 : vector<32x16xf32>
    %c0_60 = arith.constant 0 : index
    %c0_61 = arith.constant 0 : index
    %c0_62 = arith.constant 0 : index
    %95 = vector.load %arg16[%c0_60, %c0_61, %c0_62] : memref<2x32x1xf32, #tpu.memory_space<vmem>>, vector<1x32x1xf32>
    %96 = vector.shape_cast %95 : vector<1x32x1xf32> to vector<32x1xf32>
    %c0_63 = arith.constant 0 : index
    %c0_64 = arith.constant 0 : index
    %c0_65 = arith.constant 0 : index
    %97 = vector.load %arg17[%c0_63, %c0_64, %c0_65] : memref<2x32x1xf32, #tpu.memory_space<vmem>>, vector<1x32x1xf32>
    %98 = vector.shape_cast %97 : vector<1x32x1xf32> to vector<32x1xf32>
    %cst_66 = arith.constant dense<0.000000e+00> : vector<16xf32>
    %99 = vector.multi_reduction <add>, %94, %cst_66 [0] : vector<32x16xf32> to vector<16xf32>
    %100 = vector.shape_cast %99 : vector<16xf32> to vector<1x16xf32>
    %cst_67 = arith.constant 3.200000e+01 : f32
    %101 = vector.broadcast %cst_67 : f32 to vector<1x16xf32>
    %102 = arith.divf %100, %101 : vector<1x16xf32>
    %103 = vector.broadcast %102 : vector<1x16xf32> to vector<32x16xf32>
    %104 = arith.subf %94, %103 : vector<32x16xf32>
    %105 = arith.mulf %104, %104 : vector<32x16xf32>
    %cst_68 = arith.constant dense<0.000000e+00> : vector<16xf32>
    %106 = vector.multi_reduction <add>, %105, %cst_68 [0] : vector<32x16xf32> to vector<16xf32>
    %107 = vector.shape_cast %106 : vector<16xf32> to vector<1x16xf32>
    %cst_69 = arith.constant 3.200000e+01 : f32
    %108 = vector.broadcast %cst_69 : f32 to vector<1x16xf32>
    %109 = arith.divf %107, %108 : vector<1x16xf32>
    %110 = vector.broadcast %102 : vector<1x16xf32> to vector<32x16xf32>
    %111 = arith.subf %94, %110 : vector<32x16xf32>
    %cst_70 = arith.constant 9.99999974E-6 : f32
    %112 = vector.broadcast %cst_70 : f32 to vector<1x16xf32>
    %113 = arith.addf %109, %112 : vector<1x16xf32>
    %114 = math.rsqrt %113 : vector<1x16xf32>
    %115 = vector.broadcast %114 : vector<1x16xf32> to vector<32x16xf32>
    %116 = arith.mulf %111, %115 : vector<32x16xf32>
    %117 = vector.broadcast %96 : vector<32x1xf32> to vector<32x16xf32>
    %118 = arith.mulf %116, %117 : vector<32x16xf32>
    %119 = vector.broadcast %98 : vector<32x1xf32> to vector<32x16xf32>
    %120 = arith.addf %118, %119 : vector<32x16xf32>
    %c1 = arith.constant 1 : index
    %c0_71 = arith.constant 0 : index
    %c0_72 = arith.constant 0 : index
    %121 = vector.load %arg2[%c1, %c0_71, %c0_72] : memref<2x32x32xf32, #tpu.memory_space<vmem>>, vector<1x32x32xf32>
    %122 = vector.shape_cast %121 : vector<1x32x32xf32> to vector<32x32xf32>
    %cst_73 = arith.constant dense<0.000000e+00> : vector<32x16xf32>
    %123 = tpu.matmul %122, %120, %cst_73 {dimension_numbers = #tpu.dot_dimension_numbers<[1], [0], [0], [1], [0, 0, 1, 1], [], []>} : vector<32x32xf32>, vector<32x16xf32>, vector<32x16xf32> -> vector<32x16xf32>
    %c1_74 = arith.constant 1 : index
    %c0_75 = arith.constant 0 : index
    %c0_76 = arith.constant 0 : index
    %124 = vector.load %arg5[%c1_74, %c0_75, %c0_76] : memref<2x32x1xf32, #tpu.memory_space<vmem>>, vector<1x32x1xf32>
    %125 = vector.shape_cast %124 : vector<1x32x1xf32> to vector<32x1xf32>
    %126 = vector.broadcast %125 : vector<32x1xf32> to vector<32x16xf32>
    %127 = arith.addf %123, %126 : vector<32x16xf32>
    %c1_77 = arith.constant 1 : index
    %c0_78 = arith.constant 0 : index
    %c0_79 = arith.constant 0 : index
    %128 = vector.load %arg3[%c1_77, %c0_78, %c0_79] : memref<2x32x32xf32, #tpu.memory_space<vmem>>, vector<1x32x32xf32>
    %129 = vector.shape_cast %128 : vector<1x32x32xf32> to vector<32x32xf32>
    %cst_80 = arith.constant dense<0.000000e+00> : vector<32x16xf32>
    %130 = tpu.matmul %129, %120, %cst_80 {dimension_numbers = #tpu.dot_dimension_numbers<[1], [0], [0], [1], [0, 0, 1, 1], [], []>} : vector<32x32xf32>, vector<32x16xf32>, vector<32x16xf32> -> vector<32x16xf32>
    %c1_81 = arith.constant 1 : index
    %c0_82 = arith.constant 0 : index
    %c0_83 = arith.constant 0 : index
    %131 = vector.load %arg6[%c1_81, %c0_82, %c0_83] : memref<2x32x1xf32, #tpu.memory_space<vmem>>, vector<1x32x1xf32>
    %132 = vector.shape_cast %131 : vector<1x32x1xf32> to vector<32x1xf32>
    %133 = vector.broadcast %132 : vector<32x1xf32> to vector<32x16xf32>
    %134 = arith.addf %130, %133 : vector<32x16xf32>
    %c1_84 = arith.constant 1 : index
    %c0_85 = arith.constant 0 : index
    %c0_86 = arith.constant 0 : index
    %135 = vector.load %arg4[%c1_84, %c0_85, %c0_86] : memref<2x32x32xf32, #tpu.memory_space<vmem>>, vector<1x32x32xf32>
    %136 = vector.shape_cast %135 : vector<1x32x32xf32> to vector<32x32xf32>
    %cst_87 = arith.constant dense<0.000000e+00> : vector<32x16xf32>
    %137 = tpu.matmul %136, %120, %cst_87 {dimension_numbers = #tpu.dot_dimension_numbers<[1], [0], [0], [1], [0, 0, 1, 1], [], []>} : vector<32x32xf32>, vector<32x16xf32>, vector<32x16xf32> -> vector<32x16xf32>
    %c1_88 = arith.constant 1 : index
    %c0_89 = arith.constant 0 : index
    %c0_90 = arith.constant 0 : index
    %138 = vector.load %arg7[%c1_88, %c0_89, %c0_90] : memref<2x32x1xf32, #tpu.memory_space<vmem>>, vector<1x32x1xf32>
    %139 = vector.shape_cast %138 : vector<1x32x1xf32> to vector<32x1xf32>
    %140 = vector.broadcast %139 : vector<32x1xf32> to vector<32x16xf32>
    %141 = arith.addf %137, %140 : vector<32x16xf32>
    %142 = vector.shape_cast %134 : vector<32x16xf32> to vector<4x8x16xf32>
    %143 = vector.shape_cast %141 : vector<32x16xf32> to vector<4x8x16xf32>
    %144 = vector.shape_cast %127 : vector<32x16xf32> to vector<4x8x16xf32>
    %145 = tpu.transpose %144, [0, 2, 1] : vector<4x8x16xf32> -> vector<4x16x8xf32>
    "tpu.trace_start"() <{level = 10 : i32, message = "hqe,hek->hqk"}> : () -> ()
    %cst_91 = arith.constant dense<0.000000e+00> : vector<4x16x16xf32>
    %146 = tpu.matmul %145, %142, %cst_91 {dimension_numbers = #tpu.dot_dimension_numbers<[2], [1], [1], [2], [0, 0, 0, 1, 1, 2], [0], [0]>} : vector<4x16x8xf32>, vector<4x8x16xf32>, vector<4x16x16xf32> -> vector<4x16x16xf32>
    "tpu.trace_stop"() : () -> ()
    %147 = arith.addf %146, %4 : vector<4x16x16xf32>
    %cst_92 = arith.constant dense<0xFF800000> : vector<4x16xf32>
    %148 = vector.multi_reduction <maximumf>, %147, %cst_92 [2] : vector<4x16x16xf32> to vector<4x16xf32>
    %149 = vector.shape_cast %148 : vector<4x16xf32> to vector<4x16x1xf32>
    %150 = vector.broadcast %149 : vector<4x16x1xf32> to vector<4x16x16xf32>
    %151 = arith.subf %147, %150 : vector<4x16x16xf32>
    %152 = math.exp %151 : vector<4x16x16xf32>
    %cst_93 = arith.constant dense<0.000000e+00> : vector<4x16xf32>
    %153 = vector.multi_reduction <add>, %152, %cst_93 [2] : vector<4x16x16xf32> to vector<4x16xf32>
    %154 = vector.shape_cast %153 : vector<4x16xf32> to vector<4x16x1xf32>
    %155 = tpu.reciprocal %154 : vector<4x16x1xf32> -> vector<4x16x1xf32>
    %156 = vector.broadcast %155 : vector<4x16x1xf32> to vector<4x16x16xf32>
    %157 = arith.mulf %152, %156 : vector<4x16x16xf32>
    "tpu.trace_start"() <{level = 10 : i32, message = "hek,hqk->heq"}> : () -> ()
    %cst_94 = arith.constant dense<0.000000e+00> : vector<4x8x16xf32>
    %158 = tpu.matmul %143, %157, %cst_94 {dimension_numbers = #tpu.dot_dimension_numbers<[2], [2], [1], [1], [0, 0, 0, 1, 1, 1], [0], [0]>} : vector<4x8x16xf32>, vector<4x16x16xf32>, vector<4x8x16xf32> -> vector<4x8x16xf32>
    "tpu.trace_stop"() : () -> ()
    %159 = vector.shape_cast %158 : vector<4x8x16xf32> to vector<32x16xf32>
    %c1_95 = arith.constant 1 : index
    %c0_96 = arith.constant 0 : index
    %c0_97 = arith.constant 0 : index
    %160 = vector.load %arg8[%c1_95, %c0_96, %c0_97] : memref<2x32x32xf32, #tpu.memory_space<vmem>>, vector<1x32x32xf32>
    %161 = vector.shape_cast %160 : vector<1x32x32xf32> to vector<32x32xf32>
    %cst_98 = arith.constant dense<0.000000e+00> : vector<32x16xf32>
    %162 = tpu.matmul %161, %159, %cst_98 {dimension_numbers = #tpu.dot_dimension_numbers<[1], [0], [0], [1], [0, 0, 1, 1], [], []>} : vector<32x32xf32>, vector<32x16xf32>, vector<32x16xf32> -> vector<32x16xf32>
    %c1_99 = arith.constant 1 : index
    %c0_100 = arith.constant 0 : index
    %c0_101 = arith.constant 0 : index
    %163 = vector.load %arg9[%c1_99, %c0_100, %c0_101] : memref<2x32x1xf32, #tpu.memory_space<vmem>>, vector<1x32x1xf32>
    %164 = vector.shape_cast %163 : vector<1x32x1xf32> to vector<32x1xf32>
    %165 = vector.broadcast %164 : vector<32x1xf32> to vector<32x16xf32>
    %166 = arith.addf %162, %165 : vector<32x16xf32>
    %167 = arith.addf %120, %166 : vector<32x16xf32>
    %c1_102 = arith.constant 1 : index
    %c0_103 = arith.constant 0 : index
    %c0_104 = arith.constant 0 : index
    %168 = vector.load %arg10[%c1_102, %c0_103, %c0_104] : memref<2x32x1xf32, #tpu.memory_space<vmem>>, vector<1x32x1xf32>
    %169 = vector.shape_cast %168 : vector<1x32x1xf32> to vector<32x1xf32>
    %c1_105 = arith.constant 1 : index
    %c0_106 = arith.constant 0 : index
    %c0_107 = arith.constant 0 : index
    %170 = vector.load %arg11[%c1_105, %c0_106, %c0_107] : memref<2x32x1xf32, #tpu.memory_space<vmem>>, vector<1x32x1xf32>
    %171 = vector.shape_cast %170 : vector<1x32x1xf32> to vector<32x1xf32>
    %cst_108 = arith.constant dense<0.000000e+00> : vector<16xf32>
    %172 = vector.multi_reduction <add>, %167, %cst_108 [0] : vector<32x16xf32> to vector<16xf32>
    %173 = vector.shape_cast %172 : vector<16xf32> to vector<1x16xf32>
    %cst_109 = arith.constant 3.200000e+01 : f32
    %174 = vector.broadcast %cst_109 : f32 to vector<1x16xf32>
    %175 = arith.divf %173, %174 : vector<1x16xf32>
    %176 = vector.broadcast %175 : vector<1x16xf32> to vector<32x16xf32>
    %177 = arith.subf %167, %176 : vector<32x16xf32>
    %178 = arith.mulf %177, %177 : vector<32x16xf32>
    %cst_110 = arith.constant dense<0.000000e+00> : vector<16xf32>
    %179 = vector.multi_reduction <add>, %178, %cst_110 [0] : vector<32x16xf32> to vector<16xf32>
    %180 = vector.shape_cast %179 : vector<16xf32> to vector<1x16xf32>
    %cst_111 = arith.constant 3.200000e+01 : f32
    %181 = vector.broadcast %cst_111 : f32 to vector<1x16xf32>
    %182 = arith.divf %180, %181 : vector<1x16xf32>
    %183 = vector.broadcast %175 : vector<1x16xf32> to vector<32x16xf32>
    %184 = arith.subf %167, %183 : vector<32x16xf32>
    %cst_112 = arith.constant 9.99999974E-6 : f32
    %185 = vector.broadcast %cst_112 : f32 to vector<1x16xf32>
    %186 = arith.addf %182, %185 : vector<1x16xf32>
    %187 = math.rsqrt %186 : vector<1x16xf32>
    %188 = vector.broadcast %187 : vector<1x16xf32> to vector<32x16xf32>
    %189 = arith.mulf %184, %188 : vector<32x16xf32>
    %190 = vector.broadcast %169 : vector<32x1xf32> to vector<32x16xf32>
    %191 = arith.mulf %189, %190 : vector<32x16xf32>
    %192 = vector.broadcast %171 : vector<32x1xf32> to vector<32x16xf32>
    %193 = arith.addf %191, %192 : vector<32x16xf32>
    %c1_113 = arith.constant 1 : index
    %c0_114 = arith.constant 0 : index
    %c0_115 = arith.constant 0 : index
    %194 = vector.load %arg12[%c1_113, %c0_114, %c0_115] : memref<2x64x32xf32, #tpu.memory_space<vmem>>, vector<1x64x32xf32>
    %195 = vector.shape_cast %194 : vector<1x64x32xf32> to vector<64x32xf32>
    %cst_116 = arith.constant dense<0.000000e+00> : vector<64x16xf32>
    %196 = tpu.matmul %195, %193, %cst_116 {dimension_numbers = #tpu.dot_dimension_numbers<[1], [0], [0], [1], [0, 0, 1, 1], [], []>} : vector<64x32xf32>, vector<32x16xf32>, vector<64x16xf32> -> vector<64x16xf32>
    %c1_117 = arith.constant 1 : index
    %c0_118 = arith.constant 0 : index
    %c0_119 = arith.constant 0 : index
    %197 = vector.load %arg13[%c1_117, %c0_118, %c0_119] : memref<2x64x1xf32, #tpu.memory_space<vmem>>, vector<1x64x1xf32>
    %198 = vector.shape_cast %197 : vector<1x64x1xf32> to vector<64x1xf32>
    %199 = vector.broadcast %198 : vector<64x1xf32> to vector<64x16xf32>
    %200 = arith.addf %196, %199 : vector<64x16xf32>
    %cst_120 = arith.constant 0.000000e+00 : f32
    %201 = vector.broadcast %cst_120 : f32 to vector<64x16xf32>
    %202 = arith.maximumf %200, %201 : vector<64x16xf32>
    %c1_121 = arith.constant 1 : index
    %c0_122 = arith.constant 0 : index
    %c0_123 = arith.constant 0 : index
    %203 = vector.load %arg14[%c1_121, %c0_122, %c0_123] : memref<2x32x64xf32, #tpu.memory_space<vmem>>, vector<1x32x64xf32>
    %204 = vector.shape_cast %203 : vector<1x32x64xf32> to vector<32x64xf32>
    %cst_124 = arith.constant dense<0.000000e+00> : vector<32x16xf32>
    %205 = tpu.matmul %204, %202, %cst_124 {dimension_numbers = #tpu.dot_dimension_numbers<[1], [0], [0], [1], [0, 0, 1, 1], [], []>} : vector<32x64xf32>, vector<64x16xf32>, vector<32x16xf32> -> vector<32x16xf32>
    %c1_125 = arith.constant 1 : index
    %c0_126 = arith.constant 0 : index
    %c0_127 = arith.constant 0 : index
    %206 = vector.load %arg15[%c1_125, %c0_126, %c0_127] : memref<2x32x1xf32, #tpu.memory_space<vmem>>, vector<1x32x1xf32>
    %207 = vector.shape_cast %206 : vector<1x32x1xf32> to vector<32x1xf32>
    %208 = vector.broadcast %207 : vector<32x1xf32> to vector<32x16xf32>
    %209 = arith.addf %205, %208 : vector<32x16xf32>
    %210 = arith.addf %193, %209 : vector<32x16xf32>
    %c1_128 = arith.constant 1 : index
    %c0_129 = arith.constant 0 : index
    %c0_130 = arith.constant 0 : index
    %211 = vector.load %arg16[%c1_128, %c0_129, %c0_130] : memref<2x32x1xf32, #tpu.memory_space<vmem>>, vector<1x32x1xf32>
    %212 = vector.shape_cast %211 : vector<1x32x1xf32> to vector<32x1xf32>
    %c1_131 = arith.constant 1 : index
    %c0_132 = arith.constant 0 : index
    %c0_133 = arith.constant 0 : index
    %213 = vector.load %arg17[%c1_131, %c0_132, %c0_133] : memref<2x32x1xf32, #tpu.memory_space<vmem>>, vector<1x32x1xf32>
    %214 = vector.shape_cast %213 : vector<1x32x1xf32> to vector<32x1xf32>
    %cst_134 = arith.constant dense<0.000000e+00> : vector<16xf32>
    %215 = vector.multi_reduction <add>, %210, %cst_134 [0] : vector<32x16xf32> to vector<16xf32>
    %216 = vector.shape_cast %215 : vector<16xf32> to vector<1x16xf32>
    %cst_135 = arith.constant 3.200000e+01 : f32
    %217 = vector.broadcast %cst_135 : f32 to vector<1x16xf32>
    %218 = arith.divf %216, %217 : vector<1x16xf32>
    %219 = vector.broadcast %218 : vector<1x16xf32> to vector<32x16xf32>
    %220 = arith.subf %210, %219 : vector<32x16xf32>
    %221 = arith.mulf %220, %220 : vector<32x16xf32>
    %cst_136 = arith.constant dense<0.000000e+00> : vector<16xf32>
    %222 = vector.multi_reduction <add>, %221, %cst_136 [0] : vector<32x16xf32> to vector<16xf32>
    %223 = vector.shape_cast %222 : vector<16xf32> to vector<1x16xf32>
    %cst_137 = arith.constant 3.200000e+01 : f32
    %224 = vector.broadcast %cst_137 : f32 to vector<1x16xf32>
    %225 = arith.divf %223, %224 : vector<1x16xf32>
    %226 = vector.broadcast %218 : vector<1x16xf32> to vector<32x16xf32>
    %227 = arith.subf %210, %226 : vector<32x16xf32>
    %cst_138 = arith.constant 9.99999974E-6 : f32
    %228 = vector.broadcast %cst_138 : f32 to vector<1x16xf32>
    %229 = arith.addf %225, %228 : vector<1x16xf32>
    %230 = math.rsqrt %229 : vector<1x16xf32>
    %231 = vector.broadcast %230 : vector<1x16xf32> to vector<32x16xf32>
    %232 = arith.mulf %227, %231 : vector<32x16xf32>
    %233 = vector.broadcast %212 : vector<32x1xf32> to vector<32x16xf32>
    %234 = arith.mulf %232, %233 : vector<32x16xf32>
    %235 = vector.broadcast %214 : vector<32x1xf32> to vector<32x16xf32>
    %236 = arith.addf %234, %235 : vector<32x16xf32>
    %c0_139 = arith.constant 0 : index
    %c0_140 = arith.constant 0 : index
    %237 = vector.load %arg18[%c0_139, %c0_140] : memref<1x32xf32, #tpu.memory_space<vmem>>, vector<1x32xf32>
    %cst_141 = arith.constant dense<0.000000e+00> : vector<1x16xf32>
    %238 = tpu.matmul %237, %236, %cst_141 {dimension_numbers = #tpu.dot_dimension_numbers<[1], [0], [0], [1], [0, 0, 1, 1], [], []>} : vector<1x32xf32>, vector<32x16xf32>, vector<1x16xf32> -> vector<1x16xf32>
    %c0_142 = arith.constant 0 : index
    %c0_143 = arith.constant 0 : index
    %239 = vector.load %arg19[%c0_142, %c0_143] : memref<1x1xf32, #tpu.memory_space<vmem>>, vector<1x1xf32>
    %240 = vector.broadcast %239 : vector<1x1xf32> to vector<1x16xf32>
    %241 = arith.addf %238, %240 : vector<1x16xf32>
    %c0_144 = arith.constant 0 : index
    %c0_145 = arith.constant 0 : index
    %242 = vector.load %arg20[%c0_144, %c0_145] : memref<1x16xf32, #tpu.memory_space<vmem>>, vector<1x16xf32>
    tpu.vector_store %arg20[%c0_144, %c0_145], %241 {strides = array<i32>} : memref<1x16xf32, #tpu.memory_space<vmem>>, vector<1x16xf32>,
    return
  }
}

</mosaic_0001>

<llo_original>
// kernel: model_transformer_pallas.1
$region0: #{model_transformer_pallas.1}
  #allocation0 [shape = 'u32[]', space=smem, size = 0x4, offset = 0x4, fixed_abs, tag = 'smem constant byte address 0x4 - core index']
  #allocation1 [shape = 'u32[144,128]{1,0:T(1,128)}', space=vmem, size = 0x12000, scoped, tag = 'internal scratch']
  #allocation2 [shape = 'f32[1,1]{1,0:T(1,128)S(1)}', space=vmem, size = 0x200, scoped, tag = 'scoped memory for model_transformer_pallas.1']
  %s0 = inlined_call_operand.vmem [shape: f32[32,16], index: 0, kind: input, shape index: {}]
  %s1 = inlined_call_operand.vmem [shape: f32[16,16], index: 1, kind: input, shape index: {}]
  %s2 = inlined_call_operand.vmem [shape: f32[2,32,32], index: 2, kind: input, shape index: {}]
  %s3 = inlined_call_operand.vmem [shape: f32[2,32,32], index: 3, kind: input, shape index: {}]
  %s4 = inlined_call_operand.vmem [shape: f32[2,32,32], index: 4, kind: input, shape index: {}]
  %s5 = inlined_call_operand.vmem [shape: f32[2,32,1], index: 5, kind: input, shape index: {}]
  %s6 = inlined_call_operand.vmem [shape: f32[2,32,1], index: 6, kind: input, shape index: {}]
  %s7 = inlined_call_operand.vmem [shape: f32[2,32,1], index: 7, kind: input, shape index: {}]
  %s8 = inlined_call_operand.vmem [shape: f32[2,32,32], index: 8, kind: input, shape index: {}]
  %s9 = inlined_call_operand.vmem [shape: f32[2,32,1], index: 9, kind: input, shape index: {}]
  %s10 = inlined_call_operand.vmem [shape: f32[2,32,1], index: 10, kind: input, shape index: {}]
  %s11 = inlined_call_operand.vmem [shape: f32[2,32,1], index: 11, kind: input, shape index: {}]
  %s12 = inlined_call_operand.vmem [shape: f32[2,64,32], index: 12, kind: input, shape index: {}]
  %s13 = inlined_call_operand.vmem [shape: f32[2,64,1], index: 13, kind: input, shape index: {}]
  %s14 = inlined_call_operand.vmem [shape: f32[2,32,64], index: 14, kind: input, shape index: {}]
  %s15 = inlined_call_operand.vmem [shape: f32[2,32,1], index: 15, kind: input, shape index: {}]
  %s16 = inlined_call_operand.vmem [shape: f32[2,32,1], index: 16, kind: input, shape index: {}]
  %s17 = inlined_call_operand.vmem [shape: f32[2,32,1], index: 17, kind: input, shape index: {}]
  %s18 = inlined_call_operand.vmem [shape: f32[1,32], index: 18, kind: input, shape index: {}]
  %s19 = inlined_call_operand.<no memory space> [shape: f32[1,1], index: 19, kind: input, shape index: {}]
  %s20 = inlined_call_operand.vmem [shape: f32[1,16], index: 20, kind: output, shape index: {}]
  %s21 = sld [smem:[#allocation0]]
  $region90: #{model_transformer_pallas.1} parent=0
    _
  %s23 = ssub.s32 1, %s21
  %s24 = scalar_select 0, %s23, %s21
  %v25 = vstv %s19
  %26 = vst [vmem:[#allocation2] sm:$0x1] %v25
  // Predicated region
  $region2: #{model_transformer_pallas.1} parent=0 // pred_check
    _
  $region3: #{model_transformer_pallas.1} parent=0 // pred_check_branch
    %28 = sbr.rel (0) target = $region5
  $region4: #{model_transformer_pallas.1} parent=0 // pred_region
    _
  $region5: #{model_transformer_pallas.1} parent=0 // pred_fallthru
    _
  // Predicated region
  $region6: #{model_transformer_pallas.1} parent=0 // pred_check
    _
  $region7: #{model_transformer_pallas.1} parent=0 // pred_check_branch
    %30 = sbr.rel (0) target = $region9
  $region8: #{model_transformer_pallas.1} parent=0 // pred_region
    _
  $region9: #{model_transformer_pallas.1} parent=0 // pred_fallthru
    _
  // Predicated region
  $region10: #{model_transformer_pallas.1} parent=0 // pred_check
    _
  $region11: #{model_transformer_pallas.1} parent=0 // pred_check_branch
    %32 = sbr.rel (0) target = $region13
  $region12: #{model_transformer_pallas.1} parent=0 // pred_region
    _
  $region13: #{model_transformer_pallas.1} parent=0 // pred_fallthru
    _
  // Predicated region
  $region14: #{model_transformer_pallas.1} parent=0 // pred_check
    _
  $region15: #{model_transformer_pallas.1} parent=0 // pred_check_branch
    %34 = sbr.rel (0) target = $region17
  $region16: #{model_transformer_pallas.1} parent=0 // pred_region
    _
  $region17: #{model_transformer_pallas.1} parent=0 // pred_fallthru
    _
  // Predicated region
  $region18: #{model_transformer_pallas.1} parent=0 // pred_check
    _
  $region19: #{model_transformer_pallas.1} parent=0 // pred_check_branch
    %36 = sbr.rel (0) target = $region21
  $region20: #{model_transformer_pallas.1} parent=0 // pred_region
    _
  $region21: #{model_transformer_pallas.1} parent=0 // pred_fallthru
    _
  // Predicated region
  $region22: #{model_transformer_pallas.1} parent=0 // pred_check
    _
  $region23: #{model_transformer_pallas.1} parent=0 // pred_check_branch
    %38 = sbr.rel (0) target = $region25
  $region24: #{model_transformer_pallas.1} parent=0 // pred_region
    _
  $region25: #{model_transformer_pallas.1} parent=0 // pred_fallthru
    _
  // Predicated region
  $region26: #{model_transformer_pallas.1} parent=0 // pred_check
    _
  $region27: #{model_transformer_pallas.1} parent=0 // pred_check_branch
    %40 = sbr.rel (0) target = $region29
  $region28: #{model_transformer_pallas.1} parent=0 // pred_region
    _
  $region29: #{model_transformer_pallas.1} parent=0 // pred_fallthru
    _
  // Predicated region
  $region30: #{model_transformer_pallas.1} parent=0 // pred_check
    _
  $region31: #{model_transformer_pallas.1} parent=0 // pred_check_branch
    %42 = sbr.rel (0) target = $region33
  $region32: #{model_transformer_pallas.1} parent=0 // pred_region
    _
  $region33: #{model_transformer_pallas.1} parent=0 // pred_fallthru
    _
  // Predicated region
  $region34: #{model_transformer_pallas.1} parent=0 // pred_check
    _
  $region35: #{model_transformer_pallas.1} parent=0 // pred_check_branch
    %44 = sbr.rel (0) target = $region37
  $region36: #{model_transformer_pallas.1} parent=0 // pred_region
    _
  $region37: #{model_transformer_pallas.1} parent=0 // pred_fallthru
    _
  // Predicated region
  $region38: #{model_transformer_pallas.1} parent=0 // pred_check
    _
  $region39: #{model_transformer_pallas.1} parent=0 // pred_check_branch
    %46 = sbr.rel (0) target = $region41
  $region40: #{model_transformer_pallas.1} parent=0 // pred_region
    _
  $region41: #{model_transformer_pallas.1} parent=0 // pred_fallthru
    _
  // Predicated region
  $region42: #{model_transformer_pallas.1} parent=0 // pred_check
    _
  $region43: #{model_transformer_pallas.1} parent=0 // pred_check_branch
    %48 = sbr.rel (0) target = $region45
  $region44: #{model_transformer_pallas.1} parent=0 // pred_region
    _
  $region45: #{model_transformer_pallas.1} parent=0 // pred_fallthru
    _
  // Predicated region
  $region46: #{model_transformer_pallas.1} parent=0 // pred_check
    _
  $region47: #{model_transformer_pallas.1} parent=0 // pred_check_branch
    %50 = sbr.rel (0) target = $region49
  $region48: #{model_transformer_pallas.1} parent=0 // pred_region
    _
  $region49: #{model_transformer_pallas.1} parent=0 // pred_fallthru
    _
  // Predicated region
  $region50: #{model_transformer_pallas.1} parent=0 // pred_check
    _
  $region51: #{model_transformer_pallas.1} parent=0 // pred_check_branch
    %52 = sbr.rel (0) target = $region53
  $region52: #{model_transformer_pallas.1} parent=0 // pred_region
    _
  $region53: #{model_transformer_pallas.1} parent=0 // pred_fallthru
    _
  // Predicated region
  $region54: #{model_transformer_pallas.1} parent=0 // pred_check
    _
  $region55: #{model_transformer_pallas.1} parent=0 // pred_check_branch
    %54 = sbr.rel (0) target = $region57
  $region56: #{model_transformer_pallas.1} parent=0 // pred_region
    _
  $region57: #{model_transformer_pallas.1} parent=0 // pred_fallthru
    _
  // Predicated region
  $region58: #{model_transformer_pallas.1} parent=0 // pred_check
    _
  $region59: #{model_transformer_pallas.1} parent=0 // pred_check_branch
    %56 = sbr.rel (0) target = $region61
  $region60: #{model_transformer_pallas.1} parent=0 // pred_region
    _
  $region61: #{model_transformer_pallas.1} parent=0 // pred_fallthru
    _
  // Predicated region
  $region62: #{model_transformer_pallas.1} parent=0 // pred_check
    _
  $region63: #{model_transformer_pallas.1} parent=0 // pred_check_branch
    %58 = sbr.rel (0) target = $region65
  $region64: #{model_transformer_pallas.1} parent=0 // pred_region
    _
  $region65: #{model_transformer_pallas.1} parent=0 // pred_fallthru
    _
  // Predicated region
  $region66: #{model_transformer_pallas.1} parent=0 // pred_check
    _
  $region67: #{model_transformer_pallas.1} parent=0 // pred_check_branch
    %60 = sbr.rel (0) target = $region69
  $region68: #{model_transformer_pallas.1} parent=0 // pred_region
    _
  $region69: #{model_transformer_pallas.1} parent=0 // pred_fallthru
    _
  // Predicated region
  $region70: #{model_transformer_pallas.1} parent=0 // pred_check
    _
  $region71: #{model_transformer_pallas.1} parent=0 // pred_check_branch
    %62 = sbr.rel (0) target = $region73
  $region72: #{model_transformer_pallas.1} parent=0 // pred_region
    _
  $region73: #{model_transformer_pallas.1} parent=0 // pred_fallthru
    _
  // Predicated region
  $region74: #{model_transformer_pallas.1} parent=0 // pred_check
    _
  $region75: #{model_transformer_pallas.1} parent=0 // pred_check_branch
    %64 = sbr.rel (0) target = $region77
  $region76: #{model_transformer_pallas.1} parent=0 // pred_region
    _
  $region77: #{model_transformer_pallas.1} parent=0 // pred_fallthru
    _
  // Predicated region
  $region78: #{model_transformer_pallas.1} parent=0 // pred_check
    _
  $region79: #{model_transformer_pallas.1} parent=0 // pred_check_branch
    %66 = sbr.rel (0) target = $region81
  $region80: #{model_transformer_pallas.1} parent=0 // pred_region
    _
  $region81: #{model_transformer_pallas.1} parent=0 // pred_fallthru
    _
  %v67 = vld [vmem:[%s0] sm:$0xff]
  %v68 = vld [vmem:[%s0 + $0x8] sm:$0xff]
  %v69 = vld [vmem:[%s0 + $0x10] sm:$0xff]
  %v70 = vld [vmem:[%s0 + $0x18] sm:$0xff]
  %v71 = vld [vmem:[%s1] sm:$0xff]
  %v72 = vld [vmem:[%s1 + $0x8] sm:$0xff]
  %v73 = vld [vmem:[%s2] sm:$0xff]
  %v74 = vld [vmem:[%s2 + $0x8] sm:$0xff]
  %v75 = vld [vmem:[%s2 + $0x10] sm:$0xff]
  %v76 = vld [vmem:[%s2 + $0x18] sm:$0xff]
  %v77 = vld [vmem:[%s5] sm:$0xff]
  %v78 = vld [vmem:[%s5 + $0x8] sm:$0xff]
  %v79 = vld [vmem:[%s5 + $0x10] sm:$0xff]
  %v80 = vld [vmem:[%s5 + $0x18] sm:$0xff]
  %82 = vset.pattern.permute.xlu0 0
  %83 = vperm.xlu0 %82, %v77
  %v84 = vpop.permute.xlu0 %83
  %87 = vset.pattern.permute.xlu0 0
  %88 = vperm.xlu0 %87, %v78
  %v89 = vpop.permute.xlu0 %88
  %92 = vset.pattern.permute.xlu0 0
  %93 = vperm.xlu0 %92, %v79
  %v94 = vpop.permute.xlu0 %93
  %97 = vset.pattern.permute.xlu0 0
  %98 = vperm.xlu0 %97, %v80
  %v99 = vpop.permute.xlu0 %98
  %vm101 = vcmask 261120
  %v103 = vsel %vm101, %v73, 0
  %v106 = vsel %vm101, %v74, 0
  %v109 = vsel %vm101, %v75, 0
  %v112 = vsel %vm101, %v76, 0
  %114 = vmatprep.subr.mxu0 0.0
  %115 = vmatpush1.msra.mxu0 %v67
  %116 = vmatprep.subr.mxu0 0.0
  %117 = vmatpush1.msra.mxu0 %v68
  %118 = vmatprep.subr.mxu0 0.0
  %119 = vmatpush1.msra.mxu0 %v69
  %120 = vmatprep.subr.mxu0 0.0
  %121 = vmatpush1.msra.mxu0 %v70
  %122 = vmatprep.subr.mxu0 0.0
  %123 = vmatpush1.msra.mxu0 0.0
  %124 = vmatprep.subr.mxu0 0.0
  %125 = vmatpush1.msra.mxu0 0.0
  %126 = vmatprep.subr.mxu0 0.0
  %127 = vmatpush1.msra.mxu0 0.0
  %128 = vmatprep.subr.mxu0 0.0
  %129 = vmatpush1.msra.mxu0 0.0
  %130 = vmatprep.subr.mxu0 0.0
  %131 = vmatpush1.msra.mxu0 0.0
  %132 = vmatprep.subr.mxu0 0.0
  %133 = vmatpush1.msra.mxu0 0.0
  %134 = vmatprep.subr.mxu0 0.0
  %135 = vmatpush1.msra.mxu0 0.0
  %136 = vmatprep.subr.mxu0 0.0
  %137 = vmatpush1.msra.mxu0 0.0
  %138 = vmatprep.subr.mxu0 0.0
  %139 = vmatpush1.msra.mxu0 0.0
  %140 = vmatprep.subr.mxu0 0.0
  %141 = vmatpush1.msra.mxu0 0.0
  %142 = vmatprep.subr.mxu0 0.0
  %143 = vmatpush1.msra.mxu0 0.0
  %144 = vmatprep.subr.mxu0 0.0
  %145 = vmatpush1.msra.mxu0 0.0
  %146 = vmatprep.subr.mxu0 0.0
  %147 = vmatpush1.msra.mxu0 0.0
  %148 = vmatprep.subr.mxu0 0.0
  %149 = vmatpush1.msra.mxu0 0.0
  %150 = vmatprep.subr.mxu0 0.0
  %151 = vmatpush1.msra.mxu0 0.0
  %152 = vmatprep.subr.mxu0 0.0
  %153 = vmatpush1.msra.mxu0 0.0
  %154 = vmatprep.subr.mxu0 0.0
  %155 = vmatpush1.msra.mxu0 0.0
  %156 = vmatprep.subr.mxu0 0.0
  %157 = vmatpush1.msra.mxu0 0.0
  %158 = vmatprep.subr.mxu0 0.0
  %159 = vmatpush1.msra.mxu0 0.0
  %160 = vmatprep.subr.mxu0 0.0
  %161 = vmatpush1.msra.mxu0 0.0
  %162 = vmatprep.subr.mxu0 0.0
  %163 = vmatpush1.msra.mxu0 0.0
  %164 = vmatprep.subr.mxu0 0.0
  %165 = vmatpush1.msra.mxu0 0.0
  %166 = vmatprep.subr.mxu0 0.0
  %167 = vmatpush1.msra.mxu0 0.0
  %168 = vmatprep.subr.mxu0 0.0
  %169 = vmatpush1.msra.mxu0 0.0
  %170 = vmatprep.subr.mxu0 0.0
  %171 = vmatpush1.msra.mxu0 0.0
  %172 = vmatprep.subr.mxu0 0.0
  %173 = vmatpush1.msra.mxu0 0.0
  %174 = vmatprep.subr.mxu0 0.0
  %175 = vmatpush1.msra.mxu0 0.0
  %176 = vmatprep.subr.mxu0 0.0
  %177 = vmatpush1.msra.mxu0 0.0
  %178 = vmatprep.mubr.f32.mxu0 0.0
  %179 = vmatmul.mubr.f32.gmra.mrb[0].mxu0 %v103
  %v180 = vpop.f32.mrb[0].mxu0
  %v181 = vadd.f32 %v84, %v180
  %v182 = vpop.f32.mrb[0].mxu0
  %183 = vmatprep.mubr.f32.mxu0 0.0
  %184 = vmatmul.mubr.f32.gmra.mrb[0].mxu0 %v106
  %v185 = vpop.f32.mrb[0].mxu0
  %v186 = vadd.f32 %v89, %v185
  %v187 = vpop.f32.mrb[0].mxu0
  %188 = vmatprep.mubr.f32.mxu0 0.0
  %189 = vmatmul.mubr.f32.gmra.mrb[0].mxu0 %v109
  %v190 = vpop.f32.mrb[0].mxu0
  %v191 = vadd.f32 %v94, %v190
  %v192 = vpop.f32.mrb[0].mxu0
  %193 = vmatprep.mubr.f32.mxu0 0.0
  %194 = vmatmul.mubr.f32.gmra.mrb[0].mxu0 %v112
  %v195 = vpop.f32.mrb[0].mxu0
  %v196 = vadd.f32 %v99, %v195
  %v197 = vpop.f32.mrb[0].mxu0
  %198 = vdwg.mxu0
  %v199 = vld [vmem:[%s3] sm:$0xff]
  %v200 = vld [vmem:[%s3 + $0x8] sm:$0xff]
  %v201 = vld [vmem:[%s3 + $0x10] sm:$0xff]
  %v202 = vld [vmem:[%s3 + $0x18] sm:$0xff]
  %v203 = vld [vmem:[%s6] sm:$0xff]
  %v204 = vld [vmem:[%s6 + $0x8] sm:$0xff]
  %v205 = vld [vmem:[%s6 + $0x10] sm:$0xff]
  %v206 = vld [vmem:[%s6 + $0x18] sm:$0xff]
  %208 = vset.pattern.permute.xlu0 0
  %209 = vperm.xlu0 %208, %v203
  %v210 = vpop.permute.xlu0 %209
  %213 = vset.pattern.permute.xlu0 0
  %214 = vperm.xlu0 %213, %v204
  %v215 = vpop.permute.xlu0 %214
  %218 = vset.pattern.permute.xlu0 0
  %219 = vperm.xlu0 %218, %v205
  %v220 = vpop.permute.xlu0 %219
  %223 = vset.pattern.permute.xlu0 0
  %224 = vperm.xlu0 %223, %v206
  %v225 = vpop.permute.xlu0 %224
  %v228 = vsel %vm101, %v199, 0
  %v231 = vsel %vm101, %v200, 0
  %v234 = vsel %vm101, %v201, 0
  %v237 = vsel %vm101, %v202, 0
  %239 = vmatprep.subr.mxu0 0.0
  %240 = vmatpush1.msra.mxu0 %v67
  %241 = vmatprep.subr.mxu0 0.0
  %242 = vmatpush1.msra.mxu0 %v68
  %243 = vmatprep.subr.mxu0 0.0
  %244 = vmatpush1.msra.mxu0 %v69
  %245 = vmatprep.subr.mxu0 0.0
  %246 = vmatpush1.msra.mxu0 %v70
  %247 = vmatprep.subr.mxu0 0.0
  %248 = vmatpush1.msra.mxu0 0.0
  %249 = vmatprep.subr.mxu0 0.0
  %250 = vmatpush1.msra.mxu0 0.0
  %251 = vmatprep.subr.mxu0 0.0
  %252 = vmatpush1.msra.mxu0 0.0
  %253 = vmatprep.subr.mxu0 0.0
  %254 = vmatpush1.msra.mxu0 0.0
  %255 = vmatprep.subr.mxu0 0.0
  %256 = vmatpush1.msra.mxu0 0.0
  %257 = vmatprep.subr.mxu0 0.0
  %258 = vmatpush1.msra.mxu0 0.0
  %259 = vmatprep.subr.mxu0 0.0
  %260 = vmatpush1.msra.mxu0 0.0
  %261 = vmatprep.subr.mxu0 0.0
  %262 = vmatpush1.msra.mxu0 0.0
  %263 = vmatprep.subr.mxu0 0.0
  %264 = vmatpush1.msra.mxu0 0.0
  %265 = vmatprep.subr.mxu0 0.0
  %266 = vmatpush1.msra.mxu0 0.0
  %267 = vmatprep.subr.mxu0 0.0
  %268 = vmatpush1.msra.mxu0 0.0
  %269 = vmatprep.subr.mxu0 0.0
  %270 = vmatpush1.msra.mxu0 0.0
  %271 = vmatprep.subr.mxu0 0.0
  %272 = vmatpush1.msra.mxu0 0.0
  %273 = vmatprep.subr.mxu0 0.0
  %274 = vmatpush1.msra.mxu0 0.0
  %275 = vmatprep.subr.mxu0 0.0
  %276 = vmatpush1.msra.mxu0 0.0
  %277 = vmatprep.subr.mxu0 0.0
  %278 = vmatpush1.msra.mxu0 0.0
  %279 = vmatprep.subr.mxu0 0.0
  %280 = vmatpush1.msra.mxu0 0.0
  %281 = vmatprep.subr.mxu0 0.0
  %282 = vmatpush1.msra.mxu0 0.0
  %283 = vmatprep.subr.mxu0 0.0
  %284 = vmatpush1.msra.mxu0 0.0
  %285 = vmatprep.subr.mxu0 0.0
  %286 = vmatpush1.msra.mxu0 0.0
  %287 = vmatprep.subr.mxu0 0.0
  %288 = vmatpush1.msra.mxu0 0.0
  %289 = vmatprep.subr.mxu0 0.0
  %290 = vmatpush1.msra.mxu0 0.0
  %291 = vmatprep.subr.mxu0 0.0
  %292 = vmatpush1.msra.mxu0 0.0
  %293 = vmatprep.subr.mxu0 0.0
  %294 = vmatpush1.msra.mxu0 0.0
  %295 = vmatprep.subr.mxu0 0.0
  %296 = vmatpush1.msra.mxu0 0.0
  %297 = vmatprep.subr.mxu0 0.0
  %298 = vmatpush1.msra.mxu0 0.0
  %299 = vmatprep.subr.mxu0 0.0
  %300 = vmatpush1.msra.mxu0 0.0
  %301 = vmatprep.subr.mxu0 0.0
  %302 = vmatpush1.msra.mxu0 0.0
  %303 = vmatprep.mubr.f32.mxu0 0.0
  %304 = vmatmul.mubr.f32.gmra.mrb[0].mxu0 %v228
  %v305 = vpop.f32.mrb[0].mxu0
  %v306 = vadd.f32 %v210, %v305
  %v307 = vpop.f32.mrb[0].mxu0
  %308 = vmatprep.mubr.f32.mxu0 0.0
  %309 = vmatmul.mubr.f32.gmra.mrb[0].mxu0 %v231
  %v310 = vpop.f32.mrb[0].mxu0
  %v311 = vadd.f32 %v215, %v310
  %v312 = vpop.f32.mrb[0].mxu0
  %313 = vmatprep.mubr.f32.mxu0 0.0
  %314 = vmatmul.mubr.f32.gmra.mrb[0].mxu0 %v234
  %v315 = vpop.f32.mrb[0].mxu0
  %v316 = vadd.f32 %v220, %v315
  %v317 = vpop.f32.mrb[0].mxu0
  %318 = vmatprep.mubr.f32.mxu0 0.0
  %319 = vmatmul.mubr.f32.gmra.mrb[0].mxu0 %v237
  %v320 = vpop.f32.mrb[0].mxu0
  %v321 = vadd.f32 %v225, %v320
  %v322 = vpop.f32.mrb[0].mxu0
  %323 = vdwg.mxu0
  %v324 = vld [vmem:[%s4] sm:$0xff]
  %v325 = vld [vmem:[%s4 + $0x8] sm:$0xff]
  %v326 = vld [vmem:[%s4 + $0x10] sm:$0xff]
  %v327 = vld [vmem:[%s4 + $0x18] sm:$0xff]
  %v328 = vld [vmem:[%s7] sm:$0xff]
  %v329 = vld [vmem:[%s7 + $0x8] sm:$0xff]
  %v330 = vld [vmem:[%s7 + $0x10] sm:$0xff]
  %v331 = vld [vmem:[%s7 + $0x18] sm:$0xff]
  %333 = vset.pattern.permute.xlu0 0
  %334 = vperm.xlu0 %333, %v328
  %v335 = vpop.permute.xlu0 %334
  %338 = vset.pattern.permute.xlu0 0
  %339 = vperm.xlu0 %338, %v329
  %v340 = vpop.permute.xlu0 %339
  %343 = vset.pattern.permute.xlu0 0
  %344 = vperm.xlu0 %343, %v330
  %v345 = vpop.permute.xlu0 %344
  %348 = vset.pattern.permute.xlu0 0
  %349 = vperm.xlu0 %348, %v331
  %v350 = vpop.permute.xlu0 %349
  %v353 = vsel %vm101, %v324, 0
  %v356 = vsel %vm101, %v325, 0
  %v359 = vsel %vm101, %v326, 0
  %v362 = vsel %vm101, %v327, 0
  %364 = vmatprep.subr.mxu0 0.0
  %365 = vmatpush1.msra.mxu0 %v67
  %366 = vmatprep.subr.mxu0 0.0
  %367 = vmatpush1.msra.mxu0 %v68
  %368 = vmatprep.subr.mxu0 0.0
  %369 = vmatpush1.msra.mxu0 %v69
  %370 = vmatprep.subr.mxu0 0.0
  %371 = vmatpush1.msra.mxu0 %v70
  %372 = vmatprep.subr.mxu0 0.0
  %373 = vmatpush1.msra.mxu0 0.0
  %374 = vmatprep.subr.mxu0 0.0
  %375 = vmatpush1.msra.mxu0 0.0
  %376 = vmatprep.subr.mxu0 0.0
  %377 = vmatpush1.msra.mxu0 0.0
  %378 = vmatprep.subr.mxu0 0.0
  %379 = vmatpush1.msra.mxu0 0.0
  %380 = vmatprep.subr.mxu0 0.0
  %381 = vmatpush1.msra.mxu0 0.0
  %382 = vmatprep.subr.mxu0 0.0
  %383 = vmatpush1.msra.mxu0 0.0
  %384 = vmatprep.subr.mxu0 0.0
  %385 = vmatpush1.msra.mxu0 0.0
  %386 = vmatprep.subr.mxu0 0.0
  %387 = vmatpush1.msra.mxu0 0.0
  %388 = vmatprep.subr.mxu0 0.0
  %389 = vmatpush1.msra.mxu0 0.0
  %390 = vmatprep.subr.mxu0 0.0
  %391 = vmatpush1.msra.mxu0 0.0
  %392 = vmatprep.subr.mxu0 0.0
  %393 = vmatpush1.msra.mxu0 0.0
  %394 = vmatprep.subr.mxu0 0.0
  %395 = vmatpush1.msra.mxu0 0.0
  %396 = vmatprep.subr.mxu0 0.0
  %397 = vmatpush1.msra.mxu0 0.0
  %398 = vmatprep.subr.mxu0 0.0
  %399 = vmatpush1.msra.mxu0 0.0
  %400 = vmatprep.subr.mxu0 0.0
  %401 = vmatpush1.msra.mxu0 0.0
  %402 = vmatprep.subr.mxu0 0.0
  %403 = vmatpush1.msra.mxu0 0.0
  %404 = vmatprep.subr.mxu0 0.0
  %405 = vmatpush1.msra.mxu0 0.0
  %406 = vmatprep.subr.mxu0 0.0
  %407 = vmatpush1.msra.mxu0 0.0
  %408 = vmatprep.subr.mxu0 0.0
  %409 = vmatpush1.msra.mxu0 0.0
  %410 = vmatprep.subr.mxu0 0.0
  %411 = vmatpush1.msra.mxu0 0.0
  %412 = vmatprep.subr.mxu0 0.0
  %413 = vmatpush1.msra.mxu0 0.0
  %414 = vmatprep.subr.mxu0 0.0
  %415 = vmatpush1.msra.mxu0 0.0
  %416 = vmatprep.subr.mxu0 0.0
  %417 = vmatpush1.msra.mxu0 0.0
  %418 = vmatprep.subr.mxu0 0.0
  %419 = vmatpush1.msra.mxu0 0.0
  %420 = vmatprep.subr.mxu0 0.0
  %421 = vmatpush1.msra.mxu0 0.0
  %422 = vmatprep.subr.mxu0 0.0
  %423 = vmatpush1.msra.mxu0 0.0
  %424 = vmatprep.subr.mxu0 0.0
  %425 = vmatpush1.msra.mxu0 0.0
  %426 = vmatprep.subr.mxu0 0.0
  %427 = vmatpush1.msra.mxu0 0.0
  %428 = vmatprep.mubr.f32.mxu0 0.0
  %429 = vmatmul.mubr.f32.gmra.mrb[0].mxu0 %v353
  %v430 = vpop.f32.mrb[0].mxu0
  %v431 = vadd.f32 %v335, %v430
  %v432 = vpop.f32.mrb[0].mxu0
  %433 = vmatprep.mubr.f32.mxu0 0.0
  %434 = vmatmul.mubr.f32.gmra.mrb[0].mxu0 %v356
  %v435 = vpop.f32.mrb[0].mxu0
  %v436 = vadd.f32 %v340, %v435
  %v437 = vpop.f32.mrb[0].mxu0
  %438 = vmatprep.mubr.f32.mxu0 0.0
  %439 = vmatmul.mubr.f32.gmra.mrb[0].mxu0 %v359
  %v440 = vpop.f32.mrb[0].mxu0
  %v441 = vadd.f32 %v345, %v440
  %v442 = vpop.f32.mrb[0].mxu0
  %443 = vmatprep.mubr.f32.mxu0 0.0
  %444 = vmatmul.mubr.f32.gmra.mrb[0].mxu0 %v362
  %v445 = vpop.f32.mrb[0].mxu0
  %v446 = vadd.f32 %v350, %v445
  %v447 = vpop.f32.mrb[0].mxu0
  %448 = vdwg.mxu0
  %449 = vxpose.xlu0.b32.start [1/16] %v181, 128
  %450 = vxpose.xlu0.b32.cont [2/16] 0.0, 128
  %451 = vxpose.xlu0.b32.cont [3/16] 0.0, 128
  %452 = vxpose.xlu0.b32.cont [4/16] 0.0, 128
  %453 = vxpose.xlu0.b32.cont [5/16] 0.0, 128
  %454 = vxpose.xlu0.b32.cont [6/16] 0.0, 128
  %455 = vxpose.xlu0.b32.cont [7/16] 0.0, 128
  %456 = vxpose.xlu0.b32.cont [8/16] 0.0, 128
  %457 = vxpose.xlu0.b32.cont [9/16] 0.0, 128
  %458 = vxpose.xlu0.b32.cont [10/16] 0.0, 128
  %459 = vxpose.xlu0.b32.cont [11/16] 0.0, 128
  %460 = vxpose.xlu0.b32.cont [12/16] 0.0, 128
  %461 = vxpose.xlu0.b32.cont [13/16] 0.0, 128
  %462 = vxpose.xlu0.b32.cont [14/16] 0.0, 128
  %463 = vxpose.xlu0.b32.cont [15/16] 0.0, 128
  %464 = vxpose.xlu0.b32.end [16/16] 0.0, 128
  %v465 = vpop.trf.xlu0
  %v466 = vpop.trf.xlu0
  %v467 = vpop.trf.xlu0
  %v468 = vpop.trf.xlu0
  %v469 = vpop.trf.xlu0
  %v470 = vpop.trf.xlu0
  %v471 = vpop.trf.xlu0
  %v472 = vpop.trf.xlu0
  %v473 = vpop.trf.xlu0
  %v474 = vpop.trf.xlu0
  %v475 = vpop.trf.xlu0
  %v476 = vpop.trf.xlu0
  %v477 = vpop.trf.xlu0
  %v478 = vpop.trf.xlu0
  %v479 = vpop.trf.xlu0
  %v480 = vpop.trf.xlu0
  %481 = vxpose.xlu0.b32.start [1/16] %v186, 128
  %482 = vxpose.xlu0.b32.cont [2/16] 0.0, 128
  %483 = vxpose.xlu0.b32.cont [3/16] 0.0, 128
  %484 = vxpose.xlu0.b32.cont [4/16] 0.0, 128
  %485 = vxpose.xlu0.b32.cont [5/16] 0.0, 128
  %486 = vxpose.xlu0.b32.cont [6/16] 0.0, 128
  %487 = vxpose.xlu0.b32.cont [7/16] 0.0, 128
  %488 = vxpose.xlu0.b32.cont [8/16] 0.0, 128
  %489 = vxpose.xlu0.b32.cont [9/16] 0.0, 128
  %490 = vxpose.xlu0.b32.cont [10/16] 0.0, 128
  %491 = vxpose.xlu0.b32.cont [11/16] 0.0, 128
  %492 = vxpose.xlu0.b32.cont [12/16] 0.0, 128
  %493 = vxpose.xlu0.b32.cont [13/16] 0.0, 128
  %494 = vxpose.xlu0.b32.cont [14/16] 0.0, 128
  %495 = vxpose.xlu0.b32.cont [15/16] 0.0, 128
  %496 = vxpose.xlu0.b32.end [16/16] 0.0, 128
  %v497 = vpop.trf.xlu0
  %v498 = vpop.trf.xlu0
  %v499 = vpop.trf.xlu0
  %v500 = vpop.trf.xlu0
  %v501 = vpop.trf.xlu0
  %v502 = vpop.trf.xlu0
  %v503 = vpop.trf.xlu0
  %v504 = vpop.trf.xlu0
  %v505 = vpop.trf.xlu0
  %v506 = vpop.trf.xlu0
  %v507 = vpop.trf.xlu0
  %v508 = vpop.trf.xlu0
  %v509 = vpop.trf.xlu0
  %v510 = vpop.trf.xlu0
  %v511 = vpop.trf.xlu0
  %v512 = vpop.trf.xlu0
  %513 = vxpose.xlu0.b32.start [1/16] %v191, 128
  %514 = vxpose.xlu0.b32.cont [2/16] 0.0, 128
  %515 = vxpose.xlu0.b32.cont [3/16] 0.0, 128
  %516 = vxpose.xlu0.b32.cont [4/16] 0.0, 128
  %517 = vxpose.xlu0.b32.cont [5/16] 0.0, 128
  %518 = vxpose.xlu0.b32.cont [6/16] 0.0, 128
  %519 = vxpose.xlu0.b32.cont [7/16] 0.0, 128
  %520 = vxpose.xlu0.b32.cont [8/16] 0.0, 128
  %521 = vxpose.xlu0.b32.cont [9/16] 0.0, 128
  %522 = vxpose.xlu0.b32.cont [10/16] 0.0, 128
  %523 = vxpose.xlu0.b32.cont [11/16] 0.0, 128
  %524 = vxpose.xlu0.b32.cont [12/16] 0.0, 128
  %525 = vxpose.xlu0.b32.cont [13/16] 0.0, 128
  %526 = vxpose.xlu0.b32.cont [14/16] 0.0, 128
  %527 = vxpose.xlu0.b32.cont [15/16] 0.0, 128
  %528 = vxpose.xlu0.b32.end [16/16] 0.0, 128
  %v529 = vpop.trf.xlu0
  %v530 = vpop.trf.xlu0
  %v531 = vpop.trf.xlu0
  %v532 = vpop.trf.xlu0
  %v533 = vpop.trf.xlu0
  %v534 = vpop.trf.xlu0
  %v535 = vpop.trf.xlu0
  %v536 = vpop.trf.xlu0
  %v537 = vpop.trf.xlu0
  %v538 = vpop.trf.xlu0
  %v539 = vpop.trf.xlu0
  %v540 = vpop.trf.xlu0
  %v541 = vpop.trf.xlu0
  %v542 = vpop.trf.xlu0
  %v543 = vpop.trf.xlu0
  %v544 = vpop.trf.xlu0
  %545 = vxpose.xlu0.b32.start [1/16] %v196, 128
  %546 = vxpose.xlu0.b32.cont [2/16] 0.0, 128
  %547 = vxpose.xlu0.b32.cont [3/16] 0.0, 128
  %548 = vxpose.xlu0.b32.cont [4/16] 0.0, 128
  %549 = vxpose.xlu0.b32.cont [5/16] 0.0, 128
  %550 = vxpose.xlu0.b32.cont [6/16] 0.0, 128
  %551 = vxpose.xlu0.b32.cont [7/16] 0.0, 128
  %552 = vxpose.xlu0.b32.cont [8/16] 0.0, 128
  %553 = vxpose.xlu0.b32.cont [9/16] 0.0, 128
  %554 = vxpose.xlu0.b32.cont [10/16] 0.0, 128
  %555 = vxpose.xlu0.b32.cont [11/16] 0.0, 128
  %556 = vxpose.xlu0.b32.cont [12/16] 0.0, 128
  %557 = vxpose.xlu0.b32.cont [13/16] 0.0, 128
  %558 = vxpose.xlu0.b32.cont [14/16] 0.0, 128
  %559 = vxpose.xlu0.b32.cont [15/16] 0.0, 128
  %560 = vxpose.xlu0.b32.end [16/16] 0.0, 128
  %v561 = vpop.trf.xlu0
  %v562 = vpop.trf.xlu0
  %v563 = vpop.trf.xlu0
  %v564 = vpop.trf.xlu0
  %v565 = vpop.trf.xlu0
  %v566 = vpop.trf.xlu0
  %v567 = vpop.trf.xlu0
  %v568 = vpop.trf.xlu0
  %v569 = vpop.trf.xlu0
  %v570 = vpop.trf.xlu0
  %v571 = vpop.trf.xlu0
  %v572 = vpop.trf.xlu0
  %v573 = vpop.trf.xlu0
  %v574 = vpop.trf.xlu0
  %v575 = vpop.trf.xlu0
  %v576 = vpop.trf.xlu0
  %vm577 = vcmask 64512
  %v579 = vsel %vm577, %v465, 0
  %v582 = vsel %vm577, %v466, 0
  %584 = vmatprep.subr.mxu0 0.0
  %585 = vmatpush1.msra.mxu0 %v306
  %586 = vmatprep.subr.mxu0 0.0
  %587 = vmatpush1.msra.mxu0 0.0
  %588 = vmatprep.subr.mxu0 0.0
  %589 = vmatpush1.msra.mxu0 0.0
  %590 = vmatprep.subr.mxu0 0.0
  %591 = vmatpush1.msra.mxu0 0.0
  %592 = vmatprep.subr.mxu0 0.0
  %593 = vmatpush1.msra.mxu0 0.0
  %594 = vmatprep.subr.mxu0 0.0
  %595 = vmatpush1.msra.mxu0 0.0
  %596 = vmatprep.subr.mxu0 0.0
  %597 = vmatpush1.msra.mxu0 0.0
  %598 = vmatprep.subr.mxu0 0.0
  %599 = vmatpush1.msra.mxu0 0.0
  %600 = vmatprep.subr.mxu0 0.0
  %601 = vmatpush1.msra.mxu0 0.0
  %602 = vmatprep.subr.mxu0 0.0
  %603 = vmatpush1.msra.mxu0 0.0
  %604 = vmatprep.subr.mxu0 0.0
  %605 = vmatpush1.msra.mxu0 0.0
  %606 = vmatprep.subr.mxu0 0.0
  %607 = vmatpush1.msra.mxu0 0.0
  %608 = vmatprep.subr.mxu0 0.0
  %609 = vmatpush1.msra.mxu0 0.0
  %610 = vmatprep.subr.mxu0 0.0
  %611 = vmatpush1.msra.mxu0 0.0
  %612 = vmatprep.subr.mxu0 0.0
  %613 = vmatpush1.msra.mxu0 0.0
  %614 = vmatprep.subr.mxu0 0.0
  %615 = vmatpush1.msra.mxu0 0.0
  %616 = vmatprep.subr.mxu0 0.0
  %617 = vmatpush1.msra.mxu0 0.0
  %618 = vmatprep.subr.mxu0 0.0
  %619 = vmatpush1.msra.mxu0 0.0
  %620 = vmatprep.subr.mxu0 0.0
  %621 = vmatpush1.msra.mxu0 0.0
  %622 = vmatprep.subr.mxu0 0.0
  %623 = vmatpush1.msra.mxu0 0.0
  %624 = vmatprep.subr.mxu0 0.0
  %625 = vmatpush1.msra.mxu0 0.0
  %626 = vmatprep.subr.mxu0 0.0
  %627 = vmatpush1.msra.mxu0 0.0
  %628 = vmatprep.subr.mxu0 0.0
  %629 = vmatpush1.msra.mxu0 0.0
  %630 = vmatprep.subr.mxu0 0.0
  %631 = vmatpush1.msra.mxu0 0.0
  %632 = vmatprep.subr.mxu0 0.0
  %633 = vmatpush1.msra.mxu0 0.0
  %634 = vmatprep.subr.mxu0 0.0
  %635 = vmatpush1.msra.mxu0 0.0
  %636 = vmatprep.subr.mxu0 0.0
  %637 = vmatpush1.msra.mxu0 0.0
  %638 = vmatprep.subr.mxu0 0.0
  %639 = vmatpush1.msra.mxu0 0.0
  %640 = vmatprep.subr.mxu0 0.0
  %641 = vmatpush1.msra.mxu0 0.0
  %642 = vmatprep.subr.mxu0 0.0
  %643 = vmatpush1.msra.mxu0 0.0
  %644 = vmatprep.subr.mxu0 0.0
  %645 = vmatpush1.msra.mxu0 0.0
  %646 = vmatprep.subr.mxu0 0.0
  %647 = vmatpush1.msra.mxu0 0.0
  %648 = vmatprep.mubr.f32.mxu0 0.0
  %649 = vmatmul.mubr.f32.gmra.mrb[0].mxu0 %v579
  %v650 = vpop.f32.mrb[0].mxu0
  %v651 = vadd.f32 %v71, %v650
  %v652 = vpop.f32.mrb[0].mxu0
  %653 = vmatprep.mubr.f32.mxu0 0.0
  %654 = vmatmul.mubr.f32.gmra.mrb[0].mxu0 %v582
  %v655 = vpop.f32.mrb[0].mxu0
  %v656 = vadd.f32 %v72, %v655
  %v657 = vpop.f32.mrb[0].mxu0
  %658 = vdwg.mxu0
  %v660 = vsel %vm577, %v497, 0
  %v663 = vsel %vm577, %v498, 0
  %665 = vmatprep.subr.mxu0 0.0
  %666 = vmatpush1.msra.mxu0 %v311
  %667 = vmatprep.subr.mxu0 0.0
  %668 = vmatpush1.msra.mxu0 0.0
  %669 = vmatprep.subr.mxu0 0.0
  %670 = vmatpush1.msra.mxu0 0.0
  %671 = vmatprep.subr.mxu0 0.0
  %672 = vmatpush1.msra.mxu0 0.0
  %673 = vmatprep.subr.mxu0 0.0
  %674 = vmatpush1.msra.mxu0 0.0
  %675 = vmatprep.subr.mxu0 0.0
  %676 = vmatpush1.msra.mxu0 0.0
  %677 = vmatprep.subr.mxu0 0.0
  %678 = vmatpush1.msra.mxu0 0.0
  %679 = vmatprep.subr.mxu0 0.0
  %680 = vmatpush1.msra.mxu0 0.0
  %681 = vmatprep.subr.mxu0 0.0
  %682 = vmatpush1.msra.mxu0 0.0
  %683 = vmatprep.subr.mxu0 0.0
  %684 = vmatpush1.msra.mxu0 0.0
  %685 = vmatprep.subr.mxu0 0.0
  %686 = vmatpush1.msra.mxu0 0.0
  %687 = vmatprep.subr.mxu0 0.0
  %688 = vmatpush1.msra.mxu0 0.0
  %689 = vmatprep.subr.mxu0 0.0
  %690 = vmatpush1.msra.mxu0 0.0
  %691 = vmatprep.subr.mxu0 0.0
  %692 = vmatpush1.msra.mxu0 0.0
  %693 = vmatprep.subr.mxu0 0.0
  %694 = vmatpush1.msra.mxu0 0.0
  %695 = vmatprep.subr.mxu0 0.0
  %696 = vmatpush1.msra.mxu0 0.0
  %697 = vmatprep.subr.mxu0 0.0
  %698 = vmatpush1.msra.mxu0 0.0
  %699 = vmatprep.subr.mxu0 0.0
  %700 = vmatpush1.msra.mxu0 0.0
  %701 = vmatprep.subr.mxu0 0.0
  %702 = vmatpush1.msra.mxu0 0.0
  %703 = vmatprep.subr.mxu0 0.0
  %704 = vmatpush1.msra.mxu0 0.0
  %705 = vmatprep.subr.mxu0 0.0
  %706 = vmatpush1.msra.mxu0 0.0
  %707 = vmatprep.subr.mxu0 0.0
  %708 = vmatpush1.msra.mxu0 0.0
  %709 = vmatprep.subr.mxu0 0.0
  %710 = vmatpush1.msra.mxu0 0.0
  %711 = vmatprep.subr.mxu0 0.0
  %712 = vmatpush1.msra.mxu0 0.0
  %713 = vmatprep.subr.mxu0 0.0
  %714 = vmatpush1.msra.mxu0 0.0
  %715 = vmatprep.subr.mxu0 0.0
  %716 = vmatpush1.msra.mxu0 0.0
  %717 = vmatprep.subr.mxu0 0.0
  %718 = vmatpush1.msra.mxu0 0.0
  %719 = vmatprep.subr.mxu0 0.0
  %720 = vmatpush1.msra.mxu0 0.0
  %721 = vmatprep.subr.mxu0 0.0
  %722 = vmatpush1.msra.mxu0 0.0
  %723 = vmatprep.subr.mxu0 0.0
  %724 = vmatpush1.msra.mxu0 0.0
  %725 = vmatprep.subr.mxu0 0.0
  %726 = vmatpush1.msra.mxu0 0.0
  %727 = vmatprep.subr.mxu0 0.0
  %728 = vmatpush1.msra.mxu0 0.0
  %729 = vmatprep.mubr.f32.mxu0 0.0
  %730 = vmatmul.mubr.f32.gmra.mrb[0].mxu0 %v660
  %v731 = vpop.f32.mrb[0].mxu0
  %v732 = vadd.f32 %v71, %v731
  %v733 = vpop.f32.mrb[0].mxu0
  %734 = vmatprep.mubr.f32.mxu0 0.0
  %735 = vmatmul.mubr.f32.gmra.mrb[0].mxu0 %v663
  %v736 = vpop.f32.mrb[0].mxu0
  %v737 = vadd.f32 %v72, %v736
  %v738 = vpop.f32.mrb[0].mxu0
  %739 = vdwg.mxu0
  %v741 = vsel %vm577, %v529, 0
  %v744 = vsel %vm577, %v530, 0
  %746 = vmatprep.subr.mxu0 0.0
  %747 = vmatpush1.msra.mxu0 %v316
  %748 = vmatprep.subr.mxu0 0.0
  %749 = vmatpush1.msra.mxu0 0.0
  %750 = vmatprep.subr.mxu0 0.0
  %751 = vmatpush1.msra.mxu0 0.0
  %752 = vmatprep.subr.mxu0 0.0
  %753 = vmatpush1.msra.mxu0 0.0
  %754 = vmatprep.subr.mxu0 0.0
  %755 = vmatpush1.msra.mxu0 0.0
  %756 = vmatprep.subr.mxu0 0.0
  %757 = vmatpush1.msra.mxu0 0.0
  %758 = vmatprep.subr.mxu0 0.0
  %759 = vmatpush1.msra.mxu0 0.0
  %760 = vmatprep.subr.mxu0 0.0
  %761 = vmatpush1.msra.mxu0 0.0
  %762 = vmatprep.subr.mxu0 0.0
  %763 = vmatpush1.msra.mxu0 0.0
  %764 = vmatprep.subr.mxu0 0.0
  %765 = vmatpush1.msra.mxu0 0.0
  %766 = vmatprep.subr.mxu0 0.0
  %767 = vmatpush1.msra.mxu0 0.0
  %768 = vmatprep.subr.mxu0 0.0
  %769 = vmatpush1.msra.mxu0 0.0
  %770 = vmatprep.subr.mxu0 0.0
  %771 = vmatpush1.msra.mxu0 0.0
  %772 = vmatprep.subr.mxu0 0.0
  %773 = vmatpush1.msra.mxu0 0.0
  %774 = vmatprep.subr.mxu0 0.0
  %775 = vmatpush1.msra.mxu0 0.0
  %776 = vmatprep.subr.mxu0 0.0
  %777 = vmatpush1.msra.mxu0 0.0
  %778 = vmatprep.subr.mxu0 0.0
  %779 = vmatpush1.msra.mxu0 0.0
  %780 = vmatprep.subr.mxu0 0.0
  %781 = vmatpush1.msra.mxu0 0.0
  %782 = vmatprep.subr.mxu0 0.0
  %783 = vmatpush1.msra.mxu0 0.0
  %784 = vmatprep.subr.mxu0 0.0
  %785 = vmatpush1.msra.mxu0 0.0
  %786 = vmatprep.subr.mxu0 0.0
  %787 = vmatpush1.msra.mxu0 0.0
  %788 = vmatprep.subr.mxu0 0.0
  %789 = vmatpush1.msra.mxu0 0.0
  %790 = vmatprep.subr.mxu0 0.0
  %791 = vmatpush1.msra.mxu0 0.0
  %792 = vmatprep.subr.mxu0 0.0
  %793 = vmatpush1.msra.mxu0 0.0
  %794 = vmatprep.subr.mxu0 0.0
  %795 = vmatpush1.msra.mxu0 0.0
  %796 = vmatprep.subr.mxu0 0.0
  %797 = vmatpush1.msra.mxu0 0.0
  %798 = vmatprep.subr.mxu0 0.0
  %799 = vmatpush1.msra.mxu0 0.0
  %800 = vmatprep.subr.mxu0 0.0
  %801 = vmatpush1.msra.mxu0 0.0
  %802 = vmatprep.subr.mxu0 0.0
  %803 = vmatpush1.msra.mxu0 0.0
  %804 = vmatprep.subr.mxu0 0.0
  %805 = vmatpush1.msra.mxu0 0.0
  %806 = vmatprep.subr.mxu0 0.0
  %807 = vmatpush1.msra.mxu0 0.0
  %808 = vmatprep.subr.mxu0 0.0
  %809 = vmatpush1.msra.mxu0 0.0
  %810 = vmatprep.mubr.f32.mxu0 0.0
  %811 = vmatmul.mubr.f32.gmra.mrb[0].mxu0 %v741
  %v812 = vpop.f32.mrb[0].mxu0
  %v813 = vadd.f32 %v71, %v812
  %v814 = vpop.f32.mrb[0].mxu0
  %815 = vmatprep.mubr.f32.mxu0 0.0
  %816 = vmatmul.mubr.f32.gmra.mrb[0].mxu0 %v744
  %v817 = vpop.f32.mrb[0].mxu0
  %v818 = vadd.f32 %v72, %v817
  %v819 = vpop.f32.mrb[0].mxu0
  %820 = vdwg.mxu0
  %v822 = vsel %vm577, %v561, 0
  %v825 = vsel %vm577, %v562, 0
  %827 = vmatprep.subr.mxu0 0.0
  %828 = vmatpush1.msra.mxu0 %v321
  %829 = vmatprep.subr.mxu0 0.0
  %830 = vmatpush1.msra.mxu0 0.0
  %831 = vmatprep.subr.mxu0 0.0
  %832 = vmatpush1.msra.mxu0 0.0
  %833 = vmatprep.subr.mxu0 0.0
  %834 = vmatpush1.msra.mxu0 0.0
  %835 = vmatprep.subr.mxu0 0.0
  %836 = vmatpush1.msra.mxu0 0.0
  %837 = vmatprep.subr.mxu0 0.0
  %838 = vmatpush1.msra.mxu0 0.0
  %839 = vmatprep.subr.mxu0 0.0
  %840 = vmatpush1.msra.mxu0 0.0
  %841 = vmatprep.subr.mxu0 0.0
  %842 = vmatpush1.msra.mxu0 0.0
  %843 = vmatprep.subr.mxu0 0.0
  %844 = vmatpush1.msra.mxu0 0.0
  %845 = vmatprep.subr.mxu0 0.0
  %846 = vmatpush1.msra.mxu0 0.0
  %847 = vmatprep.subr.mxu0 0.0
  %848 = vmatpush1.msra.mxu0 0.0
  %849 = vmatprep.subr.mxu0 0.0
  %850 = vmatpush1.msra.mxu0 0.0
  %851 = vmatprep.subr.mxu0 0.0
  %852 = vmatpush1.msra.mxu0 0.0
  %853 = vmatprep.subr.mxu0 0.0
  %854 = vmatpush1.msra.mxu0 0.0
  %855 = vmatprep.subr.mxu0 0.0
  %856 = vmatpush1.msra.mxu0 0.0
  %857 = vmatprep.subr.mxu0 0.0
  %858 = vmatpush1.msra.mxu0 0.0
  %859 = vmatprep.subr.mxu0 0.0
  %860 = vmatpush1.msra.mxu0 0.0
  %861 = vmatprep.subr.mxu0 0.0
  %862 = vmatpush1.msra.mxu0 0.0
  %863 = vmatprep.subr.mxu0 0.0
  %864 = vmatpush1.msra.mxu0 0.0
  %865 = vmatprep.subr.mxu0 0.0
  %866 = vmatpush1.msra.mxu0 0.0
  %867 = vmatprep.subr.mxu0 0.0
  %868 = vmatpush1.msra.mxu0 0.0
  %869 = vmatprep.subr.mxu0 0.0
  %870 = vmatpush1.msra.mxu0 0.0
  %871 = vmatprep.subr.mxu0 0.0
  %872 = vmatpush1.msra.mxu0 0.0
  %873 = vmatprep.subr.mxu0 0.0
  %874 = vmatpush1.msra.mxu0 0.0
  %875 = vmatprep.subr.mxu0 0.0
  %876 = vmatpush1.msra.mxu0 0.0
  %877 = vmatprep.subr.mxu0 0.0
  %878 = vmatpush1.msra.mxu0 0.0
  %879 = vmatprep.subr.mxu0 0.0
  %880 = vmatpush1.msra.mxu0 0.0
  %881 = vmatprep.subr.mxu0 0.0
  %882 = vmatpush1.msra.mxu0 0.0
  %883 = vmatprep.subr.mxu0 0.0
  %884 = vmatpush1.msra.mxu0 0.0
  %885 = vmatprep.subr.mxu0 0.0
  %886 = vmatpush1.msra.mxu0 0.0
  %887 = vmatprep.subr.mxu0 0.0
  %888 = vmatpush1.msra.mxu0 0.0
  %889 = vmatprep.subr.mxu0 0.0
  %890 = vmatpush1.msra.mxu0 0.0
  %891 = vmatprep.mubr.f32.mxu0 0.0
  %892 = vmatmul.mubr.f32.gmra.mrb[0].mxu0 %v822
  %v893 = vpop.f32.mrb[0].mxu0
  %v894 = vadd.f32 %v71, %v893
  %v895 = vpop.f32.mrb[0].mxu0
  %896 = vmatprep.mubr.f32.mxu0 0.0
  %897 = vmatmul.mubr.f32.gmra.mrb[0].mxu0 %v825
  %v898 = vpop.f32.mrb[0].mxu0
  %v899 = vadd.f32 %v72, %v898
  %v900 = vpop.f32.mrb[0].mxu0
  %901 = vdwg.mxu0
  %vm902 = vcmask 130048
  %v903 = vsel %vm902, %v651, -inf
  %904 = vmax.xlane.f32.xlu0 %v903
  %v905 = vpop.xlane.xlu0 %904
  %v906 = vsel %vm902, %v656, -inf
  %907 = vmax.xlane.f32.xlu0 %v906
  %v908 = vpop.xlane.xlu0 %907
  %v909 = vsel %vm902, %v732, -inf
  %910 = vmax.xlane.f32.xlu0 %v909
  %v911 = vpop.xlane.xlu0 %910
  %v912 = vsel %vm902, %v737, -inf
  %913 = vmax.xlane.f32.xlu0 %v912
  %v914 = vpop.xlane.xlu0 %913
  %v915 = vsel %vm902, %v813, -inf
  %916 = vmax.xlane.f32.xlu0 %v915
  %v917 = vpop.xlane.xlu0 %916
  %v918 = vsel %vm902, %v818, -inf
  %919 = vmax.xlane.f32.xlu0 %v918
  %v920 = vpop.xlane.xlu0 %919
  %v921 = vsel %vm902, %v894, -inf
  %922 = vmax.xlane.f32.xlu0 %v921
  %v923 = vpop.xlane.xlu0 %922
  %v924 = vsel %vm902, %v899, -inf
  %925 = vmax.xlane.f32.xlu0 %v924
  %v926 = vpop.xlane.xlu0 %925
  %v927 = vsub.f32 %v651, %v905
  %v928 = vsub.f32 %v656, %v908
  %v929 = vsub.f32 %v732, %v911
  %v930 = vsub.f32 %v737, %v914
  %v931 = vsub.f32 %v813, %v917
  %v932 = vsub.f32 %v818, %v920
  %v933 = vsub.f32 %v894, %v923
  %v934 = vsub.f32 %v899, %v926
  %v935 = vmul.f32 %v927, 1.442695
  %v936 = vpow.pop %v935
  %v937 = vmul.f32 %v928, 1.442695
  %v938 = vpow.pop %v937
  %v939 = vmul.f32 %v929, 1.442695
  %v940 = vpow.pop %v939
  %v941 = vmul.f32 %v930, 1.442695
  %v942 = vpow.pop %v941
  %v943 = vmul.f32 %v931, 1.442695
  %v944 = vpow.pop %v943
  %v945 = vmul.f32 %v932, 1.442695
  %v946 = vpow.pop %v945
  %v947 = vmul.f32 %v933, 1.442695
  %v948 = vpow.pop %v947
  %v949 = vmul.f32 %v934, 1.442695
  %v950 = vpow.pop %v949
  %v951 = vsel %vm902, %v936, 0.0
  %952 = vadd.xlane.f32.xlu0 %v951
  %v953 = vpop.xlane.xlu0 %952
  %v954 = vsel %vm902, %v938, 0.0
  %955 = vadd.xlane.f32.xlu0 %v954
  %v956 = vpop.xlane.xlu0 %955
  %v957 = vsel %vm902, %v940, 0.0
  %958 = vadd.xlane.f32.xlu0 %v957
  %v959 = vpop.xlane.xlu0 %958
  %v960 = vsel %vm902, %v942, 0.0
  %961 = vadd.xlane.f32.xlu0 %v960
  %v962 = vpop.xlane.xlu0 %961
  %v963 = vsel %vm902, %v944, 0.0
  %964 = vadd.xlane.f32.xlu0 %v963
  %v965 = vpop.xlane.xlu0 %964
  %v966 = vsel %vm902, %v946, 0.0
  %967 = vadd.xlane.f32.xlu0 %v966
  %v968 = vpop.xlane.xlu0 %967
  %v969 = vsel %vm902, %v948, 0.0
  %970 = vadd.xlane.f32.xlu0 %v969
  %v971 = vpop.xlane.xlu0 %970
  %v972 = vsel %vm902, %v950, 0.0
  %973 = vadd.xlane.f32.xlu0 %v972
  %v974 = vpop.xlane.xlu0 %973
  %v975 = vrcp.pop %v953
  %v976 = vrcp.pop %v956
  %v977 = vrcp.pop %v959
  %v978 = vrcp.pop %v962
  %v979 = vrcp.pop %v965
  %v980 = vrcp.pop %v968
  %v981 = vrcp.pop %v971
  %v982 = vrcp.pop %v974
  %v983 = vmul.f32 %v936, %v975
  %v984 = vmul.f32 %v938, %v976
  %v985 = vmul.f32 %v940, %v977
  %v986 = vmul.f32 %v942, %v978
  %v987 = vmul.f32 %v944, %v979
  %v988 = vmul.f32 %v946, %v980
  %v989 = vmul.f32 %v948, %v981
  %v990 = vmul.f32 %v950, %v982
  %v992 = vsel %vm902, %v431, 0
  %v995 = vsel %vm902, %v983, 0
  %v998 = vsel %vm902, %v984, 0
  %1000 = vmatprep.subr.mxu0 0.0
  %1001 = vmatpush1.xpose.msra.mxu0 %v995
  %1002 = vmatprep.subr.mxu0 0.0
  %1003 = vmatpush1.xpose.msra.mxu0 %v998
  %1004 = vmatprep.subr.mxu0 0.0
  %1005 = vmatpush1.xpose.msra.mxu0 0.0
  %1006 = vmatprep.subr.mxu0 0.0
  %1007 = vmatpush1.xpose.msra.mxu0 0.0
  %1008 = vmatprep.subr.mxu0 0.0
  %1009 = vmatpush1.xpose.msra.mxu0 0.0
  %1010 = vmatprep.subr.mxu0 0.0
  %1011 = vmatpush1.xpose.msra.mxu0 0.0
  %1012 = vmatprep.subr.mxu0 0.0
  %1013 = vmatpush1.xpose.msra.mxu0 0.0
  %1014 = vmatprep.subr.mxu0 0.0
  %1015 = vmatpush1.xpose.msra.mxu0 0.0
  %1016 = vmatprep.subr.mxu0 0.0
  %1017 = vmatpush1.xpose.msra.mxu0 0.0
  %1018 = vmatprep.subr.mxu0 0.0
  %1019 = vmatpush1.xpose.msra.mxu0 0.0
  %1020 = vmatprep.subr.mxu0 0.0
  %1021 = vmatpush1.xpose.msra.mxu0 0.0
  %1022 = vmatprep.subr.mxu0 0.0
  %1023 = vmatpush1.xpose.msra.mxu0 0.0
  %1024 = vmatprep.subr.mxu0 0.0
  %1025 = vmatpush1.xpose.msra.mxu0 0.0
  %1026 = vmatprep.subr.mxu0 0.0
  %1027 = vmatpush1.xpose.msra.mxu0 0.0
  %1028 = vmatprep.subr.mxu0 0.0
  %1029 = vmatpush1.xpose.msra.mxu0 0.0
  %1030 = vmatprep.subr.mxu0 0.0
  %1031 = vmatpush1.xpose.msra.mxu0 0.0
  %1032 = vmatprep.subr.mxu0 0.0
  %1033 = vmatpush1.xpose.msra.mxu0 0.0
  %1034 = vmatprep.subr.mxu0 0.0
  %1035 = vmatpush1.xpose.msra.mxu0 0.0
  %1036 = vmatprep.subr.mxu0 0.0
  %1037 = vmatpush1.xpose.msra.mxu0 0.0
  %1038 = vmatprep.subr.mxu0 0.0
  %1039 = vmatpush1.xpose.msra.mxu0 0.0
  %1040 = vmatprep.subr.mxu0 0.0
  %1041 = vmatpush1.xpose.msra.mxu0 0.0
  %1042 = vmatprep.subr.mxu0 0.0
  %1043 = vmatpush1.xpose.msra.mxu0 0.0
  %1044 = vmatprep.subr.mxu0 0.0
  %1045 = vmatpush1.xpose.msra.mxu0 0.0
  %1046 = vmatprep.subr.mxu0 0.0
  %1047 = vmatpush1.xpose.msra.mxu0 0.0
  %1048 = vmatprep.subr.mxu0 0.0
  %1049 = vmatpush1.xpose.msra.mxu0 0.0
  %1050 = vmatprep.subr.mxu0 0.0
  %1051 = vmatpush1.xpose.msra.mxu0 0.0
  %1052 = vmatprep.subr.mxu0 0.0
  %1053 = vmatpush1.xpose.msra.mxu0 0.0
  %1054 = vmatprep.subr.mxu0 0.0
  %1055 = vmatpush1.xpose.msra.mxu0 0.0
  %1056 = vmatprep.subr.mxu0 0.0
  %1057 = vmatpush1.xpose.msra.mxu0 0.0
  %1058 = vmatprep.subr.mxu0 0.0
  %1059 = vmatpush1.xpose.msra.mxu0 0.0
  %1060 = vmatprep.subr.mxu0 0.0
  %1061 = vmatpush1.xpose.msra.mxu0 0.0
  %1062 = vmatprep.subr.mxu0 0.0
  %1063 = vmatpush1.xpose.msra.mxu0 0.0
  %1064 = vmatprep.mubr.f32.mxu0 0.0
  %1065 = vmatmul.mubr.f32.gmra.mrb[0].mxu0 %v992
  %v1066 = vpop.f32.mrb[0].mxu0
  %v1067 = vadd.f32 0.0, %v1066
  %v1068 = vpop.f32.mrb[0].mxu0
  %1069 = vdwg.mxu0
  %v1071 = vsel %vm902, %v436, 0
  %v1074 = vsel %vm902, %v985, 0
  %v1077 = vsel %vm902, %v986, 0
  %1079 = vmatprep.subr.mxu0 0.0
  %1080 = vmatpush1.xpose.msra.mxu0 %v1074
  %1081 = vmatprep.subr.mxu0 0.0
  %1082 = vmatpush1.xpose.msra.mxu0 %v1077
  %1083 = vmatprep.subr.mxu0 0.0
  %1084 = vmatpush1.xpose.msra.mxu0 0.0
  %1085 = vmatprep.subr.mxu0 0.0
  %1086 = vmatpush1.xpose.msra.mxu0 0.0
  %1087 = vmatprep.subr.mxu0 0.0
  %1088 = vmatpush1.xpose.msra.mxu0 0.0
  %1089 = vmatprep.subr.mxu0 0.0
  %1090 = vmatpush1.xpose.msra.mxu0 0.0
  %1091 = vmatprep.subr.mxu0 0.0
  %1092 = vmatpush1.xpose.msra.mxu0 0.0
  %1093 = vmatprep.subr.mxu0 0.0
  %1094 = vmatpush1.xpose.msra.mxu0 0.0
  %1095 = vmatprep.subr.mxu0 0.0
  %1096 = vmatpush1.xpose.msra.mxu0 0.0
  %1097 = vmatprep.subr.mxu0 0.0
  %1098 = vmatpush1.xpose.msra.mxu0 0.0
  %1099 = vmatprep.subr.mxu0 0.0
  %1100 = vmatpush1.xpose.msra.mxu0 0.0
  %1101 = vmatprep.subr.mxu0 0.0
  %1102 = vmatpush1.xpose.msra.mxu0 0.0
  %1103 = vmatprep.subr.mxu0 0.0
  %1104 = vmatpush1.xpose.msra.mxu0 0.0
  %1105 = vmatprep.subr.mxu0 0.0
  %1106 = vmatpush1.xpose.msra.mxu0 0.0
  %1107 = vmatprep.subr.mxu0 0.0
  %1108 = vmatpush1.xpose.msra.mxu0 0.0
  %1109 = vmatprep.subr.mxu0 0.0
  %1110 = vmatpush1.xpose.msra.mxu0 0.0
  %1111 = vmatprep.subr.mxu0 0.0
  %1112 = vmatpush1.xpose.msra.mxu0 0.0
  %1113 = vmatprep.subr.mxu0 0.0
  %1114 = vmatpush1.xpose.msra.mxu0 0.0
  %1115 = vmatprep.subr.mxu0 0.0
  %1116 = vmatpush1.xpose.msra.mxu0 0.0
  %1117 = vmatprep.subr.mxu0 0.0
  %1118 = vmatpush1.xpose.msra.mxu0 0.0
  %1119 = vmatprep.subr.mxu0 0.0
  %1120 = vmatpush1.xpose.msra.mxu0 0.0
  %1121 = vmatprep.subr.mxu0 0.0
  %1122 = vmatpush1.xpose.msra.mxu0 0.0
  %1123 = vmatprep.subr.mxu0 0.0
  %1124 = vmatpush1.xpose.msra.mxu0 0.0
  %1125 = vmatprep.subr.mxu0 0.0
  %1126 = vmatpush1.xpose.msra.mxu0 0.0
  %1127 = vmatprep.subr.mxu0 0.0
  %1128 = vmatpush1.xpose.msra.mxu0 0.0
  %1129 = vmatprep.subr.mxu0 0.0
  %1130 = vmatpush1.xpose.msra.mxu0 0.0
  %1131 = vmatprep.subr.mxu0 0.0
  %1132 = vmatpush1.xpose.msra.mxu0 0.0
  %1133 = vmatprep.subr.mxu0 0.0
  %1134 = vmatpush1.xpose.msra.mxu0 0.0
  %1135 = vmatprep.subr.mxu0 0.0
  %1136 = vmatpush1.xpose.msra.mxu0 0.0
  %1137 = vmatprep.subr.mxu0 0.0
  %1138 = vmatpush1.xpose.msra.mxu0 0.0
  %1139 = vmatprep.subr.mxu0 0.0
  %1140 = vmatpush1.xpose.msra.mxu0 0.0
  %1141 = vmatprep.subr.mxu0 0.0
  %1142 = vmatpush1.xpose.msra.mxu0 0.0
  %1143 = vmatprep.mubr.f32.mxu0 0.0
  %1144 = vmatmul.mubr.f32.gmra.mrb[0].mxu0 %v1071
  %v1145 = vpop.f32.mrb[0].mxu0
  %v1146 = vadd.f32 0.0, %v1145
  %v1147 = vpop.f32.mrb[0].mxu0
  %1148 = vdwg.mxu0
  %v1150 = vsel %vm902, %v441, 0
  %v1153 = vsel %vm902, %v987, 0
  %v1156 = vsel %vm902, %v988, 0
  %1158 = vmatprep.subr.mxu0 0.0
  %1159 = vmatpush1.xpose.msra.mxu0 %v1153
  %1160 = vmatprep.subr.mxu0 0.0
  %1161 = vmatpush1.xpose.msra.mxu0 %v1156
  %1162 = vmatprep.subr.mxu0 0.0
  %1163 = vmatpush1.xpose.msra.mxu0 0.0
  %1164 = vmatprep.subr.mxu0 0.0
  %1165 = vmatpush1.xpose.msra.mxu0 0.0
  %1166 = vmatprep.subr.mxu0 0.0
  %1167 = vmatpush1.xpose.msra.mxu0 0.0
  %1168 = vmatprep.subr.mxu0 0.0
  %1169 = vmatpush1.xpose.msra.mxu0 0.0
  %1170 = vmatprep.subr.mxu0 0.0
  %1171 = vmatpush1.xpose.msra.mxu0 0.0
  %1172 = vmatprep.subr.mxu0 0.0
  %1173 = vmatpush1.xpose.msra.mxu0 0.0
  %1174 = vmatprep.subr.mxu0 0.0
  %1175 = vmatpush1.xpose.msra.mxu0 0.0
  %1176 = vmatprep.subr.mxu0 0.0
  %1177 = vmatpush1.xpose.msra.mxu0 0.0
  %1178 = vmatprep.subr.mxu0 0.0
  %1179 = vmatpush1.xpose.msra.mxu0 0.0
  %1180 = vmatprep.subr.mxu0 0.0
  %1181 = vmatpush1.xpose.msra.mxu0 0.0
  %1182 = vmatprep.subr.mxu0 0.0
  %1183 = vmatpush1.xpose.msra.mxu0 0.0
  %1184 = vmatprep.subr.mxu0 0.0
  %1185 = vmatpush1.xpose.msra.mxu0 0.0
  %1186 = vmatprep.subr.mxu0 0.0
  %1187 = vmatpush1.xpose.msra.mxu0 0.0
  %1188 = vmatprep.subr.mxu0 0.0
  %1189 = vmatpush1.xpose.msra.mxu0 0.0
  %1190 = vmatprep.subr.mxu0 0.0
  %1191 = vmatpush1.xpose.msra.mxu0 0.0
  %1192 = vmatprep.subr.mxu0 0.0
  %1193 = vmatpush1.xpose.msra.mxu0 0.0
  %1194 = vmatprep.subr.mxu0 0.0
  %1195 = vmatpush1.xpose.msra.mxu0 0.0
  %1196 = vmatprep.subr.mxu0 0.0
  %1197 = vmatpush1.xpose.msra.mxu0 0.0
  %1198 = vmatprep.subr.mxu0 0.0
  %1199 = vmatpush1.xpose.msra.mxu0 0.0
  %1200 = vmatprep.subr.mxu0 0.0
  %1201 = vmatpush1.xpose.msra.mxu0 0.0
  %1202 = vmatprep.subr.mxu0 0.0
  %1203 = vmatpush1.xpose.msra.mxu0 0.0
  %1204 = vmatprep.subr.mxu0 0.0
  %1205 = vmatpush1.xpose.msra.mxu0 0.0
  %1206 = vmatprep.subr.mxu0 0.0
  %1207 = vmatpush1.xpose.msra.mxu0 0.0
  %1208 = vmatprep.subr.mxu0 0.0
  %1209 = vmatpush1.xpose.msra.mxu0 0.0
  %1210 = vmatprep.subr.mxu0 0.0
  %1211 = vmatpush1.xpose.msra.mxu0 0.0
  %1212 = vmatprep.subr.mxu0 0.0
  %1213 = vmatpush1.xpose.msra.mxu0 0.0
  %1214 = vmatprep.subr.mxu0 0.0
  %1215 = vmatpush1.xpose.msra.mxu0 0.0
  %1216 = vmatprep.subr.mxu0 0.0
  %1217 = vmatpush1.xpose.msra.mxu0 0.0
  %1218 = vmatprep.subr.mxu0 0.0
  %1219 = vmatpush1.xpose.msra.mxu0 0.0
  %1220 = vmatprep.subr.mxu0 0.0
  %1221 = vmatpush1.xpose.msra.mxu0 0.0
  %1222 = vmatprep.mubr.f32.mxu0 0.0
  %1223 = vmatmul.mubr.f32.gmra.mrb[0].mxu0 %v1150
  %v1224 = vpop.f32.mrb[0].mxu0
  %v1225 = vadd.f32 0.0, %v1224
  %v1226 = vpop.f32.mrb[0].mxu0
  %1227 = vdwg.mxu0
  %v1229 = vsel %vm902, %v446, 0
  %v1232 = vsel %vm902, %v989, 0
  %v1235 = vsel %vm902, %v990, 0
  %1237 = vmatprep.subr.mxu0 0.0
  %1238 = vmatpush1.xpose.msra.mxu0 %v1232
  %1239 = vmatprep.subr.mxu0 0.0
  %1240 = vmatpush1.xpose.msra.mxu0 %v1235
  %1241 = vmatprep.subr.mxu0 0.0
  %1242 = vmatpush1.xpose.msra.mxu0 0.0
  %1243 = vmatprep.subr.mxu0 0.0
  %1244 = vmatpush1.xpose.msra.mxu0 0.0
  %1245 = vmatprep.subr.mxu0 0.0
  %1246 = vmatpush1.xpose.msra.mxu0 0.0
  %1247 = vmatprep.subr.mxu0 0.0
  %1248 = vmatpush1.xpose.msra.mxu0 0.0
  %1249 = vmatprep.subr.mxu0 0.0
  %1250 = vmatpush1.xpose.msra.mxu0 0.0
  %1251 = vmatprep.subr.mxu0 0.0
  %1252 = vmatpush1.xpose.msra.mxu0 0.0
  %1253 = vmatprep.subr.mxu0 0.0
  %1254 = vmatpush1.xpose.msra.mxu0 0.0
  %1255 = vmatprep.subr.mxu0 0.0
  %1256 = vmatpush1.xpose.msra.mxu0 0.0
  %1257 = vmatprep.subr.mxu0 0.0
  %1258 = vmatpush1.xpose.msra.mxu0 0.0
  %1259 = vmatprep.subr.mxu0 0.0
  %1260 = vmatpush1.xpose.msra.mxu0 0.0
  %1261 = vmatprep.subr.mxu0 0.0
  %1262 = vmatpush1.xpose.msra.mxu0 0.0
  %1263 = vmatprep.subr.mxu0 0.0
  %1264 = vmatpush1.xpose.msra.mxu0 0.0
  %1265 = vmatprep.subr.mxu0 0.0
  %1266 = vmatpush1.xpose.msra.mxu0 0.0
  %1267 = vmatprep.subr.mxu0 0.0
  %1268 = vmatpush1.xpose.msra.mxu0 0.0
  %1269 = vmatprep.subr.mxu0 0.0
  %1270 = vmatpush1.xpose.msra.mxu0 0.0
  %1271 = vmatprep.subr.mxu0 0.0
  %1272 = vmatpush1.xpose.msra.mxu0 0.0
  %1273 = vmatprep.subr.mxu0 0.0
  %1274 = vmatpush1.xpose.msra.mxu0 0.0
  %1275 = vmatprep.subr.mxu0 0.0
  %1276 = vmatpush1.xpose.msra.mxu0 0.0
  %1277 = vmatprep.subr.mxu0 0.0
  %1278 = vmatpush1.xpose.msra.mxu0 0.0
  %1279 = vmatprep.subr.mxu0 0.0
  %1280 = vmatpush1.xpose.msra.mxu0 0.0
  %1281 = vmatprep.subr.mxu0 0.0
  %1282 = vmatpush1.xpose.msra.mxu0 0.0
  %1283 = vmatprep.subr.mxu0 0.0
  %1284 = vmatpush1.xpose.msra.mxu0 0.0
  %1285 = vmatprep.subr.mxu0 0.0
  %1286 = vmatpush1.xpose.msra.mxu0 0.0
  %1287 = vmatprep.subr.mxu0 0.0
  %1288 = vmatpush1.xpose.msra.mxu0 0.0
  %1289 = vmatprep.subr.mxu0 0.0
  %1290 = vmatpush1.xpose.msra.mxu0 0.0
  %1291 = vmatprep.subr.mxu0 0.0
  %1292 = vmatpush1.xpose.msra.mxu0 0.0
  %1293 = vmatprep.subr.mxu0 0.0
  %1294 = vmatpush1.xpose.msra.mxu0 0.0
  %1295 = vmatprep.subr.mxu0 0.0
  %1296 = vmatpush1.xpose.msra.mxu0 0.0
  %1297 = vmatprep.subr.mxu0 0.0
  %1298 = vmatpush1.xpose.msra.mxu0 0.0
  %1299 = vmatprep.subr.mxu0 0.0
  %1300 = vmatpush1.xpose.msra.mxu0 0.0
  %1301 = vmatprep.mubr.f32.mxu0 0.0
  %1302 = vmatmul.mubr.f32.gmra.mrb[0].mxu0 %v1229
  %v1303 = vpop.f32.mrb[0].mxu0
  %v1304 = vadd.f32 0.0, %v1303
  %v1305 = vpop.f32.mrb[0].mxu0
  %1306 = vdwg.mxu0
  %v1307 = vld [vmem:[%s8] sm:$0xff]
  %v1308 = vld [vmem:[%s8 + $0x8] sm:$0xff]
  %v1309 = vld [vmem:[%s8 + $0x10] sm:$0xff]
  %v1310 = vld [vmem:[%s8 + $0x18] sm:$0xff]
  %v1311 = vld [vmem:[%s9] sm:$0xff]
  %v1312 = vld [vmem:[%s9 + $0x8] sm:$0xff]
  %v1313 = vld [vmem:[%s9 + $0x10] sm:$0xff]
  %v1314 = vld [vmem:[%s9 + $0x18] sm:$0xff]
  %1316 = vset.pattern.permute.xlu0 0
  %1317 = vperm.xlu0 %1316, %v1311
  %v1318 = vpop.permute.xlu0 %1317
  %1321 = vset.pattern.permute.xlu0 0
  %1322 = vperm.xlu0 %1321, %v1312
  %v1323 = vpop.permute.xlu0 %1322
  %1326 = vset.pattern.permute.xlu0 0
  %1327 = vperm.xlu0 %1326, %v1313
  %v1328 = vpop.permute.xlu0 %1327
  %1331 = vset.pattern.permute.xlu0 0
  %1332 = vperm.xlu0 %1331, %v1314
  %v1333 = vpop.permute.xlu0 %1332
  %v1336 = vsel %vm101, %v1307, 0
  %v1339 = vsel %vm101, %v1308, 0
  %v1342 = vsel %vm101, %v1309, 0
  %v1345 = vsel %vm101, %v1310, 0
  %1347 = vmatprep.subr.mxu0 0.0
  %1348 = vmatpush1.msra.mxu0 %v1067
  %1349 = vmatprep.subr.mxu0 0.0
  %1350 = vmatpush1.msra.mxu0 %v1146
  %1351 = vmatprep.subr.mxu0 0.0
  %1352 = vmatpush1.msra.mxu0 %v1225
  %1353 = vmatprep.subr.mxu0 0.0
  %1354 = vmatpush1.msra.mxu0 %v1304
  %1355 = vmatprep.subr.mxu0 0.0
  %1356 = vmatpush1.msra.mxu0 0.0
  %1357 = vmatprep.subr.mxu0 0.0
  %1358 = vmatpush1.msra.mxu0 0.0
  %1359 = vmatprep.subr.mxu0 0.0
  %1360 = vmatpush1.msra.mxu0 0.0
  %1361 = vmatprep.subr.mxu0 0.0
  %1362 = vmatpush1.msra.mxu0 0.0
  %1363 = vmatprep.subr.mxu0 0.0
  %1364 = vmatpush1.msra.mxu0 0.0
  %1365 = vmatprep.subr.mxu0 0.0
  %1366 = vmatpush1.msra.mxu0 0.0
  %1367 = vmatprep.subr.mxu0 0.0
  %1368 = vmatpush1.msra.mxu0 0.0
  %1369 = vmatprep.subr.mxu0 0.0
  %1370 = vmatpush1.msra.mxu0 0.0
  %1371 = vmatprep.subr.mxu0 0.0
  %1372 = vmatpush1.msra.mxu0 0.0
  %1373 = vmatprep.subr.mxu0 0.0
  %1374 = vmatpush1.msra.mxu0 0.0
  %1375 = vmatprep.subr.mxu0 0.0
  %1376 = vmatpush1.msra.mxu0 0.0
  %1377 = vmatprep.subr.mxu0 0.0
  %1378 = vmatpush1.msra.mxu0 0.0
  %1379 = vmatprep.subr.mxu0 0.0
  %1380 = vmatpush1.msra.mxu0 0.0
  %1381 = vmatprep.subr.mxu0 0.0
  %1382 = vmatpush1.msra.mxu0 0.0
  %1383 = vmatprep.subr.mxu0 0.0
  %1384 = vmatpush1.msra.mxu0 0.0
  %1385 = vmatprep.subr.mxu0 0.0
  %1386 = vmatpush1.msra.mxu0 0.0
  %1387 = vmatprep.subr.mxu0 0.0
  %1388 = vmatpush1.msra.mxu0 0.0
  %1389 = vmatprep.subr.mxu0 0.0
  %1390 = vmatpush1.msra.mxu0 0.0
  %1391 = vmatprep.subr.mxu0 0.0
  %1392 = vmatpush1.msra.mxu0 0.0
  %1393 = vmatprep.subr.mxu0 0.0
  %1394 = vmatpush1.msra.mxu0 0.0
  %1395 = vmatprep.subr.mxu0 0.0
  %1396 = vmatpush1.msra.mxu0 0.0
  %1397 = vmatprep.subr.mxu0 0.0
  %1398 = vmatpush1.msra.mxu0 0.0
  %1399 = vmatprep.subr.mxu0 0.0
  %1400 = vmatpush1.msra.mxu0 0.0
  %1401 = vmatprep.subr.mxu0 0.0
  %1402 = vmatpush1.msra.mxu0 0.0
  %1403 = vmatprep.subr.mxu0 0.0
  %1404 = vmatpush1.msra.mxu0 0.0
  %1405 = vmatprep.subr.mxu0 0.0
  %1406 = vmatpush1.msra.mxu0 0.0
  %1407 = vmatprep.subr.mxu0 0.0
  %1408 = vmatpush1.msra.mxu0 0.0
  %1409 = vmatprep.subr.mxu0 0.0
  %1410 = vmatpush1.msra.mxu0 0.0
  %1411 = vmatprep.mubr.f32.mxu0 0.0
  %1412 = vmatmul.mubr.f32.gmra.mrb[0].mxu0 %v1336
  %v1413 = vpop.f32.mrb[0].mxu0
  %v1414 = vadd.f32 %v1318, %v1413
  %v1415 = vpop.f32.mrb[0].mxu0
  %1416 = vmatprep.mubr.f32.mxu0 0.0
  %1417 = vmatmul.mubr.f32.gmra.mrb[0].mxu0 %v1339
  %v1418 = vpop.f32.mrb[0].mxu0
  %v1419 = vadd.f32 %v1323, %v1418
  %v1420 = vpop.f32.mrb[0].mxu0
  %1421 = vmatprep.mubr.f32.mxu0 0.0
  %1422 = vmatmul.mubr.f32.gmra.mrb[0].mxu0 %v1342
  %v1423 = vpop.f32.mrb[0].mxu0
  %v1424 = vadd.f32 %v1328, %v1423
  %v1425 = vpop.f32.mrb[0].mxu0
  %1426 = vmatprep.mubr.f32.mxu0 0.0
  %1427 = vmatmul.mubr.f32.gmra.mrb[0].mxu0 %v1345
  %v1428 = vpop.f32.mrb[0].mxu0
  %v1429 = vadd.f32 %v1333, %v1428
  %v1430 = vpop.f32.mrb[0].mxu0
  %1431 = vdwg.mxu0
  %v1432 = vadd.f32 %v67, %v1414
  %v1433 = vadd.f32 %v68, %v1419
  %v1434 = vadd.f32 %v69, %v1424
  %v1435 = vadd.f32 %v70, %v1429
  %v1436 = vld [vmem:[%s10] sm:$0xff]
  %v1437 = vld [vmem:[%s10 + $0x8] sm:$0xff]
  %v1438 = vld [vmem:[%s10 + $0x10] sm:$0xff]
  %v1439 = vld [vmem:[%s10 + $0x18] sm:$0xff]
  %v1440 = vld [vmem:[%s11] sm:$0xff]
  %v1441 = vld [vmem:[%s11 + $0x8] sm:$0xff]
  %v1442 = vld [vmem:[%s11 + $0x10] sm:$0xff]
  %v1443 = vld [vmem:[%s11 + $0x18] sm:$0xff]
  %v1444 = vsel %vm902, %v1432, 0.0
  %v1445 = vsel %vm902, %v1433, 0.0
  %v1446 = vadd.f32 %v1444, %v1445
  %v1447 = vsel %vm902, %v1434, 0.0
  %v1448 = vadd.f32 %v1446, %v1447
  %v1449 = vsel %vm902, %v1435, 0.0
  %v1450 = vadd.f32 %v1448, %v1449
  %v1451 = vrot.slane %v1450, 4
  %v1452 = vadd.f32 %v1450, %v1451
  %v1453 = vrot.slane %v1452, 2
  %v1454 = vadd.f32 %v1452, %v1453
  %v1455 = vrot.slane %v1454, 1
  %v1456 = vadd.f32 %v1454, %v1455
  %v1457 = vrcp.pop 32.0
  %v1458 = vmul.f32 %v1456, %v1457
  %v1459 = vsub.f32 %v1432, %v1458
  %v1460 = vsub.f32 %v1433, %v1458
  %v1461 = vsub.f32 %v1434, %v1458
  %v1462 = vsub.f32 %v1435, %v1458
  %v1463 = vmul.f32 %v1459, %v1459
  %v1464 = vmul.f32 %v1460, %v1460
  %v1465 = vmul.f32 %v1461, %v1461
  %v1466 = vmul.f32 %v1462, %v1462
  %v1467 = vsel %vm902, %v1463, 0.0
  %v1468 = vsel %vm902, %v1464, 0.0
  %v1469 = vadd.f32 %v1467, %v1468
  %v1470 = vsel %vm902, %v1465, 0.0
  %v1471 = vadd.f32 %v1469, %v1470
  %v1472 = vsel %vm902, %v1466, 0.0
  %v1473 = vadd.f32 %v1471, %v1472
  %v1474 = vrot.slane %v1473, 4
  %v1475 = vadd.f32 %v1473, %v1474
  %v1476 = vrot.slane %v1475, 2
  %v1477 = vadd.f32 %v1475, %v1476
  %v1478 = vrot.slane %v1477, 1
  %v1479 = vadd.f32 %v1477, %v1478
  %v1480 = vmul.f32 %v1479, %v1457
  %v1481 = vadd.f32 %v1480, 1e-05
  %v1482 = vrsqrt.pop %v1481
  %v1483 = vmul.f32 %v1459, %v1482
  %v1484 = vmul.f32 %v1460, %v1482
  %v1485 = vmul.f32 %v1461, %v1482
  %v1486 = vmul.f32 %v1462, %v1482
  %1488 = vset.pattern.permute.xlu0 0
  %1489 = vperm.xlu0 %1488, %v1436
  %v1490 = vpop.permute.xlu0 %1489
  %1493 = vset.pattern.permute.xlu0 0
  %1494 = vperm.xlu0 %1493, %v1437
  %v1495 = vpop.permute.xlu0 %1494
  %1498 = vset.pattern.permute.xlu0 0
  %1499 = vperm.xlu0 %1498, %v1438
  %v1500 = vpop.permute.xlu0 %1499
  %1503 = vset.pattern.permute.xlu0 0
  %1504 = vperm.xlu0 %1503, %v1439
  %v1505 = vpop.permute.xlu0 %1504
  %v1507 = vmul.f32 %v1483, %v1490
  %v1508 = vmul.f32 %v1484, %v1495
  %v1509 = vmul.f32 %v1485, %v1500
  %v1510 = vmul.f32 %v1486, %v1505
  %1512 = vset.pattern.permute.xlu0 0
  %1513 = vperm.xlu0 %1512, %v1440
  %v1514 = vpop.permute.xlu0 %1513
  %1517 = vset.pattern.permute.xlu0 0
  %1518 = vperm.xlu0 %1517, %v1441
  %v1519 = vpop.permute.xlu0 %1518
  %1522 = vset.pattern.permute.xlu0 0
  %1523 = vperm.xlu0 %1522, %v1442
  %v1524 = vpop.permute.xlu0 %1523
  %1527 = vset.pattern.permute.xlu0 0
  %1528 = vperm.xlu0 %1527, %v1443
  %v1529 = vpop.permute.xlu0 %1528
  %v1531 = vadd.f32 %v1507, %v1514
  %v1532 = vadd.f32 %v1508, %v1519
  %v1533 = vadd.f32 %v1509, %v1524
  %v1534 = vadd.f32 %v1510, %v1529
  %v1535 = vld [vmem:[%s12] sm:$0xff]
  %v1536 = vld [vmem:[%s12 + $0x8] sm:$0xff]
  %v1537 = vld [vmem:[%s12 + $0x10] sm:$0xff]
  %v1538 = vld [vmem:[%s12 + $0x18] sm:$0xff]
  %v1539 = vld [vmem:[%s12 + $0x20] sm:$0xff]
  %v1540 = vld [vmem:[%s12 + $0x28] sm:$0xff]
  %v1541 = vld [vmem:[%s12 + $0x30] sm:$0xff]
  %v1542 = vld [vmem:[%s12 + $0x38] sm:$0xff]
  %v1543 = vld [vmem:[%s13] sm:$0xff]
  %v1544 = vld [vmem:[%s13 + $0x8] sm:$0xff]
  %v1545 = vld [vmem:[%s13 + $0x10] sm:$0xff]
  %v1546 = vld [vmem:[%s13 + $0x18] sm:$0xff]
  %v1547 = vld [vmem:[%s13 + $0x20] sm:$0xff]
  %v1548 = vld [vmem:[%s13 + $0x28] sm:$0xff]
  %v1549 = vld [vmem:[%s13 + $0x30] sm:$0xff]
  %v1550 = vld [vmem:[%s13 + $0x38] sm:$0xff]
  %1552 = vset.pattern.permute.xlu0 0
  %1553 = vperm.xlu0 %1552, %v1543
  %v1554 = vpop.permute.xlu0 %1553
  %1557 = vset.pattern.permute.xlu0 0
  %1558 = vperm.xlu0 %1557, %v1544
  %v1559 = vpop.permute.xlu0 %1558
  %1562 = vset.pattern.permute.xlu0 0
  %1563 = vperm.xlu0 %1562, %v1545
  %v1564 = vpop.permute.xlu0 %1563
  %1567 = vset.pattern.permute.xlu0 0
  %1568 = vperm.xlu0 %1567, %v1546
  %v1569 = vpop.permute.xlu0 %1568
  %1572 = vset.pattern.permute.xlu0 0
  %1573 = vperm.xlu0 %1572, %v1547
  %v1574 = vpop.permute.xlu0 %1573
  %1577 = vset.pattern.permute.xlu0 0
  %1578 = vperm.xlu0 %1577, %v1548
  %v1579 = vpop.permute.xlu0 %1578
  %1582 = vset.pattern.permute.xlu0 0
  %1583 = vperm.xlu0 %1582, %v1549
  %v1584 = vpop.permute.xlu0 %1583
  %1587 = vset.pattern.permute.xlu0 0
  %1588 = vperm.xlu0 %1587, %v1550
  %v1589 = vpop.permute.xlu0 %1588
  %v1592 = vsel %vm101, %v1535, 0
  %v1595 = vsel %vm101, %v1536, 0
  %v1598 = vsel %vm101, %v1537, 0
  %v1601 = vsel %vm101, %v1538, 0
  %v1604 = vsel %vm101, %v1539, 0
  %v1607 = vsel %vm101, %v1540, 0
  %v1610 = vsel %vm101, %v1541, 0
  %v1613 = vsel %vm101, %v1542, 0
  %1615 = vmatprep.subr.mxu0 0.0
  %1616 = vmatpush1.msra.mxu0 %v1531
  %1617 = vmatprep.subr.mxu0 0.0
  %1618 = vmatpush1.msra.mxu0 %v1532
  %1619 = vmatprep.subr.mxu0 0.0
  %1620 = vmatpush1.msra.mxu0 %v1533
  %1621 = vmatprep.subr.mxu0 0.0
  %1622 = vmatpush1.msra.mxu0 %v1534
  %1623 = vmatprep.subr.mxu0 0.0
  %1624 = vmatpush1.msra.mxu0 0.0
  %1625 = vmatprep.subr.mxu0 0.0
  %1626 = vmatpush1.msra.mxu0 0.0
  %1627 = vmatprep.subr.mxu0 0.0
  %1628 = vmatpush1.msra.mxu0 0.0
  %1629 = vmatprep.subr.mxu0 0.0
  %1630 = vmatpush1.msra.mxu0 0.0
  %1631 = vmatprep.subr.mxu0 0.0
  %1632 = vmatpush1.msra.mxu0 0.0
  %1633 = vmatprep.subr.mxu0 0.0
  %1634 = vmatpush1.msra.mxu0 0.0
  %1635 = vmatprep.subr.mxu0 0.0
  %1636 = vmatpush1.msra.mxu0 0.0
  %1637 = vmatprep.subr.mxu0 0.0
  %1638 = vmatpush1.msra.mxu0 0.0
  %1639 = vmatprep.subr.mxu0 0.0
  %1640 = vmatpush1.msra.mxu0 0.0
  %1641 = vmatprep.subr.mxu0 0.0
  %1642 = vmatpush1.msra.mxu0 0.0
  %1643 = vmatprep.subr.mxu0 0.0
  %1644 = vmatpush1.msra.mxu0 0.0
  %1645 = vmatprep.subr.mxu0 0.0
  %1646 = vmatpush1.msra.mxu0 0.0
  %1647 = vmatprep.subr.mxu0 0.0
  %1648 = vmatpush1.msra.mxu0 0.0
  %1649 = vmatprep.subr.mxu0 0.0
  %1650 = vmatpush1.msra.mxu0 0.0
  %1651 = vmatprep.subr.mxu0 0.0
  %1652 = vmatpush1.msra.mxu0 0.0
  %1653 = vmatprep.subr.mxu0 0.0
  %1654 = vmatpush1.msra.mxu0 0.0
  %1655 = vmatprep.subr.mxu0 0.0
  %1656 = vmatpush1.msra.mxu0 0.0
  %1657 = vmatprep.subr.mxu0 0.0
  %1658 = vmatpush1.msra.mxu0 0.0
  %1659 = vmatprep.subr.mxu0 0.0
  %1660 = vmatpush1.msra.mxu0 0.0
  %1661 = vmatprep.subr.mxu0 0.0
  %1662 = vmatpush1.msra.mxu0 0.0
  %1663 = vmatprep.subr.mxu0 0.0
  %1664 = vmatpush1.msra.mxu0 0.0
  %1665 = vmatprep.subr.mxu0 0.0
  %1666 = vmatpush1.msra.mxu0 0.0
  %1667 = vmatprep.subr.mxu0 0.0
  %1668 = vmatpush1.msra.mxu0 0.0
  %1669 = vmatprep.subr.mxu0 0.0
  %1670 = vmatpush1.msra.mxu0 0.0
  %1671 = vmatprep.subr.mxu0 0.0
  %1672 = vmatpush1.msra.mxu0 0.0
  %1673 = vmatprep.subr.mxu0 0.0
  %1674 = vmatpush1.msra.mxu0 0.0
  %1675 = vmatprep.subr.mxu0 0.0
  %1676 = vmatpush1.msra.mxu0 0.0
  %1677 = vmatprep.subr.mxu0 0.0
  %1678 = vmatpush1.msra.mxu0 0.0
  %1679 = vmatprep.mubr.f32.mxu0 0.0
  %1680 = vmatmul.mubr.f32.gmra.mrb[0].mxu0 %v1592
  %v1681 = vpop.f32.mrb[0].mxu0
  %v1682 = vadd.f32 %v1554, %v1681
  %v1683 = vpop.f32.mrb[0].mxu0
  %1684 = vmatprep.mubr.f32.mxu0 0.0
  %1685 = vmatmul.mubr.f32.gmra.mrb[0].mxu0 %v1595
  %v1686 = vpop.f32.mrb[0].mxu0
  %v1687 = vadd.f32 %v1559, %v1686
  %v1688 = vpop.f32.mrb[0].mxu0
  %1689 = vmatprep.mubr.f32.mxu0 0.0
  %1690 = vmatmul.mubr.f32.gmra.mrb[0].mxu0 %v1598
  %v1691 = vpop.f32.mrb[0].mxu0
  %v1692 = vadd.f32 %v1564, %v1691
  %v1693 = vpop.f32.mrb[0].mxu0
  %1694 = vmatprep.mubr.f32.mxu0 0.0
  %1695 = vmatmul.mubr.f32.gmra.mrb[0].mxu0 %v1601
  %v1696 = vpop.f32.mrb[0].mxu0
  %v1697 = vadd.f32 %v1569, %v1696
  %v1698 = vpop.f32.mrb[0].mxu0
  %1699 = vmatprep.mubr.f32.mxu0 0.0
  %1700 = vmatmul.mubr.f32.gmra.mrb[0].mxu0 %v1604
  %v1701 = vpop.f32.mrb[0].mxu0
  %v1702 = vadd.f32 %v1574, %v1701
  %v1703 = vpop.f32.mrb[0].mxu0
  %1704 = vmatprep.mubr.f32.mxu0 0.0
  %1705 = vmatmul.mubr.f32.gmra.mrb[0].mxu0 %v1607
  %v1706 = vpop.f32.mrb[0].mxu0
  %v1707 = vadd.f32 %v1579, %v1706
  %v1708 = vpop.f32.mrb[0].mxu0
  %1709 = vmatprep.mubr.f32.mxu0 0.0
  %1710 = vmatmul.mubr.f32.gmra.mrb[0].mxu0 %v1610
  %v1711 = vpop.f32.mrb[0].mxu0
  %v1712 = vadd.f32 %v1584, %v1711
  %v1713 = vpop.f32.mrb[0].mxu0
  %1714 = vmatprep.mubr.f32.mxu0 0.0
  %1715 = vmatmul.mubr.f32.gmra.mrb[0].mxu0 %v1613
  %v1716 = vpop.f32.mrb[0].mxu0
  %v1717 = vadd.f32 %v1589, %v1716
  %v1718 = vpop.f32.mrb[0].mxu0
  %1719 = vdwg.mxu0
  %v1720 = vmax.f32 %v1682, 0.0
  %v1721 = vmax.f32 %v1687, 0.0
  %v1722 = vmax.f32 %v1692, 0.0
  %v1723 = vmax.f32 %v1697, 0.0
  %v1724 = vmax.f32 %v1702, 0.0
  %v1725 = vmax.f32 %v1707, 0.0
  %v1726 = vmax.f32 %v1712, 0.0
  %v1727 = vmax.f32 %v1717, 0.0
  %v1728 = vld [vmem:[%s14] sm:$0xff]
  %v1729 = vld [vmem:[%s14 + $0x8] sm:$0xff]
  %v1730 = vld [vmem:[%s14 + $0x10] sm:$0xff]
  %v1731 = vld [vmem:[%s14 + $0x18] sm:$0xff]
  %v1732 = vld [vmem:[%s15] sm:$0xff]
  %v1733 = vld [vmem:[%s15 + $0x8] sm:$0xff]
  %v1734 = vld [vmem:[%s15 + $0x10] sm:$0xff]
  %v1735 = vld [vmem:[%s15 + $0x18] sm:$0xff]
  %1737 = vset.pattern.permute.xlu0 0
  %1738 = vperm.xlu0 %1737, %v1732
  %v1739 = vpop.permute.xlu0 %1738
  %1742 = vset.pattern.permute.xlu0 0
  %1743 = vperm.xlu0 %1742, %v1733
  %v1744 = vpop.permute.xlu0 %1743
  %1747 = vset.pattern.permute.xlu0 0
  %1748 = vperm.xlu0 %1747, %v1734
  %v1749 = vpop.permute.xlu0 %1748
  %1752 = vset.pattern.permute.xlu0 0
  %1753 = vperm.xlu0 %1752, %v1735
  %v1754 = vpop.permute.xlu0 %1753
  %vm1756 = vcmask 523264
  %v1758 = vsel %vm1756, %v1728, 0
  %v1761 = vsel %vm1756, %v1729, 0
  %v1764 = vsel %vm1756, %v1730, 0
  %v1767 = vsel %vm1756, %v1731, 0
  %1769 = vmatprep.subr.mxu0 0.0
  %1770 = vmatpush1.msra.mxu0 %v1720
  %1771 = vmatprep.subr.mxu0 0.0
  %1772 = vmatpush1.msra.mxu0 %v1721
  %1773 = vmatprep.subr.mxu0 0.0
  %1774 = vmatpush1.msra.mxu0 %v1722
  %1775 = vmatprep.subr.mxu0 0.0
  %1776 = vmatpush1.msra.mxu0 %v1723
  %1777 = vmatprep.subr.mxu0 0.0
  %1778 = vmatpush1.msra.mxu0 %v1724
  %1779 = vmatprep.subr.mxu0 0.0
  %1780 = vmatpush1.msra.mxu0 %v1725
  %1781 = vmatprep.subr.mxu0 0.0
  %1782 = vmatpush1.msra.mxu0 %v1726
  %1783 = vmatprep.subr.mxu0 0.0
  %1784 = vmatpush1.msra.mxu0 %v1727
  %1785 = vmatprep.subr.mxu0 0.0
  %1786 = vmatpush1.msra.mxu0 0.0
  %1787 = vmatprep.subr.mxu0 0.0
  %1788 = vmatpush1.msra.mxu0 0.0
  %1789 = vmatprep.subr.mxu0 0.0
  %1790 = vmatpush1.msra.mxu0 0.0
  %1791 = vmatprep.subr.mxu0 0.0
  %1792 = vmatpush1.msra.mxu0 0.0
  %1793 = vmatprep.subr.mxu0 0.0
  %1794 = vmatpush1.msra.mxu0 0.0
  %1795 = vmatprep.subr.mxu0 0.0
  %1796 = vmatpush1.msra.mxu0 0.0
  %1797 = vmatprep.subr.mxu0 0.0
  %1798 = vmatpush1.msra.mxu0 0.0
  %1799 = vmatprep.subr.mxu0 0.0
  %1800 = vmatpush1.msra.mxu0 0.0
  %1801 = vmatprep.subr.mxu0 0.0
  %1802 = vmatpush1.msra.mxu0 0.0
  %1803 = vmatprep.subr.mxu0 0.0
  %1804 = vmatpush1.msra.mxu0 0.0
  %1805 = vmatprep.subr.mxu0 0.0
  %1806 = vmatpush1.msra.mxu0 0.0
  %1807 = vmatprep.subr.mxu0 0.0
  %1808 = vmatpush1.msra.mxu0 0.0
  %1809 = vmatprep.subr.mxu0 0.0
  %1810 = vmatpush1.msra.mxu0 0.0
  %1811 = vmatprep.subr.mxu0 0.0
  %1812 = vmatpush1.msra.mxu0 0.0
  %1813 = vmatprep.subr.mxu0 0.0
  %1814 = vmatpush1.msra.mxu0 0.0
  %1815 = vmatprep.subr.mxu0 0.0
  %1816 = vmatpush1.msra.mxu0 0.0
  %1817 = vmatprep.subr.mxu0 0.0
  %1818 = vmatpush1.msra.mxu0 0.0
  %1819 = vmatprep.subr.mxu0 0.0
  %1820 = vmatpush1.msra.mxu0 0.0
  %1821 = vmatprep.subr.mxu0 0.0
  %1822 = vmatpush1.msra.mxu0 0.0
  %1823 = vmatprep.subr.mxu0 0.0
  %1824 = vmatpush1.msra.mxu0 0.0
  %1825 = vmatprep.subr.mxu0 0.0
  %1826 = vmatpush1.msra.mxu0 0.0
  %1827 = vmatprep.subr.mxu0 0.0
  %1828 = vmatpush1.msra.mxu0 0.0
  %1829 = vmatprep.subr.mxu0 0.0
  %1830 = vmatpush1.msra.mxu0 0.0
  %1831 = vmatprep.subr.mxu0 0.0
  %1832 = vmatpush1.msra.mxu0 0.0
  %1833 = vmatprep.mubr.f32.mxu0 0.0
  %1834 = vmatmul.mubr.f32.gmra.mrb[0].mxu0 %v1758
  %v1835 = vpop.f32.mrb[0].mxu0
  %v1836 = vadd.f32 %v1739, %v1835
  %v1837 = vpop.f32.mrb[0].mxu0
  %1838 = vmatprep.mubr.f32.mxu0 0.0
  %1839 = vmatmul.mubr.f32.gmra.mrb[0].mxu0 %v1761
  %v1840 = vpop.f32.mrb[0].mxu0
  %v1841 = vadd.f32 %v1744, %v1840
  %v1842 = vpop.f32.mrb[0].mxu0
  %1843 = vmatprep.mubr.f32.mxu0 0.0
  %1844 = vmatmul.mubr.f32.gmra.mrb[0].mxu0 %v1764
  %v1845 = vpop.f32.mrb[0].mxu0
  %v1846 = vadd.f32 %v1749, %v1845
  %v1847 = vpop.f32.mrb[0].mxu0
  %1848 = vmatprep.mubr.f32.mxu0 0.0
  %1849 = vmatmul.mubr.f32.gmra.mrb[0].mxu0 %v1767
  %v1850 = vpop.f32.mrb[0].mxu0
  %v1851 = vadd.f32 %v1754, %v1850
  %v1852 = vpop.f32.mrb[0].mxu0
  %1853 = vdwg.mxu0
  %v1854 = vadd.f32 %v1531, %v1836
  %v1855 = vadd.f32 %v1532, %v1841
  %v1856 = vadd.f32 %v1533, %v1846
  %v1857 = vadd.f32 %v1534, %v1851
  %v1858 = vld [vmem:[%s16] sm:$0xff]
  %v1859 = vld [vmem:[%s16 + $0x8] sm:$0xff]
  %v1860 = vld [vmem:[%s16 + $0x10] sm:$0xff]
  %v1861 = vld [vmem:[%s16 + $0x18] sm:$0xff]
  %v1862 = vld [vmem:[%s17] sm:$0xff]
  %v1863 = vld [vmem:[%s17 + $0x8] sm:$0xff]
  %v1864 = vld [vmem:[%s17 + $0x10] sm:$0xff]
  %v1865 = vld [vmem:[%s17 + $0x18] sm:$0xff]
  %v1866 = vsel %vm902, %v1854, 0.0
  %v1867 = vsel %vm902, %v1855, 0.0
  %v1868 = vadd.f32 %v1866, %v1867
  %v1869 = vsel %vm902, %v1856, 0.0
  %v1870 = vadd.f32 %v1868, %v1869
  %v1871 = vsel %vm902, %v1857, 0.0
  %v1872 = vadd.f32 %v1870, %v1871
  %v1873 = vrot.slane %v1872, 4
  %v1874 = vadd.f32 %v1872, %v1873
  %v1875 = vrot.slane %v1874, 2
  %v1876 = vadd.f32 %v1874, %v1875
  %v1877 = vrot.slane %v1876, 1
  %v1878 = vadd.f32 %v1876, %v1877
  %v1879 = vmul.f32 %v1878, %v1457
  %v1880 = vsub.f32 %v1854, %v1879
  %v1881 = vsub.f32 %v1855, %v1879
  %v1882 = vsub.f32 %v1856, %v1879
  %v1883 = vsub.f32 %v1857, %v1879
  %v1884 = vmul.f32 %v1880, %v1880
  %v1885 = vmul.f32 %v1881, %v1881
  %v1886 = vmul.f32 %v1882, %v1882
  %v1887 = vmul.f32 %v1883, %v1883
  %v1888 = vsel %vm902, %v1884, 0.0
  %v1889 = vsel %vm902, %v1885, 0.0
  %v1890 = vadd.f32 %v1888, %v1889
  %v1891 = vsel %vm902, %v1886, 0.0
  %v1892 = vadd.f32 %v1890, %v1891
  %v1893 = vsel %vm902, %v1887, 0.0
  %v1894 = vadd.f32 %v1892, %v1893
  %v1895 = vrot.slane %v1894, 4
  %v1896 = vadd.f32 %v1894, %v1895
  %v1897 = vrot.slane %v1896, 2
  %v1898 = vadd.f32 %v1896, %v1897
  %v1899 = vrot.slane %v1898, 1
  %v1900 = vadd.f32 %v1898, %v1899
  %v1901 = vmul.f32 %v1900, %v1457
  %v1902 = vadd.f32 %v1901, 1e-05
  %v1903 = vrsqrt.pop %v1902
  %v1904 = vmul.f32 %v1880, %v1903
  %v1905 = vmul.f32 %v1881, %v1903
  %v1906 = vmul.f32 %v1882, %v1903
  %v1907 = vmul.f32 %v1883, %v1903
  %1909 = vset.pattern.permute.xlu0 0
  %1910 = vperm.xlu0 %1909, %v1858
  %v1911 = vpop.permute.xlu0 %1910
  %1914 = vset.pattern.permute.xlu0 0
  %1915 = vperm.xlu0 %1914, %v1859
  %v1916 = vpop.permute.xlu0 %1915
  %1919 = vset.pattern.permute.xlu0 0
  %1920 = vperm.xlu0 %1919, %v1860
  %v1921 = vpop.permute.xlu0 %1920
  %1924 = vset.pattern.permute.xlu0 0
  %1925 = vperm.xlu0 %1924, %v1861
  %v1926 = vpop.permute.xlu0 %1925
  %v1928 = vmul.f32 %v1904, %v1911
  %v1929 = vmul.f32 %v1905, %v1916
  %v1930 = vmul.f32 %v1906, %v1921
  %v1931 = vmul.f32 %v1907, %v1926
  %1933 = vset.pattern.permute.xlu0 0
  %1934 = vperm.xlu0 %1933, %v1862
  %v1935 = vpop.permute.xlu0 %1934
  %1938 = vset.pattern.permute.xlu0 0
  %1939 = vperm.xlu0 %1938, %v1863
  %v1940 = vpop.permute.xlu0 %1939
  %1943 = vset.pattern.permute.xlu0 0
  %1944 = vperm.xlu0 %1943, %v1864
  %v1945 = vpop.permute.xlu0 %1944
  %1948 = vset.pattern.permute.xlu0 0
  %1949 = vperm.xlu0 %1948, %v1865
  %v1950 = vpop.permute.xlu0 %1949
  %v1952 = vadd.f32 %v1928, %v1935
  %v1953 = vadd.f32 %v1929, %v1940
  %v1954 = vadd.f32 %v1930, %v1945
  %v1955 = vadd.f32 %v1931, %v1950
  %s1956 = scalar_lea.vmem %s2, 32
  %v1957 = vld [vmem:[%s1956] sm:$0xff]
  %v1958 = vld [vmem:[%s1956 + $0x8] sm:$0xff]
  %v1959 = vld [vmem:[%s1956 + $0x10] sm:$0xff]
  %v1960 = vld [vmem:[%s1956 + $0x18] sm:$0xff]
  %s1961 = scalar_lea.vmem %s5, 32
  %v1962 = vld [vmem:[%s1961] sm:$0xff]
  %v1963 = vld [vmem:[%s1961 + $0x8] sm:$0xff]
  %v1964 = vld [vmem:[%s1961 + $0x10] sm:$0xff]
  %v1965 = vld [vmem:[%s1961 + $0x18] sm:$0xff]
  %1967 = vset.pattern.permute.xlu0 0
  %1968 = vperm.xlu0 %1967, %v1962
  %v1969 = vpop.permute.xlu0 %1968
  %1972 = vset.pattern.permute.xlu0 0
  %1973 = vperm.xlu0 %1972, %v1963
  %v1974 = vpop.permute.xlu0 %1973
  %1977 = vset.pattern.permute.xlu0 0
  %1978 = vperm.xlu0 %1977, %v1964
  %v1979 = vpop.permute.xlu0 %1978
  %1982 = vset.pattern.permute.xlu0 0
  %1983 = vperm.xlu0 %1982, %v1965
  %v1984 = vpop.permute.xlu0 %1983
  %v1987 = vsel %vm101, %v1957, 0
  %v1990 = vsel %vm101, %v1958, 0
  %v1993 = vsel %vm101, %v1959, 0
  %v1996 = vsel %vm101, %v1960, 0
  %1998 = vmatprep.subr.mxu0 0.0
  %1999 = vmatpush1.msra.mxu0 %v1952
  %2000 = vmatprep.subr.mxu0 0.0
  %2001 = vmatpush1.msra.mxu0 %v1953
  %2002 = vmatprep.subr.mxu0 0.0
  %2003 = vmatpush1.msra.mxu0 %v1954
  %2004 = vmatprep.subr.mxu0 0.0
  %2005 = vmatpush1.msra.mxu0 %v1955
  %2006 = vmatprep.subr.mxu0 0.0
  %2007 = vmatpush1.msra.mxu0 0.0
  %2008 = vmatprep.subr.mxu0 0.0
  %2009 = vmatpush1.msra.mxu0 0.0
  %2010 = vmatprep.subr.mxu0 0.0
  %2011 = vmatpush1.msra.mxu0 0.0
  %2012 = vmatprep.subr.mxu0 0.0
  %2013 = vmatpush1.msra.mxu0 0.0
  %2014 = vmatprep.subr.mxu0 0.0
  %2015 = vmatpush1.msra.mxu0 0.0
  %2016 = vmatprep.subr.mxu0 0.0
  %2017 = vmatpush1.msra.mxu0 0.0
  %2018 = vmatprep.subr.mxu0 0.0
  %2019 = vmatpush1.msra.mxu0 0.0
  %2020 = vmatprep.subr.mxu0 0.0
  %2021 = vmatpush1.msra.mxu0 0.0
  %2022 = vmatprep.subr.mxu0 0.0
  %2023 = vmatpush1.msra.mxu0 0.0
  %2024 = vmatprep.subr.mxu0 0.0
  %2025 = vmatpush1.msra.mxu0 0.0
  %2026 = vmatprep.subr.mxu0 0.0
  %2027 = vmatpush1.msra.mxu0 0.0
  %2028 = vmatprep.subr.mxu0 0.0
  %2029 = vmatpush1.msra.mxu0 0.0
  %2030 = vmatprep.subr.mxu0 0.0
  %2031 = vmatpush1.msra.mxu0 0.0
  %2032 = vmatprep.subr.mxu0 0.0
  %2033 = vmatpush1.msra.mxu0 0.0
  %2034 = vmatprep.subr.mxu0 0.0
  %2035 = vmatpush1.msra.mxu0 0.0
  %2036 = vmatprep.subr.mxu0 0.0
  %2037 = vmatpush1.msra.mxu0 0.0
  %2038 = vmatprep.subr.mxu0 0.0
  %2039 = vmatpush1.msra.mxu0 0.0
  %2040 = vmatprep.subr.mxu0 0.0
  %2041 = vmatpush1.msra.mxu0 0.0
  %2042 = vmatprep.subr.mxu0 0.0
  %2043 = vmatpush1.msra.mxu0 0.0
  %2044 = vmatprep.subr.mxu0 0.0
  %2045 = vmatpush1.msra.mxu0 0.0
  %2046 = vmatprep.subr.mxu0 0.0
  %2047 = vmatpush1.msra.mxu0 0.0
  %2048 = vmatprep.subr.mxu0 0.0
  %2049 = vmatpush1.msra.mxu0 0.0
  %2050 = vmatprep.subr.mxu0 0.0
  %2051 = vmatpush1.msra.mxu0 0.0
  %2052 = vmatprep.subr.mxu0 0.0
  %2053 = vmatpush1.msra.mxu0 0.0
  %2054 = vmatprep.subr.mxu0 0.0
  %2055 = vmatpush1.msra.mxu0 0.0
  %2056 = vmatprep.subr.mxu0 0.0
  %2057 = vmatpush1.msra.mxu0 0.0
  %2058 = vmatprep.subr.mxu0 0.0
  %2059 = vmatpush1.msra.mxu0 0.0
  %2060 = vmatprep.subr.mxu0 0.0
  %2061 = vmatpush1.msra.mxu0 0.0
  %2062 = vmatprep.mubr.f32.mxu0 0.0
  %2063 = vmatmul.mubr.f32.gmra.mrb[0].mxu0 %v1987
  %v2064 = vpop.f32.mrb[0].mxu0
  %v2065 = vadd.f32 %v1969, %v2064
  %v2066 = vpop.f32.mrb[0].mxu0
  %2067 = vmatprep.mubr.f32.mxu0 0.0
  %2068 = vmatmul.mubr.f32.gmra.mrb[0].mxu0 %v1990
  %v2069 = vpop.f32.mrb[0].mxu0
  %v2070 = vadd.f32 %v1974, %v2069
  %v2071 = vpop.f32.mrb[0].mxu0
  %2072 = vmatprep.mubr.f32.mxu0 0.0
  %2073 = vmatmul.mubr.f32.gmra.mrb[0].mxu0 %v1993
  %v2074 = vpop.f32.mrb[0].mxu0
  %v2075 = vadd.f32 %v1979, %v2074
  %v2076 = vpop.f32.mrb[0].mxu0
  %2077 = vmatprep.mubr.f32.mxu0 0.0
  %2078 = vmatmul.mubr.f32.gmra.mrb[0].mxu0 %v1996
  %v2079 = vpop.f32.mrb[0].mxu0
  %v2080 = vadd.f32 %v1984, %v2079
  %v2081 = vpop.f32.mrb[0].mxu0
  %2082 = vdwg.mxu0
  %s2083 = scalar_lea.vmem %s3, 32
  %v2084 = vld [vmem:[%s2083] sm:$0xff]
  %v2085 = vld [vmem:[%s2083 + $0x8] sm:$0xff]
  %v2086 = vld [vmem:[%s2083 + $0x10] sm:$0xff]
  %v2087 = vld [vmem:[%s2083 + $0x18] sm:$0xff]
  %s2088 = scalar_lea.vmem %s6, 32
  %v2089 = vld [vmem:[%s2088] sm:$0xff]
  %v2090 = vld [vmem:[%s2088 + $0x8] sm:$0xff]
  %v2091 = vld [vmem:[%s2088 + $0x10] sm:$0xff]
  %v2092 = vld [vmem:[%s2088 + $0x18] sm:$0xff]
  %2094 = vset.pattern.permute.xlu0 0
  %2095 = vperm.xlu0 %2094, %v2089
  %v2096 = vpop.permute.xlu0 %2095
  %2099 = vset.pattern.permute.xlu0 0
  %2100 = vperm.xlu0 %2099, %v2090
  %v2101 = vpop.permute.xlu0 %2100
  %2104 = vset.pattern.permute.xlu0 0
  %2105 = vperm.xlu0 %2104, %v2091
  %v2106 = vpop.permute.xlu0 %2105
  %2109 = vset.pattern.permute.xlu0 0
  %2110 = vperm.xlu0 %2109, %v2092
  %v2111 = vpop.permute.xlu0 %2110
  %v2114 = vsel %vm101, %v2084, 0
  %v2117 = vsel %vm101, %v2085, 0
  %v2120 = vsel %vm101, %v2086, 0
  %v2123 = vsel %vm101, %v2087, 0
  %2125 = vmatprep.subr.mxu0 0.0
  %2126 = vmatpush1.msra.mxu0 %v1952
  %2127 = vmatprep.subr.mxu0 0.0
  %2128 = vmatpush1.msra.mxu0 %v1953
  %2129 = vmatprep.subr.mxu0 0.0
  %2130 = vmatpush1.msra.mxu0 %v1954
  %2131 = vmatprep.subr.mxu0 0.0
  %2132 = vmatpush1.msra.mxu0 %v1955
  %2133 = vmatprep.subr.mxu0 0.0
  %2134 = vmatpush1.msra.mxu0 0.0
  %2135 = vmatprep.subr.mxu0 0.0
  %2136 = vmatpush1.msra.mxu0 0.0
  %2137 = vmatprep.subr.mxu0 0.0
  %2138 = vmatpush1.msra.mxu0 0.0
  %2139 = vmatprep.subr.mxu0 0.0
  %2140 = vmatpush1.msra.mxu0 0.0
  %2141 = vmatprep.subr.mxu0 0.0
  %2142 = vmatpush1.msra.mxu0 0.0
  %2143 = vmatprep.subr.mxu0 0.0
  %2144 = vmatpush1.msra.mxu0 0.0
  %2145 = vmatprep.subr.mxu0 0.0
  %2146 = vmatpush1.msra.mxu0 0.0
  %2147 = vmatprep.subr.mxu0 0.0
  %2148 = vmatpush1.msra.mxu0 0.0
  %2149 = vmatprep.subr.mxu0 0.0
  %2150 = vmatpush1.msra.mxu0 0.0
  %2151 = vmatprep.subr.mxu0 0.0
  %2152 = vmatpush1.msra.mxu0 0.0
  %2153 = vmatprep.subr.mxu0 0.0
  %2154 = vmatpush1.msra.mxu0 0.0
  %2155 = vmatprep.subr.mxu0 0.0
  %2156 = vmatpush1.msra.mxu0 0.0
  %2157 = vmatprep.subr.mxu0 0.0
  %2158 = vmatpush1.msra.mxu0 0.0
  %2159 = vmatprep.subr.mxu0 0.0
  %2160 = vmatpush1.msra.mxu0 0.0
  %2161 = vmatprep.subr.mxu0 0.0
  %2162 = vmatpush1.msra.mxu0 0.0
  %2163 = vmatprep.subr.mxu0 0.0
  %2164 = vmatpush1.msra.mxu0 0.0
  %2165 = vmatprep.subr.mxu0 0.0
  %2166 = vmatpush1.msra.mxu0 0.0
  %2167 = vmatprep.subr.mxu0 0.0
  %2168 = vmatpush1.msra.mxu0 0.0
  %2169 = vmatprep.subr.mxu0 0.0
  %2170 = vmatpush1.msra.mxu0 0.0
  %2171 = vmatprep.subr.mxu0 0.0
  %2172 = vmatpush1.msra.mxu0 0.0
  %2173 = vmatprep.subr.mxu0 0.0
  %2174 = vmatpush1.msra.mxu0 0.0
  %2175 = vmatprep.subr.mxu0 0.0
  %2176 = vmatpush1.msra.mxu0 0.0
  %2177 = vmatprep.subr.mxu0 0.0
  %2178 = vmatpush1.msra.mxu0 0.0
  %2179 = vmatprep.subr.mxu0 0.0
  %2180 = vmatpush1.msra.mxu0 0.0
  %2181 = vmatprep.subr.mxu0 0.0
  %2182 = vmatpush1.msra.mxu0 0.0
  %2183 = vmatprep.subr.mxu0 0.0
  %2184 = vmatpush1.msra.mxu0 0.0
  %2185 = vmatprep.subr.mxu0 0.0
  %2186 = vmatpush1.msra.mxu0 0.0
  %2187 = vmatprep.subr.mxu0 0.0
  %2188 = vmatpush1.msra.mxu0 0.0
  %2189 = vmatprep.mubr.f32.mxu0 0.0
  %2190 = vmatmul.mubr.f32.gmra.mrb[0].mxu0 %v2114
  %v2191 = vpop.f32.mrb[0].mxu0
  %v2192 = vadd.f32 %v2096, %v2191
  %v2193 = vpop.f32.mrb[0].mxu0
  %2194 = vmatprep.mubr.f32.mxu0 0.0
  %2195 = vmatmul.mubr.f32.gmra.mrb[0].mxu0 %v2117
  %v2196 = vpop.f32.mrb[0].mxu0
  %v2197 = vadd.f32 %v2101, %v2196
  %v2198 = vpop.f32.mrb[0].mxu0
  %2199 = vmatprep.mubr.f32.mxu0 0.0
  %2200 = vmatmul.mubr.f32.gmra.mrb[0].mxu0 %v2120
  %v2201 = vpop.f32.mrb[0].mxu0
  %v2202 = vadd.f32 %v2106, %v2201
  %v2203 = vpop.f32.mrb[0].mxu0
  %2204 = vmatprep.mubr.f32.mxu0 0.0
  %2205 = vmatmul.mubr.f32.gmra.mrb[0].mxu0 %v2123
  %v2206 = vpop.f32.mrb[0].mxu0
  %v2207 = vadd.f32 %v2111, %v2206
  %v2208 = vpop.f32.mrb[0].mxu0
  %2209 = vdwg.mxu0
  %s2210 = scalar_lea.vmem %s4, 32
  %v2211 = vld [vmem:[%s2210] sm:$0xff]
  %v2212 = vld [vmem:[%s2210 + $0x8] sm:$0xff]
  %v2213 = vld [vmem:[%s2210 + $0x10] sm:$0xff]
  %v2214 = vld [vmem:[%s2210 + $0x18] sm:$0xff]
  %s2215 = scalar_lea.vmem %s7, 32
  %v2216 = vld [vmem:[%s2215] sm:$0xff]
  %v2217 = vld [vmem:[%s2215 + $0x8] sm:$0xff]
  %v2218 = vld [vmem:[%s2215 + $0x10] sm:$0xff]
  %v2219 = vld [vmem:[%s2215 + $0x18] sm:$0xff]
  %2221 = vset.pattern.permute.xlu0 0
  %2222 = vperm.xlu0 %2221, %v2216
  %v2223 = vpop.permute.xlu0 %2222
  %2226 = vset.pattern.permute.xlu0 0
  %2227 = vperm.xlu0 %2226, %v2217
  %v2228 = vpop.permute.xlu0 %2227
  %2231 = vset.pattern.permute.xlu0 0
  %2232 = vperm.xlu0 %2231, %v2218
  %v2233 = vpop.permute.xlu0 %2232
  %2236 = vset.pattern.permute.xlu0 0
  %2237 = vperm.xlu0 %2236, %v2219
  %v2238 = vpop.permute.xlu0 %2237
  %v2241 = vsel %vm101, %v2211, 0
  %v2244 = vsel %vm101, %v2212, 0
  %v2247 = vsel %vm101, %v2213, 0
  %v2250 = vsel %vm101, %v2214, 0
  %2252 = vmatprep.subr.mxu0 0.0
  %2253 = vmatpush1.msra.mxu0 %v1952
  %2254 = vmatprep.subr.mxu0 0.0
  %2255 = vmatpush1.msra.mxu0 %v1953
  %2256 = vmatprep.subr.mxu0 0.0
  %2257 = vmatpush1.msra.mxu0 %v1954
  %2258 = vmatprep.subr.mxu0 0.0
  %2259 = vmatpush1.msra.mxu0 %v1955
  %2260 = vmatprep.subr.mxu0 0.0
  %2261 = vmatpush1.msra.mxu0 0.0
  %2262 = vmatprep.subr.mxu0 0.0
  %2263 = vmatpush1.msra.mxu0 0.0
  %2264 = vmatprep.subr.mxu0 0.0
  %2265 = vmatpush1.msra.mxu0 0.0
  %2266 = vmatprep.subr.mxu0 0.0
  %2267 = vmatpush1.msra.mxu0 0.0
  %2268 = vmatprep.subr.mxu0 0.0
  %2269 = vmatpush1.msra.mxu0 0.0
  %2270 = vmatprep.subr.mxu0 0.0
  %2271 = vmatpush1.msra.mxu0 0.0
  %2272 = vmatprep.subr.mxu0 0.0
  %2273 = vmatpush1.msra.mxu0 0.0
  %2274 = vmatprep.subr.mxu0 0.0
  %2275 = vmatpush1.msra.mxu0 0.0
  %2276 = vmatprep.subr.mxu0 0.0
  %2277 = vmatpush1.msra.mxu0 0.0
  %2278 = vmatprep.subr.mxu0 0.0
  %2279 = vmatpush1.msra.mxu0 0.0
  %2280 = vmatprep.subr.mxu0 0.0
  %2281 = vmatpush1.msra.mxu0 0.0
  %2282 = vmatprep.subr.mxu0 0.0
  %2283 = vmatpush1.msra.mxu0 0.0
  %2284 = vmatprep.subr.mxu0 0.0
  %2285 = vmatpush1.msra.mxu0 0.0
  %2286 = vmatprep.subr.mxu0 0.0
  %2287 = vmatpush1.msra.mxu0 0.0
  %2288 = vmatprep.subr.mxu0 0.0
  %2289 = vmatpush1.msra.mxu0 0.0
  %2290 = vmatprep.subr.mxu0 0.0
  %2291 = vmatpush1.msra.mxu0 0.0
  %2292 = vmatprep.subr.mxu0 0.0
  %2293 = vmatpush1.msra.mxu0 0.0
  %2294 = vmatprep.subr.mxu0 0.0
  %2295 = vmatpush1.msra.mxu0 0.0
  %2296 = vmatprep.subr.mxu0 0.0
  %2297 = vmatpush1.msra.mxu0 0.0
  %2298 = vmatprep.subr.mxu0 0.0
  %2299 = vmatpush1.msra.mxu0 0.0
  %2300 = vmatprep.subr.mxu0 0.0
  %2301 = vmatpush1.msra.mxu0 0.0
  %2302 = vmatprep.subr.mxu0 0.0
  %2303 = vmatpush1.msra.mxu0 0.0
  %2304 = vmatprep.subr.mxu0 0.0
  %2305 = vmatpush1.msra.mxu0 0.0
  %2306 = vmatprep.subr.mxu0 0.0
  %2307 = vmatpush1.msra.mxu0 0.0
  %2308 = vmatprep.subr.mxu0 0.0
  %2309 = vmatpush1.msra.mxu0 0.0
  %2310 = vmatprep.subr.mxu0 0.0
  %2311 = vmatpush1.msra.mxu0 0.0
  %2312 = vmatprep.subr.mxu0 0.0
  %2313 = vmatpush1.msra.mxu0 0.0
  %2314 = vmatprep.subr.mxu0 0.0
  %2315 = vmatpush1.msra.mxu0 0.0
  %2316 = vmatprep.mubr.f32.mxu0 0.0
  %2317 = vmatmul.mubr.f32.gmra.mrb[0].mxu0 %v2241
  %v2318 = vpop.f32.mrb[0].mxu0
  %v2319 = vadd.f32 %v2223, %v2318
  %v2320 = vpop.f32.mrb[0].mxu0
  %2321 = vmatprep.mubr.f32.mxu0 0.0
  %2322 = vmatmul.mubr.f32.gmra.mrb[0].mxu0 %v2244
  %v2323 = vpop.f32.mrb[0].mxu0
  %v2324 = vadd.f32 %v2228, %v2323
  %v2325 = vpop.f32.mrb[0].mxu0
  %2326 = vmatprep.mubr.f32.mxu0 0.0
  %2327 = vmatmul.mubr.f32.gmra.mrb[0].mxu0 %v2247
  %v2328 = vpop.f32.mrb[0].mxu0
  %v2329 = vadd.f32 %v2233, %v2328
  %v2330 = vpop.f32.mrb[0].mxu0
  %2331 = vmatprep.mubr.f32.mxu0 0.0
  %2332 = vmatmul.mubr.f32.gmra.mrb[0].mxu0 %v2250
  %v2333 = vpop.f32.mrb[0].mxu0
  %v2334 = vadd.f32 %v2238, %v2333
  %v2335 = vpop.f32.mrb[0].mxu0
  %2336 = vdwg.mxu0
  %2337 = vxpose.xlu0.b32.start [1/16] %v2065, 128
  %2338 = vxpose.xlu0.b32.cont [2/16] 0.0, 128
  %2339 = vxpose.xlu0.b32.cont [3/16] 0.0, 128
  %2340 = vxpose.xlu0.b32.cont [4/16] 0.0, 128
  %2341 = vxpose.xlu0.b32.cont [5/16] 0.0, 128
  %2342 = vxpose.xlu0.b32.cont [6/16] 0.0, 128
  %2343 = vxpose.xlu0.b32.cont [7/16] 0.0, 128
  %2344 = vxpose.xlu0.b32.cont [8/16] 0.0, 128
  %2345 = vxpose.xlu0.b32.cont [9/16] 0.0, 128
  %2346 = vxpose.xlu0.b32.cont [10/16] 0.0, 128
  %2347 = vxpose.xlu0.b32.cont [11/16] 0.0, 128
  %2348 = vxpose.xlu0.b32.cont [12/16] 0.0, 128
  %2349 = vxpose.xlu0.b32.cont [13/16] 0.0, 128
  %2350 = vxpose.xlu0.b32.cont [14/16] 0.0, 128
  %2351 = vxpose.xlu0.b32.cont [15/16] 0.0, 128
  %2352 = vxpose.xlu0.b32.end [16/16] 0.0, 128
  %v2353 = vpop.trf.xlu0
  %v2354 = vpop.trf.xlu0
  %v2355 = vpop.trf.xlu0
  %v2356 = vpop.trf.xlu0
  %v2357 = vpop.trf.xlu0
  %v2358 = vpop.trf.xlu0
  %v2359 = vpop.trf.xlu0
  %v2360 = vpop.trf.xlu0
  %v2361 = vpop.trf.xlu0
  %v2362 = vpop.trf.xlu0
  %v2363 = vpop.trf.xlu0
  %v2364 = vpop.trf.xlu0
  %v2365 = vpop.trf.xlu0
  %v2366 = vpop.trf.xlu0
  %v2367 = vpop.trf.xlu0
  %v2368 = vpop.trf.xlu0
  %2369 = vxpose.xlu0.b32.start [1/16] %v2070, 128
  %2370 = vxpose.xlu0.b32.cont [2/16] 0.0, 128
  %2371 = vxpose.xlu0.b32.cont [3/16] 0.0, 128
  %2372 = vxpose.xlu0.b32.cont [4/16] 0.0, 128
  %2373 = vxpose.xlu0.b32.cont [5/16] 0.0, 128
  %2374 = vxpose.xlu0.b32.cont [6/16] 0.0, 128
  %2375 = vxpose.xlu0.b32.cont [7/16] 0.0, 128
  %2376 = vxpose.xlu0.b32.cont [8/16] 0.0, 128
  %2377 = vxpose.xlu0.b32.cont [9/16] 0.0, 128
  %2378 = vxpose.xlu0.b32.cont [10/16] 0.0, 128
  %2379 = vxpose.xlu0.b32.cont [11/16] 0.0, 128
  %2380 = vxpose.xlu0.b32.cont [12/16] 0.0, 128
  %2381 = vxpose.xlu0.b32.cont [13/16] 0.0, 128
  %2382 = vxpose.xlu0.b32.cont [14/16] 0.0, 128
  %2383 = vxpose.xlu0.b32.cont [15/16] 0.0, 128
  %2384 = vxpose.xlu0.b32.end [16/16] 0.0, 128
  %v2385 = vpop.trf.xlu0
  %v2386 = vpop.trf.xlu0
  %v2387 = vpop.trf.xlu0
  %v2388 = vpop.trf.xlu0
  %v2389 = vpop.trf.xlu0
  %v2390 = vpop.trf.xlu0
  %v2391 = vpop.trf.xlu0
  %v2392 = vpop.trf.xlu0
  %v2393 = vpop.trf.xlu0
  %v2394 = vpop.trf.xlu0
  %v2395 = vpop.trf.xlu0
  %v2396 = vpop.trf.xlu0
  %v2397 = vpop.trf.xlu0
  %v2398 = vpop.trf.xlu0
  %v2399 = vpop.trf.xlu0
  %v2400 = vpop.trf.xlu0
  %2401 = vxpose.xlu0.b32.start [1/16] %v2075, 128
  %2402 = vxpose.xlu0.b32.cont [2/16] 0.0, 128
  %2403 = vxpose.xlu0.b32.cont [3/16] 0.0, 128
  %2404 = vxpose.xlu0.b32.cont [4/16] 0.0, 128
  %2405 = vxpose.xlu0.b32.cont [5/16] 0.0, 128
  %2406 = vxpose.xlu0.b32.cont [6/16] 0.0, 128
  %2407 = vxpose.xlu0.b32.cont [7/16] 0.0, 128
  %2408 = vxpose.xlu0.b32.cont [8/16] 0.0, 128
  %2409 = vxpose.xlu0.b32.cont [9/16] 0.0, 128
  %2410 = vxpose.xlu0.b32.cont [10/16] 0.0, 128
  %2411 = vxpose.xlu0.b32.cont [11/16] 0.0, 128
  %2412 = vxpose.xlu0.b32.cont [12/16] 0.0, 128
  %2413 = vxpose.xlu0.b32.cont [13/16] 0.0, 128
  %2414 = vxpose.xlu0.b32.cont [14/16] 0.0, 128
  %2415 = vxpose.xlu0.b32.cont [15/16] 0.0, 128
  %2416 = vxpose.xlu0.b32.end [16/16] 0.0, 128
  %v2417 = vpop.trf.xlu0
  %v2418 = vpop.trf.xlu0
  %v2419 = vpop.trf.xlu0
  %v2420 = vpop.trf.xlu0
  %v2421 = vpop.trf.xlu0
  %v2422 = vpop.trf.xlu0
  %v2423 = vpop.trf.xlu0
  %v2424 = vpop.trf.xlu0
  %v2425 = vpop.trf.xlu0
  %v2426 = vpop.trf.xlu0
  %v2427 = vpop.trf.xlu0
  %v2428 = vpop.trf.xlu0
  %v2429 = vpop.trf.xlu0
  %v2430 = vpop.trf.xlu0
  %v2431 = vpop.trf.xlu0
  %v2432 = vpop.trf.xlu0
  %2433 = vxpose.xlu0.b32.start [1/16] %v2080, 128
  %2434 = vxpose.xlu0.b32.cont [2/16] 0.0, 128
  %2435 = vxpose.xlu0.b32.cont [3/16] 0.0, 128
  %2436 = vxpose.xlu0.b32.cont [4/16] 0.0, 128
  %2437 = vxpose.xlu0.b32.cont [5/16] 0.0, 128
  %2438 = vxpose.xlu0.b32.cont [6/16] 0.0, 128
  %2439 = vxpose.xlu0.b32.cont [7/16] 0.0, 128
  %2440 = vxpose.xlu0.b32.cont [8/16] 0.0, 128
  %2441 = vxpose.xlu0.b32.cont [9/16] 0.0, 128
  %2442 = vxpose.xlu0.b32.cont [10/16] 0.0, 128
  %2443 = vxpose.xlu0.b32.cont [11/16] 0.0, 128
  %2444 = vxpose.xlu0.b32.cont [12/16] 0.0, 128
  %2445 = vxpose.xlu0.b32.cont [13/16] 0.0, 128
  %2446 = vxpose.xlu0.b32.cont [14/16] 0.0, 128
  %2447 = vxpose.xlu0.b32.cont [15/16] 0.0, 128
  %2448 = vxpose.xlu0.b32.end [16/16] 0.0, 128
  %v2449 = vpop.trf.xlu0
  %v2450 = vpop.trf.xlu0
  %v2451 = vpop.trf.xlu0
  %v2452 = vpop.trf.xlu0
  %v2453 = vpop.trf.xlu0
  %v2454 = vpop.trf.xlu0
  %v2455 = vpop.trf.xlu0
  %v2456 = vpop.trf.xlu0
  %v2457 = vpop.trf.xlu0
  %v2458 = vpop.trf.xlu0
  %v2459 = vpop.trf.xlu0
  %v2460 = vpop.trf.xlu0
  %v2461 = vpop.trf.xlu0
  %v2462 = vpop.trf.xlu0
  %v2463 = vpop.trf.xlu0
  %v2464 = vpop.trf.xlu0
  %v2466 = vsel %vm577, %v2353, 0
  %v2469 = vsel %vm577, %v2354, 0
  %2471 = vmatprep.subr.mxu0 0.0
  %2472 = vmatpush1.msra.mxu0 %v2192
  %2473 = vmatprep.subr.mxu0 0.0
  %2474 = vmatpush1.msra.mxu0 0.0
  %2475 = vmatprep.subr.mxu0 0.0
  %2476 = vmatpush1.msra.mxu0 0.0
  %2477 = vmatprep.subr.mxu0 0.0
  %2478 = vmatpush1.msra.mxu0 0.0
  %2479 = vmatprep.subr.mxu0 0.0
  %2480 = vmatpush1.msra.mxu0 0.0
  %2481 = vmatprep.subr.mxu0 0.0
  %2482 = vmatpush1.msra.mxu0 0.0
  %2483 = vmatprep.subr.mxu0 0.0
  %2484 = vmatpush1.msra.mxu0 0.0
  %2485 = vmatprep.subr.mxu0 0.0
  %2486 = vmatpush1.msra.mxu0 0.0
  %2487 = vmatprep.subr.mxu0 0.0
  %2488 = vmatpush1.msra.mxu0 0.0
  %2489 = vmatprep.subr.mxu0 0.0
  %2490 = vmatpush1.msra.mxu0 0.0
  %2491 = vmatprep.subr.mxu0 0.0
  %2492 = vmatpush1.msra.mxu0 0.0
  %2493 = vmatprep.subr.mxu0 0.0
  %2494 = vmatpush1.msra.mxu0 0.0
  %2495 = vmatprep.subr.mxu0 0.0
  %2496 = vmatpush1.msra.mxu0 0.0
  %2497 = vmatprep.subr.mxu0 0.0
  %2498 = vmatpush1.msra.mxu0 0.0
  %2499 = vmatprep.subr.mxu0 0.0
  %2500 = vmatpush1.msra.mxu0 0.0
  %2501 = vmatprep.subr.mxu0 0.0
  %2502 = vmatpush1.msra.mxu0 0.0
  %2503 = vmatprep.subr.mxu0 0.0
  %2504 = vmatpush1.msra.mxu0 0.0
  %2505 = vmatprep.subr.mxu0 0.0
  %2506 = vmatpush1.msra.mxu0 0.0
  %2507 = vmatprep.subr.mxu0 0.0
  %2508 = vmatpush1.msra.mxu0 0.0
  %2509 = vmatprep.subr.mxu0 0.0
  %2510 = vmatpush1.msra.mxu0 0.0
  %2511 = vmatprep.subr.mxu0 0.0
  %2512 = vmatpush1.msra.mxu0 0.0
  %2513 = vmatprep.subr.mxu0 0.0
  %2514 = vmatpush1.msra.mxu0 0.0
  %2515 = vmatprep.subr.mxu0 0.0
  %2516 = vmatpush1.msra.mxu0 0.0
  %2517 = vmatprep.subr.mxu0 0.0
  %2518 = vmatpush1.msra.mxu0 0.0
  %2519 = vmatprep.subr.mxu0 0.0
  %2520 = vmatpush1.msra.mxu0 0.0
  %2521 = vmatprep.subr.mxu0 0.0
  %2522 = vmatpush1.msra.mxu0 0.0
  %2523 = vmatprep.subr.mxu0 0.0
  %2524 = vmatpush1.msra.mxu0 0.0
  %2525 = vmatprep.subr.mxu0 0.0
  %2526 = vmatpush1.msra.mxu0 0.0
  %2527 = vmatprep.subr.mxu0 0.0
  %2528 = vmatpush1.msra.mxu0 0.0
  %2529 = vmatprep.subr.mxu0 0.0
  %2530 = vmatpush1.msra.mxu0 0.0
  %2531 = vmatprep.subr.mxu0 0.0
  %2532 = vmatpush1.msra.mxu0 0.0
  %2533 = vmatprep.subr.mxu0 0.0
  %2534 = vmatpush1.msra.mxu0 0.0
  %2535 = vmatprep.mubr.f32.mxu0 0.0
  %2536 = vmatmul.mubr.f32.gmra.mrb[0].mxu0 %v2466
  %v2537 = vpop.f32.mrb[0].mxu0
  %v2538 = vadd.f32 %v71, %v2537
  %v2539 = vpop.f32.mrb[0].mxu0
  %2540 = vmatprep.mubr.f32.mxu0 0.0
  %2541 = vmatmul.mubr.f32.gmra.mrb[0].mxu0 %v2469
  %v2542 = vpop.f32.mrb[0].mxu0
  %v2543 = vadd.f32 %v72, %v2542
  %v2544 = vpop.f32.mrb[0].mxu0
  %2545 = vdwg.mxu0
  %v2547 = vsel %vm577, %v2385, 0
  %v2550 = vsel %vm577, %v2386, 0
  %2552 = vmatprep.subr.mxu0 0.0
  %2553 = vmatpush1.msra.mxu0 %v2197
  %2554 = vmatprep.subr.mxu0 0.0
  %2555 = vmatpush1.msra.mxu0 0.0
  %2556 = vmatprep.subr.mxu0 0.0
  %2557 = vmatpush1.msra.mxu0 0.0
  %2558 = vmatprep.subr.mxu0 0.0
  %2559 = vmatpush1.msra.mxu0 0.0
  %2560 = vmatprep.subr.mxu0 0.0
  %2561 = vmatpush1.msra.mxu0 0.0
  %2562 = vmatprep.subr.mxu0 0.0
  %2563 = vmatpush1.msra.mxu0 0.0
  %2564 = vmatprep.subr.mxu0 0.0
  %2565 = vmatpush1.msra.mxu0 0.0
  %2566 = vmatprep.subr.mxu0 0.0
  %2567 = vmatpush1.msra.mxu0 0.0
  %2568 = vmatprep.subr.mxu0 0.0
  %2569 = vmatpush1.msra.mxu0 0.0
  %2570 = vmatprep.subr.mxu0 0.0
  %2571 = vmatpush1.msra.mxu0 0.0
  %2572 = vmatprep.subr.mxu0 0.0
  %2573 = vmatpush1.msra.mxu0 0.0
  %2574 = vmatprep.subr.mxu0 0.0
  %2575 = vmatpush1.msra.mxu0 0.0
  %2576 = vmatprep.subr.mxu0 0.0
  %2577 = vmatpush1.msra.mxu0 0.0
  %2578 = vmatprep.subr.mxu0 0.0
  %2579 = vmatpush1.msra.mxu0 0.0
  %2580 = vmatprep.subr.mxu0 0.0
  %2581 = vmatpush1.msra.mxu0 0.0
  %2582 = vmatprep.subr.mxu0 0.0
  %2583 = vmatpush1.msra.mxu0 0.0
  %2584 = vmatprep.subr.mxu0 0.0
  %2585 = vmatpush1.msra.mxu0 0.0
  %2586 = vmatprep.subr.mxu0 0.0
  %2587 = vmatpush1.msra.mxu0 0.0
  %2588 = vmatprep.subr.mxu0 0.0
  %2589 = vmatpush1.msra.mxu0 0.0
  %2590 = vmatprep.subr.mxu0 0.0
  %2591 = vmatpush1.msra.mxu0 0.0
  %2592 = vmatprep.subr.mxu0 0.0
  %2593 = vmatpush1.msra.mxu0 0.0
  %2594 = vmatprep.subr.mxu0 0.0
  %2595 = vmatpush1.msra.mxu0 0.0
  %2596 = vmatprep.subr.mxu0 0.0
  %2597 = vmatpush1.msra.mxu0 0.0
  %2598 = vmatprep.subr.mxu0 0.0
  %2599 = vmatpush1.msra.mxu0 0.0
  %2600 = vmatprep.subr.mxu0 0.0
  %2601 = vmatpush1.msra.mxu0 0.0
  %2602 = vmatprep.subr.mxu0 0.0
  %2603 = vmatpush1.msra.mxu0 0.0
  %2604 = vmatprep.subr.mxu0 0.0
  %2605 = vmatpush1.msra.mxu0 0.0
  %2606 = vmatprep.subr.mxu0 0.0
  %2607 = vmatpush1.msra.mxu0 0.0
  %2608 = vmatprep.subr.mxu0 0.0
  %2609 = vmatpush1.msra.mxu0 0.0
  %2610 = vmatprep.subr.mxu0 0.0
  %2611 = vmatpush1.msra.mxu0 0.0
  %2612 = vmatprep.subr.mxu0 0.0
  %2613 = vmatpush1.msra.mxu0 0.0
  %2614 = vmatprep.subr.mxu0 0.0
  %2615 = vmatpush1.msra.mxu0 0.0
  %2616 = vmatprep.mubr.f32.mxu0 0.0
  %2617 = vmatmul.mubr.f32.gmra.mrb[0].mxu0 %v2547
  %v2618 = vpop.f32.mrb[0].mxu0
  %v2619 = vadd.f32 %v71, %v2618
  %v2620 = vpop.f32.mrb[0].mxu0
  %2621 = vmatprep.mubr.f32.mxu0 0.0
  %2622 = vmatmul.mubr.f32.gmra.mrb[0].mxu0 %v2550
  %v2623 = vpop.f32.mrb[0].mxu0
  %v2624 = vadd.f32 %v72, %v2623
  %v2625 = vpop.f32.mrb[0].mxu0
  %2626 = vdwg.mxu0
  %v2628 = vsel %vm577, %v2417, 0
  %v2631 = vsel %vm577, %v2418, 0
  %2633 = vmatprep.subr.mxu0 0.0
  %2634 = vmatpush1.msra.mxu0 %v2202
  %2635 = vmatprep.subr.mxu0 0.0
  %2636 = vmatpush1.msra.mxu0 0.0
  %2637 = vmatprep.subr.mxu0 0.0
  %2638 = vmatpush1.msra.mxu0 0.0
  %2639 = vmatprep.subr.mxu0 0.0
  %2640 = vmatpush1.msra.mxu0 0.0
  %2641 = vmatprep.subr.mxu0 0.0
  %2642 = vmatpush1.msra.mxu0 0.0
  %2643 = vmatprep.subr.mxu0 0.0
  %2644 = vmatpush1.msra.mxu0 0.0
  %2645 = vmatprep.subr.mxu0 0.0
  %2646 = vmatpush1.msra.mxu0 0.0
  %2647 = vmatprep.subr.mxu0 0.0
  %2648 = vmatpush1.msra.mxu0 0.0
  %2649 = vmatprep.subr.mxu0 0.0
  %2650 = vmatpush1.msra.mxu0 0.0
  %2651 = vmatprep.subr.mxu0 0.0
  %2652 = vmatpush1.msra.mxu0 0.0
  %2653 = vmatprep.subr.mxu0 0.0
  %2654 = vmatpush1.msra.mxu0 0.0
  %2655 = vmatprep.subr.mxu0 0.0
  %2656 = vmatpush1.msra.mxu0 0.0
  %2657 = vmatprep.subr.mxu0 0.0
  %2658 = vmatpush1.msra.mxu0 0.0
  %2659 = vmatprep.subr.mxu0 0.0
  %2660 = vmatpush1.msra.mxu0 0.0
  %2661 = vmatprep.subr.mxu0 0.0
  %2662 = vmatpush1.msra.mxu0 0.0
  %2663 = vmatprep.subr.mxu0 0.0
  %2664 = vmatpush1.msra.mxu0 0.0
  %2665 = vmatprep.subr.mxu0 0.0
  %2666 = vmatpush1.msra.mxu0 0.0
  %2667 = vmatprep.subr.mxu0 0.0
  %2668 = vmatpush1.msra.mxu0 0.0
  %2669 = vmatprep.subr.mxu0 0.0
  %2670 = vmatpush1.msra.mxu0 0.0
  %2671 = vmatprep.subr.mxu0 0.0
  %2672 = vmatpush1.msra.mxu0 0.0
  %2673 = vmatprep.subr.mxu0 0.0
  %2674 = vmatpush1.msra.mxu0 0.0
  %2675 = vmatprep.subr.mxu0 0.0
  %2676 = vmatpush1.msra.mxu0 0.0
  %2677 = vmatprep.subr.mxu0 0.0
  %2678 = vmatpush1.msra.mxu0 0.0
  %2679 = vmatprep.subr.mxu0 0.0
  %2680 = vmatpush1.msra.mxu0 0.0
  %2681 = vmatprep.subr.mxu0 0.0
  %2682 = vmatpush1.msra.mxu0 0.0
  %2683 = vmatprep.subr.mxu0 0.0
  %2684 = vmatpush1.msra.mxu0 0.0
  %2685 = vmatprep.subr.mxu0 0.0
  %2686 = vmatpush1.msra.mxu0 0.0
  %2687 = vmatprep.subr.mxu0 0.0
  %2688 = vmatpush1.msra.mxu0 0.0
  %2689 = vmatprep.subr.mxu0 0.0
  %2690 = vmatpush1.msra.mxu0 0.0
  %2691 = vmatprep.subr.mxu0 0.0
  %2692 = vmatpush1.msra.mxu0 0.0
  %2693 = vmatprep.subr.mxu0 0.0
  %2694 = vmatpush1.msra.mxu0 0.0
  %2695 = vmatprep.subr.mxu0 0.0
  %2696 = vmatpush1.msra.mxu0 0.0
  %2697 = vmatprep.mubr.f32.mxu0 0.0
  %2698 = vmatmul.mubr.f32.gmra.mrb[0].mxu0 %v2628
  %v2699 = vpop.f32.mrb[0].mxu0
  %v2700 = vadd.f32 %v71, %v2699
  %v2701 = vpop.f32.mrb[0].mxu0
  %2702 = vmatprep.mubr.f32.mxu0 0.0
  %2703 = vmatmul.mubr.f32.gmra.mrb[0].mxu0 %v2631
  %v2704 = vpop.f32.mrb[0].mxu0
  %v2705 = vadd.f32 %v72, %v2704
  %v2706 = vpop.f32.mrb[0].mxu0
  %2707 = vdwg.mxu0
  %v2709 = vsel %vm577, %v2449, 0
  %v2712 = vsel %vm577, %v2450, 0
  %2714 = vmatprep.subr.mxu0 0.0
  %2715 = vmatpush1.msra.mxu0 %v2207
  %2716 = vmatprep.subr.mxu0 0.0
  %2717 = vmatpush1.msra.mxu0 0.0
  %2718 = vmatprep.subr.mxu0 0.0
  %2719 = vmatpush1.msra.mxu0 0.0
  %2720 = vmatprep.subr.mxu0 0.0
  %2721 = vmatpush1.msra.mxu0 0.0
  %2722 = vmatprep.subr.mxu0 0.0
  %2723 = vmatpush1.msra.mxu0 0.0
  %2724 = vmatprep.subr.mxu0 0.0
  %2725 = vmatpush1.msra.mxu0 0.0
  %2726 = vmatprep.subr.mxu0 0.0
  %2727 = vmatpush1.msra.mxu0 0.0
  %2728 = vmatprep.subr.mxu0 0.0
  %2729 = vmatpush1.msra.mxu0 0.0
  %2730 = vmatprep.subr.mxu0 0.0
  %2731 = vmatpush1.msra.mxu0 0.0
  %2732 = vmatprep.subr.mxu0 0.0
  %2733 = vmatpush1.msra.mxu0 0.0
  %2734 = vmatprep.subr.mxu0 0.0
  %2735 = vmatpush1.msra.mxu0 0.0
  %2736 = vmatprep.subr.mxu0 0.0
  %2737 = vmatpush1.msra.mxu0 0.0
  %2738 = vmatprep.subr.mxu0 0.0
  %2739 = vmatpush1.msra.mxu0 0.0
  %2740 = vmatprep.subr.mxu0 0.0
  %2741 = vmatpush1.msra.mxu0 0.0
  %2742 = vmatprep.subr.mxu0 0.0
  %2743 = vmatpush1.msra.mxu0 0.0
  %2744 = vmatprep.subr.mxu0 0.0
  %2745 = vmatpush1.msra.mxu0 0.0
  %2746 = vmatprep.subr.mxu0 0.0
  %2747 = vmatpush1.msra.mxu0 0.0
  %2748 = vmatprep.subr.mxu0 0.0
  %2749 = vmatpush1.msra.mxu0 0.0
  %2750 = vmatprep.subr.mxu0 0.0
  %2751 = vmatpush1.msra.mxu0 0.0
  %2752 = vmatprep.subr.mxu0 0.0
  %2753 = vmatpush1.msra.mxu0 0.0
  %2754 = vmatprep.subr.mxu0 0.0
  %2755 = vmatpush1.msra.mxu0 0.0
  %2756 = vmatprep.subr.mxu0 0.0
  %2757 = vmatpush1.msra.mxu0 0.0
  %2758 = vmatprep.subr.mxu0 0.0
  %2759 = vmatpush1.msra.mxu0 0.0
  %2760 = vmatprep.subr.mxu0 0.0
  %2761 = vmatpush1.msra.mxu0 0.0
  %2762 = vmatprep.subr.mxu0 0.0
  %2763 = vmatpush1.msra.mxu0 0.0
  %2764 = vmatprep.subr.mxu0 0.0
  %2765 = vmatpush1.msra.mxu0 0.0
  %2766 = vmatprep.subr.mxu0 0.0
  %2767 = vmatpush1.msra.mxu0 0.0
  %2768 = vmatprep.subr.mxu0 0.0
  %2769 = vmatpush1.msra.mxu0 0.0
  %2770 = vmatprep.subr.mxu0 0.0
  %2771 = vmatpush1.msra.mxu0 0.0
  %2772 = vmatprep.subr.mxu0 0.0
  %2773 = vmatpush1.msra.mxu0 0.0
  %2774 = vmatprep.subr.mxu0 0.0
  %2775 = vmatpush1.msra.mxu0 0.0
  %2776 = vmatprep.subr.mxu0 0.0
  %2777 = vmatpush1.msra.mxu0 0.0
  %2778 = vmatprep.mubr.f32.mxu0 0.0
  %2779 = vmatmul.mubr.f32.gmra.mrb[0].mxu0 %v2709
  %v2780 = vpop.f32.mrb[0].mxu0
  %v2781 = vadd.f32 %v71, %v2780
  %v2782 = vpop.f32.mrb[0].mxu0
  %2783 = vmatprep.mubr.f32.mxu0 0.0
  %2784 = vmatmul.mubr.f32.gmra.mrb[0].mxu0 %v2712
  %v2785 = vpop.f32.mrb[0].mxu0
  %v2786 = vadd.f32 %v72, %v2785
  %v2787 = vpop.f32.mrb[0].mxu0
  %2788 = vdwg.mxu0
  %v2789 = vsel %vm902, %v2538, -inf
  %2790 = vmax.xlane.f32.xlu0 %v2789
  %v2791 = vpop.xlane.xlu0 %2790
  %v2792 = vsel %vm902, %v2543, -inf
  %2793 = vmax.xlane.f32.xlu0 %v2792
  %v2794 = vpop.xlane.xlu0 %2793
  %v2795 = vsel %vm902, %v2619, -inf
  %2796 = vmax.xlane.f32.xlu0 %v2795
  %v2797 = vpop.xlane.xlu0 %2796
  %v2798 = vsel %vm902, %v2624, -inf
  %2799 = vmax.xlane.f32.xlu0 %v2798
  %v2800 = vpop.xlane.xlu0 %2799
  %v2801 = vsel %vm902, %v2700, -inf
  %2802 = vmax.xlane.f32.xlu0 %v2801
  %v2803 = vpop.xlane.xlu0 %2802
  %v2804 = vsel %vm902, %v2705, -inf
  %2805 = vmax.xlane.f32.xlu0 %v2804
  %v2806 = vpop.xlane.xlu0 %2805
  %v2807 = vsel %vm902, %v2781, -inf
  %2808 = vmax.xlane.f32.xlu0 %v2807
  %v2809 = vpop.xlane.xlu0 %2808
  %v2810 = vsel %vm902, %v2786, -inf
  %2811 = vmax.xlane.f32.xlu0 %v2810
  %v2812 = vpop.xlane.xlu0 %2811
  %v2813 = vsub.f32 %v2538, %v2791
  %v2814 = vsub.f32 %v2543, %v2794
  %v2815 = vsub.f32 %v2619, %v2797
  %v2816 = vsub.f32 %v2624, %v2800
  %v2817 = vsub.f32 %v2700, %v2803
  %v2818 = vsub.f32 %v2705, %v2806
  %v2819 = vsub.f32 %v2781, %v2809
  %v2820 = vsub.f32 %v2786, %v2812
  %v2821 = vmul.f32 %v2813, 1.442695
  %v2822 = vpow.pop %v2821
  %v2823 = vmul.f32 %v2814, 1.442695
  %v2824 = vpow.pop %v2823
  %v2825 = vmul.f32 %v2815, 1.442695
  %v2826 = vpow.pop %v2825
  %v2827 = vmul.f32 %v2816, 1.442695
  %v2828 = vpow.pop %v2827
  %v2829 = vmul.f32 %v2817, 1.442695
  %v2830 = vpow.pop %v2829
  %v2831 = vmul.f32 %v2818, 1.442695
  %v2832 = vpow.pop %v2831
  %v2833 = vmul.f32 %v2819, 1.442695
  %v2834 = vpow.pop %v2833
  %v2835 = vmul.f32 %v2820, 1.442695
  %v2836 = vpow.pop %v2835
  %v2837 = vsel %vm902, %v2822, 0.0
  %2838 = vadd.xlane.f32.xlu0 %v2837
  %v2839 = vpop.xlane.xlu0 %2838
  %v2840 = vsel %vm902, %v2824, 0.0
  %2841 = vadd.xlane.f32.xlu0 %v2840
  %v2842 = vpop.xlane.xlu0 %2841
  %v2843 = vsel %vm902, %v2826, 0.0
  %2844 = vadd.xlane.f32.xlu0 %v2843
  %v2845 = vpop.xlane.xlu0 %2844
  %v2846 = vsel %vm902, %v2828, 0.0
  %2847 = vadd.xlane.f32.xlu0 %v2846
  %v2848 = vpop.xlane.xlu0 %2847
  %v2849 = vsel %vm902, %v2830, 0.0
  %2850 = vadd.xlane.f32.xlu0 %v2849
  %v2851 = vpop.xlane.xlu0 %2850
  %v2852 = vsel %vm902, %v2832, 0.0
  %2853 = vadd.xlane.f32.xlu0 %v2852
  %v2854 = vpop.xlane.xlu0 %2853
  %v2855 = vsel %vm902, %v2834, 0.0
  %2856 = vadd.xlane.f32.xlu0 %v2855
  %v2857 = vpop.xlane.xlu0 %2856
  %v2858 = vsel %vm902, %v2836, 0.0
  %2859 = vadd.xlane.f32.xlu0 %v2858
  %v2860 = vpop.xlane.xlu0 %2859
  %v2861 = vrcp.pop %v2839
  %v2862 = vrcp.pop %v2842
  %v2863 = vrcp.pop %v2845
  %v2864 = vrcp.pop %v2848
  %v2865 = vrcp.pop %v2851
  %v2866 = vrcp.pop %v2854
  %v2867 = vrcp.pop %v2857
  %v2868 = vrcp.pop %v2860
  %v2869 = vmul.f32 %v2822, %v2861
  %v2870 = vmul.f32 %v2824, %v2862
  %v2871 = vmul.f32 %v2826, %v2863
  %v2872 = vmul.f32 %v2828, %v2864
  %v2873 = vmul.f32 %v2830, %v2865
  %v2874 = vmul.f32 %v2832, %v2866
  %v2875 = vmul.f32 %v2834, %v2867
  %v2876 = vmul.f32 %v2836, %v2868
  %v2878 = vsel %vm902, %v2319, 0
  %v2881 = vsel %vm902, %v2869, 0
  %v2884 = vsel %vm902, %v2870, 0
  %2886 = vmatprep.subr.mxu0 0.0
  %2887 = vmatpush1.xpose.msra.mxu0 %v2881
  %2888 = vmatprep.subr.mxu0 0.0
  %2889 = vmatpush1.xpose.msra.mxu0 %v2884
  %2890 = vmatprep.subr.mxu0 0.0
  %2891 = vmatpush1.xpose.msra.mxu0 0.0
  %2892 = vmatprep.subr.mxu0 0.0
  %2893 = vmatpush1.xpose.msra.mxu0 0.0
  %2894 = vmatprep.subr.mxu0 0.0
  %2895 = vmatpush1.xpose.msra.mxu0 0.0
  %2896 = vmatprep.subr.mxu0 0.0
  %2897 = vmatpush1.xpose.msra.mxu0 0.0
  %2898 = vmatprep.subr.mxu0 0.0
  %2899 = vmatpush1.xpose.msra.mxu0 0.0
  %2900 = vmatprep.subr.mxu0 0.0
  %2901 = vmatpush1.xpose.msra.mxu0 0.0
  %2902 = vmatprep.subr.mxu0 0.0
  %2903 = vmatpush1.xpose.msra.mxu0 0.0
  %2904 = vmatprep.subr.mxu0 0.0
  %2905 = vmatpush1.xpose.msra.mxu0 0.0
  %2906 = vmatprep.subr.mxu0 0.0
  %2907 = vmatpush1.xpose.msra.mxu0 0.0
  %2908 = vmatprep.subr.mxu0 0.0
  %2909 = vmatpush1.xpose.msra.mxu0 0.0
  %2910 = vmatprep.subr.mxu0 0.0
  %2911 = vmatpush1.xpose.msra.mxu0 0.0
  %2912 = vmatprep.subr.mxu0 0.0
  %2913 = vmatpush1.xpose.msra.mxu0 0.0
  %2914 = vmatprep.subr.mxu0 0.0
  %2915 = vmatpush1.xpose.msra.mxu0 0.0
  %2916 = vmatprep.subr.mxu0 0.0
  %2917 = vmatpush1.xpose.msra.mxu0 0.0
  %2918 = vmatprep.subr.mxu0 0.0
  %2919 = vmatpush1.xpose.msra.mxu0 0.0
  %2920 = vmatprep.subr.mxu0 0.0
  %2921 = vmatpush1.xpose.msra.mxu0 0.0
  %2922 = vmatprep.subr.mxu0 0.0
  %2923 = vmatpush1.xpose.msra.mxu0 0.0
  %2924 = vmatprep.subr.mxu0 0.0
  %2925 = vmatpush1.xpose.msra.mxu0 0.0
  %2926 = vmatprep.subr.mxu0 0.0
  %2927 = vmatpush1.xpose.msra.mxu0 0.0
  %2928 = vmatprep.subr.mxu0 0.0
  %2929 = vmatpush1.xpose.msra.mxu0 0.0
  %2930 = vmatprep.subr.mxu0 0.0
  %2931 = vmatpush1.xpose.msra.mxu0 0.0
  %2932 = vmatprep.subr.mxu0 0.0
  %2933 = vmatpush1.xpose.msra.mxu0 0.0
  %2934 = vmatprep.subr.mxu0 0.0
  %2935 = vmatpush1.xpose.msra.mxu0 0.0
  %2936 = vmatprep.subr.mxu0 0.0
  %2937 = vmatpush1.xpose.msra.mxu0 0.0
  %2938 = vmatprep.subr.mxu0 0.0
  %2939 = vmatpush1.xpose.msra.mxu0 0.0
  %2940 = vmatprep.subr.mxu0 0.0
  %2941 = vmatpush1.xpose.msra.mxu0 0.0
  %2942 = vmatprep.subr.mxu0 0.0
  %2943 = vmatpush1.xpose.msra.mxu0 0.0
  %2944 = vmatprep.subr.mxu0 0.0
  %2945 = vmatpush1.xpose.msra.mxu0 0.0
  %2946 = vmatprep.subr.mxu0 0.0
  %2947 = vmatpush1.xpose.msra.mxu0 0.0
  %2948 = vmatprep.subr.mxu0 0.0
  %2949 = vmatpush1.xpose.msra.mxu0 0.0
  %2950 = vmatprep.mubr.f32.mxu0 0.0
  %2951 = vmatmul.mubr.f32.gmra.mrb[0].mxu0 %v2878
  %v2952 = vpop.f32.mrb[0].mxu0
  %v2953 = vadd.f32 0.0, %v2952
  %v2954 = vpop.f32.mrb[0].mxu0
  %2955 = vdwg.mxu0
  %v2957 = vsel %vm902, %v2324, 0
  %v2960 = vsel %vm902, %v2871, 0
  %v2963 = vsel %vm902, %v2872, 0
  %2965 = vmatprep.subr.mxu0 0.0
  %2966 = vmatpush1.xpose.msra.mxu0 %v2960
  %2967 = vmatprep.subr.mxu0 0.0
  %2968 = vmatpush1.xpose.msra.mxu0 %v2963
  %2969 = vmatprep.subr.mxu0 0.0
  %2970 = vmatpush1.xpose.msra.mxu0 0.0
  %2971 = vmatprep.subr.mxu0 0.0
  %2972 = vmatpush1.xpose.msra.mxu0 0.0
  %2973 = vmatprep.subr.mxu0 0.0
  %2974 = vmatpush1.xpose.msra.mxu0 0.0
  %2975 = vmatprep.subr.mxu0 0.0
  %2976 = vmatpush1.xpose.msra.mxu0 0.0
  %2977 = vmatprep.subr.mxu0 0.0
  %2978 = vmatpush1.xpose.msra.mxu0 0.0
  %2979 = vmatprep.subr.mxu0 0.0
  %2980 = vmatpush1.xpose.msra.mxu0 0.0
  %2981 = vmatprep.subr.mxu0 0.0
  %2982 = vmatpush1.xpose.msra.mxu0 0.0
  %2983 = vmatprep.subr.mxu0 0.0
  %2984 = vmatpush1.xpose.msra.mxu0 0.0
  %2985 = vmatprep.subr.mxu0 0.0
  %2986 = vmatpush1.xpose.msra.mxu0 0.0
  %2987 = vmatprep.subr.mxu0 0.0
  %2988 = vmatpush1.xpose.msra.mxu0 0.0
  %2989 = vmatprep.subr.mxu0 0.0
  %2990 = vmatpush1.xpose.msra.mxu0 0.0
  %2991 = vmatprep.subr.mxu0 0.0
  %2992 = vmatpush1.xpose.msra.mxu0 0.0
  %2993 = vmatprep.subr.mxu0 0.0
  %2994 = vmatpush1.xpose.msra.mxu0 0.0
  %2995 = vmatprep.subr.mxu0 0.0
  %2996 = vmatpush1.xpose.msra.mxu0 0.0
  %2997 = vmatprep.subr.mxu0 0.0
  %2998 = vmatpush1.xpose.msra.mxu0 0.0
  %2999 = vmatprep.subr.mxu0 0.0
  %3000 = vmatpush1.xpose.msra.mxu0 0.0
  %3001 = vmatprep.subr.mxu0 0.0
  %3002 = vmatpush1.xpose.msra.mxu0 0.0
  %3003 = vmatprep.subr.mxu0 0.0
  %3004 = vmatpush1.xpose.msra.mxu0 0.0
  %3005 = vmatprep.subr.mxu0 0.0
  %3006 = vmatpush1.xpose.msra.mxu0 0.0
  %3007 = vmatprep.subr.mxu0 0.0
  %3008 = vmatpush1.xpose.msra.mxu0 0.0
  %3009 = vmatprep.subr.mxu0 0.0
  %3010 = vmatpush1.xpose.msra.mxu0 0.0
  %3011 = vmatprep.subr.mxu0 0.0
  %3012 = vmatpush1.xpose.msra.mxu0 0.0
  %3013 = vmatprep.subr.mxu0 0.0
  %3014 = vmatpush1.xpose.msra.mxu0 0.0
  %3015 = vmatprep.subr.mxu0 0.0
  %3016 = vmatpush1.xpose.msra.mxu0 0.0
  %3017 = vmatprep.subr.mxu0 0.0
  %3018 = vmatpush1.xpose.msra.mxu0 0.0
  %3019 = vmatprep.subr.mxu0 0.0
  %3020 = vmatpush1.xpose.msra.mxu0 0.0
  %3021 = vmatprep.subr.mxu0 0.0
  %3022 = vmatpush1.xpose.msra.mxu0 0.0
  %3023 = vmatprep.subr.mxu0 0.0
  %3024 = vmatpush1.xpose.msra.mxu0 0.0
  %3025 = vmatprep.subr.mxu0 0.0
  %3026 = vmatpush1.xpose.msra.mxu0 0.0
  %3027 = vmatprep.subr.mxu0 0.0
  %3028 = vmatpush1.xpose.msra.mxu0 0.0
  %3029 = vmatprep.mubr.f32.mxu0 0.0
  %3030 = vmatmul.mubr.f32.gmra.mrb[0].mxu0 %v2957
  %v3031 = vpop.f32.mrb[0].mxu0
  %v3032 = vadd.f32 0.0, %v3031
  %v3033 = vpop.f32.mrb[0].mxu0
  %3034 = vdwg.mxu0
  %v3036 = vsel %vm902, %v2329, 0
  %v3039 = vsel %vm902, %v2873, 0
  %v3042 = vsel %vm902, %v2874, 0
  %3044 = vmatprep.subr.mxu0 0.0
  %3045 = vmatpush1.xpose.msra.mxu0 %v3039
  %3046 = vmatprep.subr.mxu0 0.0
  %3047 = vmatpush1.xpose.msra.mxu0 %v3042
  %3048 = vmatprep.subr.mxu0 0.0
  %3049 = vmatpush1.xpose.msra.mxu0 0.0
  %3050 = vmatprep.subr.mxu0 0.0
  %3051 = vmatpush1.xpose.msra.mxu0 0.0
  %3052 = vmatprep.subr.mxu0 0.0
  %3053 = vmatpush1.xpose.msra.mxu0 0.0
  %3054 = vmatprep.subr.mxu0 0.0
  %3055 = vmatpush1.xpose.msra.mxu0 0.0
  %3056 = vmatprep.subr.mxu0 0.0
  %3057 = vmatpush1.xpose.msra.mxu0 0.0
  %3058 = vmatprep.subr.mxu0 0.0
  %3059 = vmatpush1.xpose.msra.mxu0 0.0
  %3060 = vmatprep.subr.mxu0 0.0
  %3061 = vmatpush1.xpose.msra.mxu0 0.0
  %3062 = vmatprep.subr.mxu0 0.0
  %3063 = vmatpush1.xpose.msra.mxu0 0.0
  %3064 = vmatprep.subr.mxu0 0.0
  %3065 = vmatpush1.xpose.msra.mxu0 0.0
  %3066 = vmatprep.subr.mxu0 0.0
  %3067 = vmatpush1.xpose.msra.mxu0 0.0
  %3068 = vmatprep.subr.mxu0 0.0
  %3069 = vmatpush1.xpose.msra.mxu0 0.0
  %3070 = vmatprep.subr.mxu0 0.0
  %3071 = vmatpush1.xpose.msra.mxu0 0.0
  %3072 = vmatprep.subr.mxu0 0.0
  %3073 = vmatpush1.xpose.msra.mxu0 0.0
  %3074 = vmatprep.subr.mxu0 0.0
  %3075 = vmatpush1.xpose.msra.mxu0 0.0
  %3076 = vmatprep.subr.mxu0 0.0
  %3077 = vmatpush1.xpose.msra.mxu0 0.0
  %3078 = vmatprep.subr.mxu0 0.0
  %3079 = vmatpush1.xpose.msra.mxu0 0.0
  %3080 = vmatprep.subr.mxu0 0.0
  %3081 = vmatpush1.xpose.msra.mxu0 0.0
  %3082 = vmatprep.subr.mxu0 0.0
  %3083 = vmatpush1.xpose.msra.mxu0 0.0
  %3084 = vmatprep.subr.mxu0 0.0
  %3085 = vmatpush1.xpose.msra.mxu0 0.0
  %3086 = vmatprep.subr.mxu0 0.0
  %3087 = vmatpush1.xpose.msra.mxu0 0.0
  %3088 = vmatprep.subr.mxu0 0.0
  %3089 = vmatpush1.xpose.msra.mxu0 0.0
  %3090 = vmatprep.subr.mxu0 0.0
  %3091 = vmatpush1.xpose.msra.mxu0 0.0
  %3092 = vmatprep.subr.mxu0 0.0
  %3093 = vmatpush1.xpose.msra.mxu0 0.0
  %3094 = vmatprep.subr.mxu0 0.0
  %3095 = vmatpush1.xpose.msra.mxu0 0.0
  %3096 = vmatprep.subr.mxu0 0.0
  %3097 = vmatpush1.xpose.msra.mxu0 0.0
  %3098 = vmatprep.subr.mxu0 0.0
  %3099 = vmatpush1.xpose.msra.mxu0 0.0
  %3100 = vmatprep.subr.mxu0 0.0
  %3101 = vmatpush1.xpose.msra.mxu0 0.0
  %3102 = vmatprep.subr.mxu0 0.0
  %3103 = vmatpush1.xpose.msra.mxu0 0.0
  %3104 = vmatprep.subr.mxu0 0.0
  %3105 = vmatpush1.xpose.msra.mxu0 0.0
  %3106 = vmatprep.subr.mxu0 0.0
  %3107 = vmatpush1.xpose.msra.mxu0 0.0
  %3108 = vmatprep.mubr.f32.mxu0 0.0
  %3109 = vmatmul.mubr.f32.gmra.mrb[0].mxu0 %v3036
  %v3110 = vpop.f32.mrb[0].mxu0
  %v3111 = vadd.f32 0.0, %v3110
  %v3112 = vpop.f32.mrb[0].mxu0
  %3113 = vdwg.mxu0
  %v3115 = vsel %vm902, %v2334, 0
  %v3118 = vsel %vm902, %v2875, 0
  %v3121 = vsel %vm902, %v2876, 0
  %3123 = vmatprep.subr.mxu0 0.0
  %3124 = vmatpush1.xpose.msra.mxu0 %v3118
  %3125 = vmatprep.subr.mxu0 0.0
  %3126 = vmatpush1.xpose.msra.mxu0 %v3121
  %3127 = vmatprep.subr.mxu0 0.0
  %3128 = vmatpush1.xpose.msra.mxu0 0.0
  %3129 = vmatprep.subr.mxu0 0.0
  %3130 = vmatpush1.xpose.msra.mxu0 0.0
  %3131 = vmatprep.subr.mxu0 0.0
  %3132 = vmatpush1.xpose.msra.mxu0 0.0
  %3133 = vmatprep.subr.mxu0 0.0
  %3134 = vmatpush1.xpose.msra.mxu0 0.0
  %3135 = vmatprep.subr.mxu0 0.0
  %3136 = vmatpush1.xpose.msra.mxu0 0.0
  %3137 = vmatprep.subr.mxu0 0.0
  %3138 = vmatpush1.xpose.msra.mxu0 0.0
  %3139 = vmatprep.subr.mxu0 0.0
  %3140 = vmatpush1.xpose.msra.mxu0 0.0
  %3141 = vmatprep.subr.mxu0 0.0
  %3142 = vmatpush1.xpose.msra.mxu0 0.0
  %3143 = vmatprep.subr.mxu0 0.0
  %3144 = vmatpush1.xpose.msra.mxu0 0.0
  %3145 = vmatprep.subr.mxu0 0.0
  %3146 = vmatpush1.xpose.msra.mxu0 0.0
  %3147 = vmatprep.subr.mxu0 0.0
  %3148 = vmatpush1.xpose.msra.mxu0 0.0
  %3149 = vmatprep.subr.mxu0 0.0
  %3150 = vmatpush1.xpose.msra.mxu0 0.0
  %3151 = vmatprep.subr.mxu0 0.0
  %3152 = vmatpush1.xpose.msra.mxu0 0.0
  %3153 = vmatprep.subr.mxu0 0.0
  %3154 = vmatpush1.xpose.msra.mxu0 0.0
  %3155 = vmatprep.subr.mxu0 0.0
  %3156 = vmatpush1.xpose.msra.mxu0 0.0
  %3157 = vmatprep.subr.mxu0 0.0
  %3158 = vmatpush1.xpose.msra.mxu0 0.0
  %3159 = vmatprep.subr.mxu0 0.0
  %3160 = vmatpush1.xpose.msra.mxu0 0.0
  %3161 = vmatprep.subr.mxu0 0.0
  %3162 = vmatpush1.xpose.msra.mxu0 0.0
  %3163 = vmatprep.subr.mxu0 0.0
  %3164 = vmatpush1.xpose.msra.mxu0 0.0
  %3165 = vmatprep.subr.mxu0 0.0
  %3166 = vmatpush1.xpose.msra.mxu0 0.0
  %3167 = vmatprep.subr.mxu0 0.0
  %3168 = vmatpush1.xpose.msra.mxu0 0.0
  %3169 = vmatprep.subr.mxu0 0.0
  %3170 = vmatpush1.xpose.msra.mxu0 0.0
  %3171 = vmatprep.subr.mxu0 0.0
  %3172 = vmatpush1.xpose.msra.mxu0 0.0
  %3173 = vmatprep.subr.mxu0 0.0
  %3174 = vmatpush1.xpose.msra.mxu0 0.0
  %3175 = vmatprep.subr.mxu0 0.0
  %3176 = vmatpush1.xpose.msra.mxu0 0.0
  %3177 = vmatprep.subr.mxu0 0.0
  %3178 = vmatpush1.xpose.msra.mxu0 0.0
  %3179 = vmatprep.subr.mxu0 0.0
  %3180 = vmatpush1.xpose.msra.mxu0 0.0
  %3181 = vmatprep.subr.mxu0 0.0
  %3182 = vmatpush1.xpose.msra.mxu0 0.0
  %3183 = vmatprep.subr.mxu0 0.0
  %3184 = vmatpush1.xpose.msra.mxu0 0.0
  %3185 = vmatprep.subr.mxu0 0.0
  %3186 = vmatpush1.xpose.msra.mxu0 0.0
  %3187 = vmatprep.mubr.f32.mxu0 0.0
  %3188 = vmatmul.mubr.f32.gmra.mrb[0].mxu0 %v3115
  %v3189 = vpop.f32.mrb[0].mxu0
  %v3190 = vadd.f32 0.0, %v3189
  %v3191 = vpop.f32.mrb[0].mxu0
  %3192 = vdwg.mxu0
  %s3193 = scalar_lea.vmem %s8, 32
  %v3194 = vld [vmem:[%s3193] sm:$0xff]
  %v3195 = vld [vmem:[%s3193 + $0x8] sm:$0xff]
  %v3196 = vld [vmem:[%s3193 + $0x10] sm:$0xff]
  %v3197 = vld [vmem:[%s3193 + $0x18] sm:$0xff]
  %s3198 = scalar_lea.vmem %s9, 32
  %v3199 = vld [vmem:[%s3198] sm:$0xff]
  %v3200 = vld [vmem:[%s3198 + $0x8] sm:$0xff]
  %v3201 = vld [vmem:[%s3198 + $0x10] sm:$0xff]
  %v3202 = vld [vmem:[%s3198 + $0x18] sm:$0xff]
  %3204 = vset.pattern.permute.xlu0 0
  %3205 = vperm.xlu0 %3204, %v3199
  %v3206 = vpop.permute.xlu0 %3205
  %3209 = vset.pattern.permute.xlu0 0
  %3210 = vperm.xlu0 %3209, %v3200
  %v3211 = vpop.permute.xlu0 %3210
  %3214 = vset.pattern.permute.xlu0 0
  %3215 = vperm.xlu0 %3214, %v3201
  %v3216 = vpop.permute.xlu0 %3215
  %3219 = vset.pattern.permute.xlu0 0
  %3220 = vperm.xlu0 %3219, %v3202
  %v3221 = vpop.permute.xlu0 %3220
  %v3224 = vsel %vm101, %v3194, 0
  %v3227 = vsel %vm101, %v3195, 0
  %v3230 = vsel %vm101, %v3196, 0
  %v3233 = vsel %vm101, %v3197, 0
  %3235 = vmatprep.subr.mxu0 0.0
  %3236 = vmatpush1.msra.mxu0 %v2953
  %3237 = vmatprep.subr.mxu0 0.0
  %3238 = vmatpush1.msra.mxu0 %v3032
  %3239 = vmatprep.subr.mxu0 0.0
  %3240 = vmatpush1.msra.mxu0 %v3111
  %3241 = vmatprep.subr.mxu0 0.0
  %3242 = vmatpush1.msra.mxu0 %v3190
  %3243 = vmatprep.subr.mxu0 0.0
  %3244 = vmatpush1.msra.mxu0 0.0
  %3245 = vmatprep.subr.mxu0 0.0
  %3246 = vmatpush1.msra.mxu0 0.0
  %3247 = vmatprep.subr.mxu0 0.0
  %3248 = vmatpush1.msra.mxu0 0.0
  %3249 = vmatprep.subr.mxu0 0.0
  %3250 = vmatpush1.msra.mxu0 0.0
  %3251 = vmatprep.subr.mxu0 0.0
  %3252 = vmatpush1.msra.mxu0 0.0
  %3253 = vmatprep.subr.mxu0 0.0
  %3254 = vmatpush1.msra.mxu0 0.0
  %3255 = vmatprep.subr.mxu0 0.0
  %3256 = vmatpush1.msra.mxu0 0.0
  %3257 = vmatprep.subr.mxu0 0.0
  %3258 = vmatpush1.msra.mxu0 0.0
  %3259 = vmatprep.subr.mxu0 0.0
  %3260 = vmatpush1.msra.mxu0 0.0
  %3261 = vmatprep.subr.mxu0 0.0
  %3262 = vmatpush1.msra.mxu0 0.0
  %3263 = vmatprep.subr.mxu0 0.0
  %3264 = vmatpush1.msra.mxu0 0.0
  %3265 = vmatprep.subr.mxu0 0.0
  %3266 = vmatpush1.msra.mxu0 0.0
  %3267 = vmatprep.subr.mxu0 0.0
  %3268 = vmatpush1.msra.mxu0 0.0
  %3269 = vmatprep.subr.mxu0 0.0
  %3270 = vmatpush1.msra.mxu0 0.0
  %3271 = vmatprep.subr.mxu0 0.0
  %3272 = vmatpush1.msra.mxu0 0.0
  %3273 = vmatprep.subr.mxu0 0.0
  %3274 = vmatpush1.msra.mxu0 0.0
  %3275 = vmatprep.subr.mxu0 0.0
  %3276 = vmatpush1.msra.mxu0 0.0
  %3277 = vmatprep.subr.mxu0 0.0
  %3278 = vmatpush1.msra.mxu0 0.0
  %3279 = vmatprep.subr.mxu0 0.0
  %3280 = vmatpush1.msra.mxu0 0.0
  %3281 = vmatprep.subr.mxu0 0.0
  %3282 = vmatpush1.msra.mxu0 0.0
  %3283 = vmatprep.subr.mxu0 0.0
  %3284 = vmatpush1.msra.mxu0 0.0
  %3285 = vmatprep.subr.mxu0 0.0
  %3286 = vmatpush1.msra.mxu0 0.0
  %3287 = vmatprep.subr.mxu0 0.0
  %3288 = vmatpush1.msra.mxu0 0.0
  %3289 = vmatprep.subr.mxu0 0.0
  %3290 = vmatpush1.msra.mxu0 0.0
  %3291 = vmatprep.subr.mxu0 0.0
  %3292 = vmatpush1.msra.mxu0 0.0
  %3293 = vmatprep.subr.mxu0 0.0
  %3294 = vmatpush1.msra.mxu0 0.0
  %3295 = vmatprep.subr.mxu0 0.0
  %3296 = vmatpush1.msra.mxu0 0.0
  %3297 = vmatprep.subr.mxu0 0.0
  %3298 = vmatpush1.msra.mxu0 0.0
  %3299 = vmatprep.mubr.f32.mxu0 0.0
  %3300 = vmatmul.mubr.f32.gmra.mrb[0].mxu0 %v3224
  %v3301 = vpop.f32.mrb[0].mxu0
  %v3302 = vadd.f32 %v3206, %v3301
  %v3303 = vpop.f32.mrb[0].mxu0
  %3304 = vmatprep.mubr.f32.mxu0 0.0
  %3305 = vmatmul.mubr.f32.gmra.mrb[0].mxu0 %v3227
  %v3306 = vpop.f32.mrb[0].mxu0
  %v3307 = vadd.f32 %v3211, %v3306
  %v3308 = vpop.f32.mrb[0].mxu0
  %3309 = vmatprep.mubr.f32.mxu0 0.0
  %3310 = vmatmul.mubr.f32.gmra.mrb[0].mxu0 %v3230
  %v3311 = vpop.f32.mrb[0].mxu0
  %v3312 = vadd.f32 %v3216, %v3311
  %v3313 = vpop.f32.mrb[0].mxu0
  %3314 = vmatprep.mubr.f32.mxu0 0.0
  %3315 = vmatmul.mubr.f32.gmra.mrb[0].mxu0 %v3233
  %v3316 = vpop.f32.mrb[0].mxu0
  %v3317 = vadd.f32 %v3221, %v3316
  %v3318 = vpop.f32.mrb[0].mxu0
  %3319 = vdwg.mxu0
  %v3320 = vadd.f32 %v1952, %v3302
  %v3321 = vadd.f32 %v1953, %v3307
  %v3322 = vadd.f32 %v1954, %v3312
  %v3323 = vadd.f32 %v1955, %v3317
  %s3324 = scalar_lea.vmem %s10, 32
  %v3325 = vld [vmem:[%s3324] sm:$0xff]
  %v3326 = vld [vmem:[%s3324 + $0x8] sm:$0xff]
  %v3327 = vld [vmem:[%s3324 + $0x10] sm:$0xff]
  %v3328 = vld [vmem:[%s3324 + $0x18] sm:$0xff]
  %s3329 = scalar_lea.vmem %s11, 32
  %v3330 = vld [vmem:[%s3329] sm:$0xff]
  %v3331 = vld [vmem:[%s3329 + $0x8] sm:$0xff]
  %v3332 = vld [vmem:[%s3329 + $0x10] sm:$0xff]
  %v3333 = vld [vmem:[%s3329 + $0x18] sm:$0xff]
  %v3334 = vsel %vm902, %v3320, 0.0
  %v3335 = vsel %vm902, %v3321, 0.0
  %v3336 = vadd.f32 %v3334, %v3335
  %v3337 = vsel %vm902, %v3322, 0.0
  %v3338 = vadd.f32 %v3336, %v3337
  %v3339 = vsel %vm902, %v3323, 0.0
  %v3340 = vadd.f32 %v3338, %v3339
  %v3341 = vrot.slane %v3340, 4
  %v3342 = vadd.f32 %v3340, %v3341
  %v3343 = vrot.slane %v3342, 2
  %v3344 = vadd.f32 %v3342, %v3343
  %v3345 = vrot.slane %v3344, 1
  %v3346 = vadd.f32 %v3344, %v3345
  %v3347 = vmul.f32 %v3346, %v1457
  %v3348 = vsub.f32 %v3320, %v3347
  %v3349 = vsub.f32 %v3321, %v3347
  %v3350 = vsub.f32 %v3322, %v3347
  %v3351 = vsub.f32 %v3323, %v3347
  %v3352 = vmul.f32 %v3348, %v3348
  %v3353 = vmul.f32 %v3349, %v3349
  %v3354 = vmul.f32 %v3350, %v3350
  %v3355 = vmul.f32 %v3351, %v3351
  %v3356 = vsel %vm902, %v3352, 0.0
  %v3357 = vsel %vm902, %v3353, 0.0
  %v3358 = vadd.f32 %v3356, %v3357
  %v3359 = vsel %vm902, %v3354, 0.0
  %v3360 = vadd.f32 %v3358, %v3359
  %v3361 = vsel %vm902, %v3355, 0.0
  %v3362 = vadd.f32 %v3360, %v3361
  %v3363 = vrot.slane %v3362, 4
  %v3364 = vadd.f32 %v3362, %v3363
  %v3365 = vrot.slane %v3364, 2
  %v3366 = vadd.f32 %v3364, %v3365
  %v3367 = vrot.slane %v3366, 1
  %v3368 = vadd.f32 %v3366, %v3367
  %v3369 = vmul.f32 %v3368, %v1457
  %v3370 = vadd.f32 %v3369, 1e-05
  %v3371 = vrsqrt.pop %v3370
  %v3372 = vmul.f32 %v3348, %v3371
  %v3373 = vmul.f32 %v3349, %v3371
  %v3374 = vmul.f32 %v3350, %v3371
  %v3375 = vmul.f32 %v3351, %v3371
  %3377 = vset.pattern.permute.xlu0 0
  %3378 = vperm.xlu0 %3377, %v3325
  %v3379 = vpop.permute.xlu0 %3378
  %3382 = vset.pattern.permute.xlu0 0
  %3383 = vperm.xlu0 %3382, %v3326
  %v3384 = vpop.permute.xlu0 %3383
  %3387 = vset.pattern.permute.xlu0 0
  %3388 = vperm.xlu0 %3387, %v3327
  %v3389 = vpop.permute.xlu0 %3388
  %3392 = vset.pattern.permute.xlu0 0
  %3393 = vperm.xlu0 %3392, %v3328
  %v3394 = vpop.permute.xlu0 %3393
  %v3396 = vmul.f32 %v3372, %v3379
  %v3397 = vmul.f32 %v3373, %v3384
  %v3398 = vmul.f32 %v3374, %v3389
  %v3399 = vmul.f32 %v3375, %v3394
  %3401 = vset.pattern.permute.xlu0 0
  %3402 = vperm.xlu0 %3401, %v3330
  %v3403 = vpop.permute.xlu0 %3402
  %3406 = vset.pattern.permute.xlu0 0
  %3407 = vperm.xlu0 %3406, %v3331
  %v3408 = vpop.permute.xlu0 %3407
  %3411 = vset.pattern.permute.xlu0 0
  %3412 = vperm.xlu0 %3411, %v3332
  %v3413 = vpop.permute.xlu0 %3412
  %3416 = vset.pattern.permute.xlu0 0
  %3417 = vperm.xlu0 %3416, %v3333
  %v3418 = vpop.permute.xlu0 %3417
  %v3420 = vadd.f32 %v3396, %v3403
  %v3421 = vadd.f32 %v3397, %v3408
  %v3422 = vadd.f32 %v3398, %v3413
  %v3423 = vadd.f32 %v3399, %v3418
  %s3424 = scalar_lea.vmem %s12, 64
  %v3425 = vld [vmem:[%s3424] sm:$0xff]
  %v3426 = vld [vmem:[%s3424 + $0x8] sm:$0xff]
  %v3427 = vld [vmem:[%s3424 + $0x10] sm:$0xff]
  %v3428 = vld [vmem:[%s3424 + $0x18] sm:$0xff]
  %v3429 = vld [vmem:[%s3424 + $0x20] sm:$0xff]
  %v3430 = vld [vmem:[%s3424 + $0x28] sm:$0xff]
  %v3431 = vld [vmem:[%s3424 + $0x30] sm:$0xff]
  %v3432 = vld [vmem:[%s3424 + $0x38] sm:$0xff]
  %s3433 = scalar_lea.vmem %s13, 64
  %v3434 = vld [vmem:[%s3433] sm:$0xff]
  %v3435 = vld [vmem:[%s3433 + $0x8] sm:$0xff]
  %v3436 = vld [vmem:[%s3433 + $0x10] sm:$0xff]
  %v3437 = vld [vmem:[%s3433 + $0x18] sm:$0xff]
  %v3438 = vld [vmem:[%s3433 + $0x20] sm:$0xff]
  %v3439 = vld [vmem:[%s3433 + $0x28] sm:$0xff]
  %v3440 = vld [vmem:[%s3433 + $0x30] sm:$0xff]
  %v3441 = vld [vmem:[%s3433 + $0x38] sm:$0xff]
  %3443 = vset.pattern.permute.xlu0 0
  %3444 = vperm.xlu0 %3443, %v3434
  %v3445 = vpop.permute.xlu0 %3444
  %3448 = vset.pattern.permute.xlu0 0
  %3449 = vperm.xlu0 %3448, %v3435
  %v3450 = vpop.permute.xlu0 %3449
  %3453 = vset.pattern.permute.xlu0 0
  %3454 = vperm.xlu0 %3453, %v3436
  %v3455 = vpop.permute.xlu0 %3454
  %3458 = vset.pattern.permute.xlu0 0
  %3459 = vperm.xlu0 %3458, %v3437
  %v3460 = vpop.permute.xlu0 %3459
  %3463 = vset.pattern.permute.xlu0 0
  %3464 = vperm.xlu0 %3463, %v3438
  %v3465 = vpop.permute.xlu0 %3464
  %3468 = vset.pattern.permute.xlu0 0
  %3469 = vperm.xlu0 %3468, %v3439
  %v3470 = vpop.permute.xlu0 %3469
  %3473 = vset.pattern.permute.xlu0 0
  %3474 = vperm.xlu0 %3473, %v3440
  %v3475 = vpop.permute.xlu0 %3474
  %3478 = vset.pattern.permute.xlu0 0
  %3479 = vperm.xlu0 %3478, %v3441
  %v3480 = vpop.permute.xlu0 %3479
  %v3483 = vsel %vm101, %v3425, 0
  %v3486 = vsel %vm101, %v3426, 0
  %v3489 = vsel %vm101, %v3427, 0
  %v3492 = vsel %vm101, %v3428, 0
  %v3495 = vsel %vm101, %v3429, 0
  %v3498 = vsel %vm101, %v3430, 0
  %v3501 = vsel %vm101, %v3431, 0
  %v3504 = vsel %vm101, %v3432, 0
  %3506 = vmatprep.subr.mxu0 0.0
  %3507 = vmatpush1.msra.mxu0 %v3420
  %3508 = vmatprep.subr.mxu0 0.0
  %3509 = vmatpush1.msra.mxu0 %v3421
  %3510 = vmatprep.subr.mxu0 0.0
  %3511 = vmatpush1.msra.mxu0 %v3422
  %3512 = vmatprep.subr.mxu0 0.0
  %3513 = vmatpush1.msra.mxu0 %v3423
  %3514 = vmatprep.subr.mxu0 0.0
  %3515 = vmatpush1.msra.mxu0 0.0
  %3516 = vmatprep.subr.mxu0 0.0
  %3517 = vmatpush1.msra.mxu0 0.0
  %3518 = vmatprep.subr.mxu0 0.0
  %3519 = vmatpush1.msra.mxu0 0.0
  %3520 = vmatprep.subr.mxu0 0.0
  %3521 = vmatpush1.msra.mxu0 0.0
  %3522 = vmatprep.subr.mxu0 0.0
  %3523 = vmatpush1.msra.mxu0 0.0
  %3524 = vmatprep.subr.mxu0 0.0
  %3525 = vmatpush1.msra.mxu0 0.0
  %3526 = vmatprep.subr.mxu0 0.0
  %3527 = vmatpush1.msra.mxu0 0.0
  %3528 = vmatprep.subr.mxu0 0.0
  %3529 = vmatpush1.msra.mxu0 0.0
  %3530 = vmatprep.subr.mxu0 0.0
  %3531 = vmatpush1.msra.mxu0 0.0
  %3532 = vmatprep.subr.mxu0 0.0
  %3533 = vmatpush1.msra.mxu0 0.0
  %3534 = vmatprep.subr.mxu0 0.0
  %3535 = vmatpush1.msra.mxu0 0.0
  %3536 = vmatprep.subr.mxu0 0.0
  %3537 = vmatpush1.msra.mxu0 0.0
  %3538 = vmatprep.subr.mxu0 0.0
  %3539 = vmatpush1.msra.mxu0 0.0
  %3540 = vmatprep.subr.mxu0 0.0
  %3541 = vmatpush1.msra.mxu0 0.0
  %3542 = vmatprep.subr.mxu0 0.0
  %3543 = vmatpush1.msra.mxu0 0.0
  %3544 = vmatprep.subr.mxu0 0.0
  %3545 = vmatpush1.msra.mxu0 0.0
  %3546 = vmatprep.subr.mxu0 0.0
  %3547 = vmatpush1.msra.mxu0 0.0
  %3548 = vmatprep.subr.mxu0 0.0
  %3549 = vmatpush1.msra.mxu0 0.0
  %3550 = vmatprep.subr.mxu0 0.0
  %3551 = vmatpush1.msra.mxu0 0.0
  %3552 = vmatprep.subr.mxu0 0.0
  %3553 = vmatpush1.msra.mxu0 0.0
  %3554 = vmatprep.subr.mxu0 0.0
  %3555 = vmatpush1.msra.mxu0 0.0
  %3556 = vmatprep.subr.mxu0 0.0
  %3557 = vmatpush1.msra.mxu0 0.0
  %3558 = vmatprep.subr.mxu0 0.0
  %3559 = vmatpush1.msra.mxu0 0.0
  %3560 = vmatprep.subr.mxu0 0.0
  %3561 = vmatpush1.msra.mxu0 0.0
  %3562 = vmatprep.subr.mxu0 0.0
  %3563 = vmatpush1.msra.mxu0 0.0
  %3564 = vmatprep.subr.mxu0 0.0
  %3565 = vmatpush1.msra.mxu0 0.0
  %3566 = vmatprep.subr.mxu0 0.0
  %3567 = vmatpush1.msra.mxu0 0.0
  %3568 = vmatprep.subr.mxu0 0.0
  %3569 = vmatpush1.msra.mxu0 0.0
  %3570 = vmatprep.mubr.f32.mxu0 0.0
  %3571 = vmatmul.mubr.f32.gmra.mrb[0].mxu0 %v3483
  %v3572 = vpop.f32.mrb[0].mxu0
  %v3573 = vadd.f32 %v3445, %v3572
  %v3574 = vpop.f32.mrb[0].mxu0
  %3575 = vmatprep.mubr.f32.mxu0 0.0
  %3576 = vmatmul.mubr.f32.gmra.mrb[0].mxu0 %v3486
  %v3577 = vpop.f32.mrb[0].mxu0
  %v3578 = vadd.f32 %v3450, %v3577
  %v3579 = vpop.f32.mrb[0].mxu0
  %3580 = vmatprep.mubr.f32.mxu0 0.0
  %3581 = vmatmul.mubr.f32.gmra.mrb[0].mxu0 %v3489
  %v3582 = vpop.f32.mrb[0].mxu0
  %v3583 = vadd.f32 %v3455, %v3582
  %v3584 = vpop.f32.mrb[0].mxu0
  %3585 = vmatprep.mubr.f32.mxu0 0.0
  %3586 = vmatmul.mubr.f32.gmra.mrb[0].mxu0 %v3492
  %v3587 = vpop.f32.mrb[0].mxu0
  %v3588 = vadd.f32 %v3460, %v3587
  %v3589 = vpop.f32.mrb[0].mxu0
  %3590 = vmatprep.mubr.f32.mxu0 0.0
  %3591 = vmatmul.mubr.f32.gmra.mrb[0].mxu0 %v3495
  %v3592 = vpop.f32.mrb[0].mxu0
  %v3593 = vadd.f32 %v3465, %v3592
  %v3594 = vpop.f32.mrb[0].mxu0
  %3595 = vmatprep.mubr.f32.mxu0 0.0
  %3596 = vmatmul.mubr.f32.gmra.mrb[0].mxu0 %v3498
  %v3597 = vpop.f32.mrb[0].mxu0
  %v3598 = vadd.f32 %v3470, %v3597
  %v3599 = vpop.f32.mrb[0].mxu0
  %3600 = vmatprep.mubr.f32.mxu0 0.0
  %3601 = vmatmul.mubr.f32.gmra.mrb[0].mxu0 %v3501
  %v3602 = vpop.f32.mrb[0].mxu0
  %v3603 = vadd.f32 %v3475, %v3602
  %v3604 = vpop.f32.mrb[0].mxu0
  %3605 = vmatprep.mubr.f32.mxu0 0.0
  %3606 = vmatmul.mubr.f32.gmra.mrb[0].mxu0 %v3504
  %v3607 = vpop.f32.mrb[0].mxu0
  %v3608 = vadd.f32 %v3480, %v3607
  %v3609 = vpop.f32.mrb[0].mxu0
  %3610 = vdwg.mxu0
  %v3611 = vmax.f32 %v3573, 0.0
  %v3612 = vmax.f32 %v3578, 0.0
  %v3613 = vmax.f32 %v3583, 0.0
  %v3614 = vmax.f32 %v3588, 0.0
  %v3615 = vmax.f32 %v3593, 0.0
  %v3616 = vmax.f32 %v3598, 0.0
  %v3617 = vmax.f32 %v3603, 0.0
  %v3618 = vmax.f32 %v3608, 0.0
  %s3619 = scalar_lea.vmem %s14, 32
  %v3620 = vld [vmem:[%s3619] sm:$0xff]
  %v3621 = vld [vmem:[%s3619 + $0x8] sm:$0xff]
  %v3622 = vld [vmem:[%s3619 + $0x10] sm:$0xff]
  %v3623 = vld [vmem:[%s3619 + $0x18] sm:$0xff]
  %s3624 = scalar_lea.vmem %s15, 32
  %v3625 = vld [vmem:[%s3624] sm:$0xff]
  %v3626 = vld [vmem:[%s3624 + $0x8] sm:$0xff]
  %v3627 = vld [vmem:[%s3624 + $0x10] sm:$0xff]
  %v3628 = vld [vmem:[%s3624 + $0x18] sm:$0xff]
  %3630 = vset.pattern.permute.xlu0 0
  %3631 = vperm.xlu0 %3630, %v3625
  %v3632 = vpop.permute.xlu0 %3631
  %3635 = vset.pattern.permute.xlu0 0
  %3636 = vperm.xlu0 %3635, %v3626
  %v3637 = vpop.permute.xlu0 %3636
  %3640 = vset.pattern.permute.xlu0 0
  %3641 = vperm.xlu0 %3640, %v3627
  %v3642 = vpop.permute.xlu0 %3641
  %3645 = vset.pattern.permute.xlu0 0
  %3646 = vperm.xlu0 %3645, %v3628
  %v3647 = vpop.permute.xlu0 %3646
  %v3650 = vsel %vm1756, %v3620, 0
  %v3653 = vsel %vm1756, %v3621, 0
  %v3656 = vsel %vm1756, %v3622, 0
  %v3659 = vsel %vm1756, %v3623, 0
  %3661 = vmatprep.subr.mxu0 0.0
  %3662 = vmatpush1.msra.mxu0 %v3611
  %3663 = vmatprep.subr.mxu0 0.0
  %3664 = vmatpush1.msra.mxu0 %v3612
  %3665 = vmatprep.subr.mxu0 0.0
  %3666 = vmatpush1.msra.mxu0 %v3613
  %3667 = vmatprep.subr.mxu0 0.0
  %3668 = vmatpush1.msra.mxu0 %v3614
  %3669 = vmatprep.subr.mxu0 0.0
  %3670 = vmatpush1.msra.mxu0 %v3615
  %3671 = vmatprep.subr.mxu0 0.0
  %3672 = vmatpush1.msra.mxu0 %v3616
  %3673 = vmatprep.subr.mxu0 0.0
  %3674 = vmatpush1.msra.mxu0 %v3617
  %3675 = vmatprep.subr.mxu0 0.0
  %3676 = vmatpush1.msra.mxu0 %v3618
  %3677 = vmatprep.subr.mxu0 0.0
  %3678 = vmatpush1.msra.mxu0 0.0
  %3679 = vmatprep.subr.mxu0 0.0
  %3680 = vmatpush1.msra.mxu0 0.0
  %3681 = vmatprep.subr.mxu0 0.0
  %3682 = vmatpush1.msra.mxu0 0.0
  %3683 = vmatprep.subr.mxu0 0.0
  %3684 = vmatpush1.msra.mxu0 0.0
  %3685 = vmatprep.subr.mxu0 0.0
  %3686 = vmatpush1.msra.mxu0 0.0
  %3687 = vmatprep.subr.mxu0 0.0
  %3688 = vmatpush1.msra.mxu0 0.0
  %3689 = vmatprep.subr.mxu0 0.0
  %3690 = vmatpush1.msra.mxu0 0.0
  %3691 = vmatprep.subr.mxu0 0.0
  %3692 = vmatpush1.msra.mxu0 0.0
  %3693 = vmatprep.subr.mxu0 0.0
  %3694 = vmatpush1.msra.mxu0 0.0
  %3695 = vmatprep.subr.mxu0 0.0
  %3696 = vmatpush1.msra.mxu0 0.0
  %3697 = vmatprep.subr.mxu0 0.0
  %3698 = vmatpush1.msra.mxu0 0.0
  %3699 = vmatprep.subr.mxu0 0.0
  %3700 = vmatpush1.msra.mxu0 0.0
  %3701 = vmatprep.subr.mxu0 0.0
  %3702 = vmatpush1.msra.mxu0 0.0
  %3703 = vmatprep.subr.mxu0 0.0
  %3704 = vmatpush1.msra.mxu0 0.0
  %3705 = vmatprep.subr.mxu0 0.0
  %3706 = vmatpush1.msra.mxu0 0.0
  %3707 = vmatprep.subr.mxu0 0.0
  %3708 = vmatpush1.msra.mxu0 0.0
  %3709 = vmatprep.subr.mxu0 0.0
  %3710 = vmatpush1.msra.mxu0 0.0
  %3711 = vmatprep.subr.mxu0 0.0
  %3712 = vmatpush1.msra.mxu0 0.0
  %3713 = vmatprep.subr.mxu0 0.0
  %3714 = vmatpush1.msra.mxu0 0.0
  %3715 = vmatprep.subr.mxu0 0.0
  %3716 = vmatpush1.msra.mxu0 0.0
  %3717 = vmatprep.subr.mxu0 0.0
  %3718 = vmatpush1.msra.mxu0 0.0
  %3719 = vmatprep.subr.mxu0 0.0
  %3720 = vmatpush1.msra.mxu0 0.0
  %3721 = vmatprep.subr.mxu0 0.0
  %3722 = vmatpush1.msra.mxu0 0.0
  %3723 = vmatprep.subr.mxu0 0.0
  %3724 = vmatpush1.msra.mxu0 0.0
  %3725 = vmatprep.mubr.f32.mxu0 0.0
  %3726 = vmatmul.mubr.f32.gmra.mrb[0].mxu0 %v3650
  %v3727 = vpop.f32.mrb[0].mxu0
  %v3728 = vadd.f32 %v3632, %v3727
  %v3729 = vpop.f32.mrb[0].mxu0
  %3730 = vmatprep.mubr.f32.mxu0 0.0
  %3731 = vmatmul.mubr.f32.gmra.mrb[0].mxu0 %v3653
  %v3732 = vpop.f32.mrb[0].mxu0
  %v3733 = vadd.f32 %v3637, %v3732
  %v3734 = vpop.f32.mrb[0].mxu0
  %3735 = vmatprep.mubr.f32.mxu0 0.0
  %3736 = vmatmul.mubr.f32.gmra.mrb[0].mxu0 %v3656
  %v3737 = vpop.f32.mrb[0].mxu0
  %v3738 = vadd.f32 %v3642, %v3737
  %v3739 = vpop.f32.mrb[0].mxu0
  %3740 = vmatprep.mubr.f32.mxu0 0.0
  %3741 = vmatmul.mubr.f32.gmra.mrb[0].mxu0 %v3659
  %v3742 = vpop.f32.mrb[0].mxu0
  %v3743 = vadd.f32 %v3647, %v3742
  %v3744 = vpop.f32.mrb[0].mxu0
  %3745 = vdwg.mxu0
  %v3746 = vadd.f32 %v3420, %v3728
  %v3747 = vadd.f32 %v3421, %v3733
  %v3748 = vadd.f32 %v3422, %v3738
  %v3749 = vadd.f32 %v3423, %v3743
  %s3750 = scalar_lea.vmem %s16, 32
  %v3751 = vld [vmem:[%s3750] sm:$0xff]
  %v3752 = vld [vmem:[%s3750 + $0x8] sm:$0xff]
  %v3753 = vld [vmem:[%s3750 + $0x10] sm:$0xff]
  %v3754 = vld [vmem:[%s3750 + $0x18] sm:$0xff]
  %s3755 = scalar_lea.vmem %s17, 32
  %v3756 = vld [vmem:[%s3755] sm:$0xff]
  %v3757 = vld [vmem:[%s3755 + $0x8] sm:$0xff]
  %v3758 = vld [vmem:[%s3755 + $0x10] sm:$0xff]
  %v3759 = vld [vmem:[%s3755 + $0x18] sm:$0xff]
  %v3760 = vsel %vm902, %v3746, 0.0
  %v3761 = vsel %vm902, %v3747, 0.0
  %v3762 = vadd.f32 %v3760, %v3761
  %v3763 = vsel %vm902, %v3748, 0.0
  %v3764 = vadd.f32 %v3762, %v3763
  %v3765 = vsel %vm902, %v3749, 0.0
  %v3766 = vadd.f32 %v3764, %v3765
  %v3767 = vrot.slane %v3766, 4
  %v3768 = vadd.f32 %v3766, %v3767
  %v3769 = vrot.slane %v3768, 2
  %v3770 = vadd.f32 %v3768, %v3769
  %v3771 = vrot.slane %v3770, 1
  %v3772 = vadd.f32 %v3770, %v3771
  %v3773 = vmul.f32 %v3772, %v1457
  %v3774 = vsub.f32 %v3746, %v3773
  %v3775 = vsub.f32 %v3747, %v3773
  %v3776 = vsub.f32 %v3748, %v3773
  %v3777 = vsub.f32 %v3749, %v3773
  %v3778 = vmul.f32 %v3774, %v3774
  %v3779 = vmul.f32 %v3775, %v3775
  %v3780 = vmul.f32 %v3776, %v3776
  %v3781 = vmul.f32 %v3777, %v3777
  %v3782 = vsel %vm902, %v3778, 0.0
  %v3783 = vsel %vm902, %v3779, 0.0
  %v3784 = vadd.f32 %v3782, %v3783
  %v3785 = vsel %vm902, %v3780, 0.0
  %v3786 = vadd.f32 %v3784, %v3785
  %v3787 = vsel %vm902, %v3781, 0.0
  %v3788 = vadd.f32 %v3786, %v3787
  %v3789 = vrot.slane %v3788, 4
  %v3790 = vadd.f32 %v3788, %v3789
  %v3791 = vrot.slane %v3790, 2
  %v3792 = vadd.f32 %v3790, %v3791
  %v3793 = vrot.slane %v3792, 1
  %v3794 = vadd.f32 %v3792, %v3793
  %v3795 = vmul.f32 %v3794, %v1457
  %v3796 = vadd.f32 %v3795, 1e-05
  %v3797 = vrsqrt.pop %v3796
  %v3798 = vmul.f32 %v3774, %v3797
  %v3799 = vmul.f32 %v3775, %v3797
  %v3800 = vmul.f32 %v3776, %v3797
  %v3801 = vmul.f32 %v3777, %v3797
  %3803 = vset.pattern.permute.xlu0 0
  %3804 = vperm.xlu0 %3803, %v3751
  %v3805 = vpop.permute.xlu0 %3804
  %3808 = vset.pattern.permute.xlu0 0
  %3809 = vperm.xlu0 %3808, %v3752
  %v3810 = vpop.permute.xlu0 %3809
  %3813 = vset.pattern.permute.xlu0 0
  %3814 = vperm.xlu0 %3813, %v3753
  %v3815 = vpop.permute.xlu0 %3814
  %3818 = vset.pattern.permute.xlu0 0
  %3819 = vperm.xlu0 %3818, %v3754
  %v3820 = vpop.permute.xlu0 %3819
  %v3822 = vmul.f32 %v3798, %v3805
  %v3823 = vmul.f32 %v3799, %v3810
  %v3824 = vmul.f32 %v3800, %v3815
  %v3825 = vmul.f32 %v3801, %v3820
  %3827 = vset.pattern.permute.xlu0 0
  %3828 = vperm.xlu0 %3827, %v3756
  %v3829 = vpop.permute.xlu0 %3828
  %3832 = vset.pattern.permute.xlu0 0
  %3833 = vperm.xlu0 %3832, %v3757
  %v3834 = vpop.permute.xlu0 %3833
  %3837 = vset.pattern.permute.xlu0 0
  %3838 = vperm.xlu0 %3837, %v3758
  %v3839 = vpop.permute.xlu0 %3838
  %3842 = vset.pattern.permute.xlu0 0
  %3843 = vperm.xlu0 %3842, %v3759
  %v3844 = vpop.permute.xlu0 %3843
  %v3846 = vadd.f32 %v3822, %v3829
  %v3847 = vadd.f32 %v3823, %v3834
  %v3848 = vadd.f32 %v3824, %v3839
  %v3849 = vadd.f32 %v3825, %v3844
  %v3850 = vld [vmem:[%s18] sm:$0x1]
  %v3851 = vld [vmem:[#allocation2] sm:$0x1]
  %3853 = vset.pattern.permute.xlu0 0
  %3854 = vperm.xlu0 %3853, %v3851
  %v3855 = vpop.permute.xlu0 %3854
  %v3857 = vlaneseq
  %v3858 = vshrl.u32 %v3857, 7
  %v3859 = vsub.s32 0, %v3858
  %v3860 = vrot.slane %v3855, %v3859
  %v3862 = vsel %vm101, %v3850, 0
  %3864 = vmatprep.subr.mxu0 0.0
  %3865 = vmatpush1.msra.mxu0 %v3846
  %3866 = vmatprep.subr.mxu0 0.0
  %3867 = vmatpush1.msra.mxu0 %v3847
  %3868 = vmatprep.subr.mxu0 0.0
  %3869 = vmatpush1.msra.mxu0 %v3848
  %3870 = vmatprep.subr.mxu0 0.0
  %3871 = vmatpush1.msra.mxu0 %v3849
  %3872 = vmatprep.subr.mxu0 0.0
  %3873 = vmatpush1.msra.mxu0 0.0
  %3874 = vmatprep.subr.mxu0 0.0
  %3875 = vmatpush1.msra.mxu0 0.0
  %3876 = vmatprep.subr.mxu0 0.0
  %3877 = vmatpush1.msra.mxu0 0.0
  %3878 = vmatprep.subr.mxu0 0.0
  %3879 = vmatpush1.msra.mxu0 0.0
  %3880 = vmatprep.subr.mxu0 0.0
  %3881 = vmatpush1.msra.mxu0 0.0
  %3882 = vmatprep.subr.mxu0 0.0
  %3883 = vmatpush1.msra.mxu0 0.0
  %3884 = vmatprep.subr.mxu0 0.0
  %3885 = vmatpush1.msra.mxu0 0.0
  %3886 = vmatprep.subr.mxu0 0.0
  %3887 = vmatpush1.msra.mxu0 0.0
  %3888 = vmatprep.subr.mxu0 0.0
  %3889 = vmatpush1.msra.mxu0 0.0
  %3890 = vmatprep.subr.mxu0 0.0
  %3891 = vmatpush1.msra.mxu0 0.0
  %3892 = vmatprep.subr.mxu0 0.0
  %3893 = vmatpush1.msra.mxu0 0.0
  %3894 = vmatprep.subr.mxu0 0.0
  %3895 = vmatpush1.msra.mxu0 0.0
  %3896 = vmatprep.subr.mxu0 0.0
  %3897 = vmatpush1.msra.mxu0 0.0
  %3898 = vmatprep.subr.mxu0 0.0
  %3899 = vmatpush1.msra.mxu0 0.0
  %3900 = vmatprep.subr.mxu0 0.0
  %3901 = vmatpush1.msra.mxu0 0.0
  %3902 = vmatprep.subr.mxu0 0.0
  %3903 = vmatpush1.msra.mxu0 0.0
  %3904 = vmatprep.subr.mxu0 0.0
  %3905 = vmatpush1.msra.mxu0 0.0
  %3906 = vmatprep.subr.mxu0 0.0
  %3907 = vmatpush1.msra.mxu0 0.0
  %3908 = vmatprep.subr.mxu0 0.0
  %3909 = vmatpush1.msra.mxu0 0.0
  %3910 = vmatprep.subr.mxu0 0.0
  %3911 = vmatpush1.msra.mxu0 0.0
  %3912 = vmatprep.subr.mxu0 0.0
  %3913 = vmatpush1.msra.mxu0 0.0
  %3914 = vmatprep.subr.mxu0 0.0
  %3915 = vmatpush1.msra.mxu0 0.0
  %3916 = vmatprep.subr.mxu0 0.0
  %3917 = vmatpush1.msra.mxu0 0.0
  %3918 = vmatprep.subr.mxu0 0.0
  %3919 = vmatpush1.msra.mxu0 0.0
  %3920 = vmatprep.subr.mxu0 0.0
  %3921 = vmatpush1.msra.mxu0 0.0
  %3922 = vmatprep.subr.mxu0 0.0
  %3923 = vmatpush1.msra.mxu0 0.0
  %3924 = vmatprep.subr.mxu0 0.0
  %3925 = vmatpush1.msra.mxu0 0.0
  %3926 = vmatprep.subr.mxu0 0.0
  %3927 = vmatpush1.msra.mxu0 0.0
  %3928 = vmatprep.mubr.f32.mxu0 0.0
  %3929 = vmatmul.mubr.f32.gmra.mrb[0].mxu0 %v3862
  %v3930 = vpop.f32.mrb[0].mxu0
  %v3931 = vadd.f32 %v3860, %v3930
  %v3932 = vpop.f32.mrb[0].mxu0
  %3933 = vdwg.mxu0
  %vm3934 = vcmask 122880
  %3935 = vst.msk [vmem:[%s20] sm:$0x1] %vm3934, %v3931
  // Predicated region
  $region82: #{model_transformer_pallas.1} parent=0 // pred_check
    _
  $region83: #{model_transformer_pallas.1} parent=0 // pred_check_branch
    %3937 = sbr.rel (0) target = $region85
  $region84: #{model_transformer_pallas.1} parent=0 // pred_region
    _
  $region85: #{model_transformer_pallas.1} parent=0 // pred_fallthru
    _
  // Predicated region
  $region86: #{model_transformer_pallas.1} parent=0 // pred_check
    _
  $region87: #{model_transformer_pallas.1} parent=0 // pred_check_branch
    %3939 = sbr.rel (0) target = $region89
  $region88: #{model_transformer_pallas.1} parent=0 // pred_region
    _
  $region89: #{model_transformer_pallas.1} parent=0 // pred_fallthru
    _

</llo_original>
